<compile_context>
chip_gen: v7x
topology: tpu7x:2x2x1
jax: 0.10.0
libtpu: 0.0.40
codegen_flags: <defaults>
</compile_context>

<pallas_src>
import math
import functools

import jax
import jax.numpy as jnp
from jax import lax
from jax.experimental import pallas as pl
from jax.experimental.pallas import tpu as pltpu

_NEG_INF = -1e30                 # finite mask value (no inf/NaN propagation)


def _lcm(a, b):
    return a * b // math.gcd(a, b)


def _tile(total, preferred, align):
    """Largest t <= preferred with t % align == 0 and total % t == 0.

    Never silently returns a block larger than requested unless no aligned
    divisor exists at all (then it falls back to the full extent).
    """
    if total <= preferred:
        return total
    t = (min(preferred, total) // align) * align
    while t >= align:
        if total % t == 0:
            return t
        t -= align
    # TODO(synk): pad `total` up to a tile multiple (and mask the tail) instead
    # of falling back to the full extent for awkward (e.g. prime) sizes.
    return total


def _vmem_limit_bytes():
    """Per-generation scoped-VMEM budget (3/4 of physical), safe fallback."""
    try:
        return int(pltpu.get_tpu_info().vmem_capacity_bytes * 3 // 4)
    except Exception:
        return 64 * 1024 * 1024


# --------------------------------------------------------------------------- #
# Kernel 1: streamed QKV projection + RoPE (+ softmax scale folded into Wq)
# --------------------------------------------------------------------------- #
def qkv_rope_kernel(x_ref, wq_ref, wk_ref, wv_ref, bq_ref, bk_ref, bv_ref,
                    cos_ref, sin_ref, q_ref, k_ref, v_ref,
                    *, heads_per_tile, head_dim, rope_dim, compute_dtype):
    del compute_dtype  # operands already arrive in compute dtype
    half = rope_dim // 2

    x = x_ref[...]                                                   # (tt, D)
    q = jnp.dot(x, wq_ref[...], preferred_element_type=jnp.float32) + bq_ref[...]
    k = jnp.dot(x, wk_ref[...], preferred_element_type=jnp.float32) + bk_ref[...]
    v = jnp.dot(x, wv_ref[...], preferred_element_type=jnp.float32) + bv_ref[...]
    v_ref[...] = v.astype(v_ref.dtype)

    cos = cos_ref[...]                                               # (tt, half) f32
    sin = sin_ref[...]

    def rotate(z):
        # Per-head layout inside this column tile is [evens | odds | tail];
        # build the rotated tile as a value and store it once (no double write).
        pieces = []
        for h in range(heads_per_tile):                              # static loop
            s = h * head_dim
            ze = z[:, s:s + half]
            zo = z[:, s + half:s + rope_dim]
            pieces.append(ze * cos - zo * sin)
            pieces.append(ze * sin + zo * cos)
            if rope_dim < head_dim:
                pieces.append(z[:, s + rope_dim:s + head_dim])
        return jnp.concatenate(pieces, axis=-1)

    q_ref[...] = rotate(q).astype(q_ref.dtype)
    k_ref[...] = rotate(k).astype(k_ref.dtype)


# --------------------------------------------------------------------------- #
# Kernel 2: flash attention (online softmax) + fused output projection
# --------------------------------------------------------------------------- #
def flash_attn_kernel(q_ref, k_ref, v_ref, wp_ref, bp_ref, o_ref,
                      m_s, l_s, acc_s,
                      *, num_heads, head_dim, q_tile, kv_tile, compute_dtype):
    ki = pl.program_id(2)
    n_kv = pl.num_programs(2)
    q_start = pl.program_id(1) * q_tile
    k_start = ki * kv_tile

    @pl.when(ki == 0)
    def _init():
        m_s[...] = jnp.full_like(m_s, _NEG_INF)
        l_s[...] = jnp.zeros_like(l_s)
        acc_s[...] = jnp.zeros_like(acc_s)

    def attn_step(apply_mask):
        q = q_ref[...]                                               # (tq, D)
        k = k_ref[...]                                               # (tk, D)
        v = v_ref[...]
        if apply_mask:
            row = q_start + lax.broadcasted_iota(jnp.int32, (q_tile, kv_tile), 0)
            col = k_start + lax.broadcasted_iota(jnp.int32, (q_tile, kv_tile), 1)
            causal = col <= row
        # TODO(synk): for num_heads >~ 16 switch to lax.fori_loop(unroll=2) with
        # pl.ds head slices to keep the basic block / live ranges small.
        # TODO(synk): v7x: per-(B*H) grid with (tq, hd)/(tk, hd) blocks would cut
        # the per-step K/V working set by H and feed both TensorCores.
        for h in range(num_heads):                                   # static loop
            s = h * head_dim
            # Contract feature dims directly (no explicit k transpose).
            sc = lax.dot_general(q[:, s:s + head_dim], k[:, s:s + head_dim],
                                 (((1,), (1,)), ((), ())),
                                 preferred_element_type=jnp.float32)
            if apply_mask:
                sc = jnp.where(causal, sc, _NEG_INF)   # 1/sqrt(hd) folded into Wq
            m_prev = m_s[:, h:h + 1]                                 # (tq, 1)
            m_new = jnp.maximum(m_prev, jnp.max(sc, axis=-1, keepdims=True))
            alpha = jnp.exp(m_prev - m_new)
            p = jnp.exp(sc - m_new)                                  # f32
            l_s[:, h:h + 1] = alpha * l_s[:, h:h + 1] + jnp.sum(p, axis=-1, keepdims=True)
            acc_s[:, s:s + head_dim] = (
                alpha * acc_s[:, s:s + head_dim]
                + jnp.dot(p.astype(compute_dtype), v[:, s:s + head_dim],
                          preferred_element_type=jnp.float32))
            m_s[:, h:h + 1] = m_new

    kv_last = k_start + kv_tile - 1
    q_last = q_start + q_tile - 1

    @pl.when(kv_last <= q_start)
    def _unmasked():            # tile entirely below/at the diagonal: no select
        attn_step(apply_mask=False)

    @pl.when(jnp.logical_and(kv_last > q_start, k_start <= q_last))
    def _masked():              # tile straddles the diagonal
        attn_step(apply_mask=True)
    # k_start > q_last: fully masked tile -> no compute, and the clamped K/V
    # index_map means its HBM DMA was skipped as well.

    @pl.when(ki == n_kv - 1)
    def _finalize():
        approx = compute_dtype == jnp.bfloat16          # exact recip in f32 path
        inv = pl.reciprocal(l_s[...], approx=approx)    # (tq, H)
        acc = acc_s[...]                                # single accumulator read
        out = jnp.concatenate(
            [acc[:, h * head_dim:(h + 1) * head_dim] * inv[:, h:h + 1]
             for h in range(num_heads)], axis=-1).astype(compute_dtype)
        proj = jnp.dot(out, wp_ref[...], preferred_element_type=jnp.float32) + bp_ref[...]
        o_ref[...] = proj.astype(o_ref.dtype)


# --------------------------------------------------------------------------- #
# Wrapper
# --------------------------------------------------------------------------- #
def grouped_query_attention(x, params, num_heads, rope_frac, rotary_base,
                            *, compute_dtype=jnp.bfloat16,
                            t_tile=256, q_tile=256, kv_tile=512, n_tile=1024):
    B, T, D = x.shape
    assert D % num_heads == 0
    head_dim = D // num_heads
    rope_dim = int(head_dim * rope_frac)
    assert 2 <= rope_dim <= head_dim and rope_dim % 2 == 0
    half = rope_dim // 2
    scale = 1.0 / math.sqrt(head_dim)

    # Per-head channel permutation [rope evens | rope odds | non-rope tail],
    # applied identically to q and k (q @ k^T is invariant to it); v / Wp stay
    # in the natural order, so the final projection is unchanged.
    local = jnp.concatenate([jnp.arange(0, rope_dim, 2),
                             jnp.arange(1, rope_dim, 2),
                             jnp.arange(rope_dim, head_dim)])
    perm = (jnp.arange(num_heads)[:, None] * head_dim + local[None, :]).reshape(-1)

    wq_t = (params["wq"][perm, :].T * scale).astype(compute_dtype)   # scale folded in
    wk_t = params["wk"][perm, :].T.astype(compute_dtype)
    wv_t = params["wv"].T.astype(compute_dtype)
    wp_t = params["wp"].T.astype(compute_dtype)
    bq = (params["bq"][perm] * scale)[None, :].astype(jnp.float32)
    bk = params["bk"][perm][None, :].astype(jnp.float32)
    bv = params["bv"][None, :].astype(jnp.float32)
    bp = params["bp"][None, :].astype(jnp.float32)

    # RoPE tables (f32, matching the PyTorch RotaryEmbedding).
    inv_freq = 1.0 / (rotary_base ** (jnp.arange(0, rope_dim, 2, dtype=jnp.float32)
                                      / rope_dim))
    t = jnp.arange(T, dtype=jnp.float32)
    freqs = t[:, None] * inv_freq[None, :]                           # (T, half)
    cos = jnp.cos(freqs)
    sin = jnp.sin(freqs)

    tt = _tile(T, t_tile, 8)
    tq = _tile(T, q_tile, 8)
    tk = _tile(T, kv_tile, 8)
    tn = _tile(D, n_tile, _lcm(128, head_dim))       # whole heads, lane aligned
    hpt = tn // head_dim
    vmem = _vmem_limit_bytes()

    x_in = x.astype(compute_dtype)

    # ---- kernel 1: streamed QKV projection + RoPE ---------------------------
    q, k, v = pl.pallas_call(
        functools.partial(qkv_rope_kernel, heads_per_tile=hpt, head_dim=head_dim,
                          rope_dim=rope_dim, compute_dtype=compute_dtype),
        out_shape=(jax.ShapeDtypeStruct((B, T, D), compute_dtype),) * 3,
        grid=(B, D // tn, T // tt),                  # weights resident across tt
        in_specs=[
            pl.BlockSpec((None, tt, D), lambda b, n, ti: (b, ti, 0)),          # x
            pl.BlockSpec((D, tn), lambda b, n, ti: (0, n),
                         pipeline_mode=pl.Buffered(1)),                        # Wq
            pl.BlockSpec((D, tn), lambda b, n, ti: (0, n),
                         pipeline_mode=pl.Buffered(1)),                        # Wk
            pl.BlockSpec((D, tn), lambda b, n, ti: (0, n),
                         pipeline_mode=pl.Buffered(1)),                        # Wv
            pl.BlockSpec((1, tn), lambda b, n, ti: (0, n),
                         pipeline_mode=pl.Buffered(1)),                        # bq
            pl.BlockSpec((1, tn), lambda b, n, ti: (0, n),
                         pipeline_mode=pl.Buffered(1)),                        # bk
            pl.BlockSpec((1, tn), lambda b, n, ti: (0, n),
                         pipeline_mode=pl.Buffered(1)),                        # bv
            pl.BlockSpec((tt, half), lambda b, n, ti: (ti, 0)),                # cos
            pl.BlockSpec((tt, half), lambda b, n, ti: (ti, 0)),                # sin
        ],
        out_specs=[pl.BlockSpec((None, tt, tn), lambda b, n, ti: (b, ti, n))] * 3,
        compiler_params=pltpu.CompilerParams(
            dimension_semantics=("parallel", "parallel", "parallel"),
            vmem_limit_bytes=vmem),
    )(x_in, wq_t, wk_t, wv_t, bq, bk, bv, cos, sin)

    # ---- kernel 2: flash attention + fused output projection ----------------
    # Causal clamp: fully-above-diagonal kv tiles resolve to an already-fetched
    # block, so their HBM DMA is skipped by the pipeline.
    def kv_map(b, qi, ki):
        return (b, jnp.minimum(ki, (qi * tq + tq - 1) // tk), 0)

    # TODO(synk): for very large D, split the output projection into its own
    # column-tiled matmul so Wp need not be resident here.
    out = pl.pallas_call(
        functools.partial(flash_attn_kernel, num_heads=num_heads, head_dim=head_dim,
                          q_tile=tq, kv_tile=tk, compute_dtype=compute_dtype),
        out_shape=jax.ShapeDtypeStruct((B, T, D), x.dtype),
        grid=(B, T // tq, T // tk),
        in_specs=[
            pl.BlockSpec((None, tq, D), lambda b, qi, ki: (b, qi, 0)),          # q
            pl.BlockSpec((None, tk, D), kv_map),                                # k
            pl.BlockSpec((None, tk, D), kv_map),                                # v
            pl.BlockSpec((D, D), lambda b, qi, ki: (0, 0),
                         pipeline_mode=pl.Buffered(1)),                         # Wp
            pl.BlockSpec((1, D), lambda b, qi, ki: (0, 0),
                         pipeline_mode=pl.Buffered(1)),                         # bp
        ],
        out_specs=pl.BlockSpec((None, tq, D), lambda b, qi, ki: (b, qi, 0)),
        scratch_shapes=[
            pltpu.VMEM((tq, num_heads), jnp.float32),   # running max m (heads on lanes)
            pltpu.VMEM((tq, num_heads), jnp.float32),   # running sum l
            pltpu.VMEM((tq, D), jnp.float32),           # output accumulator
        ],
        compiler_params=pltpu.CompilerParams(
            dimension_semantics=("parallel", "parallel", "arbitrary"),
            vmem_limit_bytes=vmem),
    )(q, k, v, wp_t, bp)
    return out


# --------------------------------------------------------------------------- #
# Plain-JAX reference (faithful transcription of the PyTorch forward)
# --------------------------------------------------------------------------- #
def reference(x, params, num_heads, rope_frac, rotary_base):
    B, T, D = x.shape
    hd = D // num_heads
    rope_dim = int(hd * rope_frac)

    q = x @ params["wq"].T + params["bq"]
    k = x @ params["wk"].T + params["bk"]
    v = x @ params["wv"].T + params["bv"]
    q = q.reshape(B, T, num_heads, hd).transpose(0, 2, 1, 3)
    k = k.reshape(B, T, num_heads, hd).transpose(0, 2, 1, 3)
    v = v.reshape(B, T, num_heads, hd).transpose(0, 2, 1, 3)

    inv_freq = 1.0 / (rotary_base ** (jnp.arange(0, rope_dim, 2, dtype=jnp.float32) / rope_dim))
    t = jnp.arange(T, dtype=jnp.float32)
    freqs = t[:, None] * inv_freq[None, :]
    cos = jnp.cos(freqs)[None, :, :]
    sin = jnp.sin(freqs)[None, :, :]

    def rope(z):
        ze = z[..., ::2]
        zo = z[..., 1::2]
        re = ze * cos - zo * sin
        ro = ze * sin + zo * cos
        out = jnp.zeros_like(z)
        out = out.at[..., ::2].set(re)
        out = out.at[..., 1::2].set(ro)
        return out

    q = jnp.concatenate([rope(q[..., :rope_dim]), q[..., rope_dim:]], axis=-1)
    k = jnp.concatenate([rope(k[..., :rope_dim]), k[..., rope_dim:]], axis=-1)

    scores = (q @ jnp.swapaxes(k, -2, -1)) / math.sqrt(hd)
    mask = jnp.tril(jnp.ones((T, T)))
    scores = jnp.where(mask == 0, -jnp.inf, scores)
    attn = jax.nn.softmax(scores, axis=-1)
    out = attn @ v
    out = out.transpose(0, 2, 1, 3).reshape(B, T, D)
    return out @ params["wp"].T + params["bp"]


if __name__ == "__main__":
    jax.config.update("jax_default_matmul_precision", "highest")

    B, T, D = 2, 32, 256
    num_heads = 4            # head_dim = 64
    rope_frac = 0.5          # rope_dim = 32 channels/head (16 interleaved pairs)
    rotary_base = 10000.0

    key = jax.random.PRNGKey(0)
    keys = jax.random.split(key, 9)
    params = {
        "wq": 0.05 * jax.random.normal(keys[0], (D, D), jnp.float32),
        "bq": 0.05 * jax.random.normal(keys[1], (D,), jnp.float32),
        "wk": 0.05 * jax.random.normal(keys[2], (D, D), jnp.float32),
        "bk": 0.05 * jax.random.normal(keys[3], (D,), jnp.float32),
        "wv": 0.05 * jax.random.normal(keys[4], (D, D), jnp.float32),
        "bv": 0.05 * jax.random.normal(keys[5], (D,), jnp.float32),
        "wp": 0.05 * jax.random.normal(keys[6], (D, D), jnp.float32),
        "bp": 0.05 * jax.random.normal(keys[7], (D,), jnp.float32),
    }
    x = jax.random.normal(keys[8], (B, T, D), jnp.float32)

    ref = reference(x, params, num_heads, rope_frac, rotary_base)

    # Small tiles on purpose so every multi-tile path (weight-column streaming,
    # causal DMA clamp, unmasked fast path, masked diagonal tile) is exercised.
    out_f32 = jax.block_until_ready(
        grouped_query_attention(x, params, num_heads, rope_frac, rotary_base,
                                compute_dtype=jnp.float32,
                                t_tile=16, q_tile=16, kv_tile=16, n_tile=128))
    assert out_f32.shape == (B, T, D)
    err32 = jnp.max(jnp.abs(out_f32 - ref))
    assert jnp.allclose(out_f32, ref, atol=5e-3, rtol=5e-3), \
        f"f32 path: max abs diff = {err32}"

    # Fast path: bf16 MXU operands with f32 accumulation (looser tolerance).
    out_bf16 = jax.block_until_ready(
        grouped_query_attention(x, params, num_heads, rope_frac, rotary_base,
                                compute_dtype=jnp.bfloat16,
                                t_tile=16, q_tile=16, kv_tile=16, n_tile=128))
    assert out_bf16.shape == (B, T, D)
    err16 = jnp.max(jnp.abs(out_bf16 - ref))
    assert jnp.allclose(out_bf16, ref, atol=5e-2, rtol=5e-2), \
        f"bf16 path: max abs diff = {err16}"

    print("KERNEL_OK")
</pallas_src>

<mosaic_0001>
module attributes {stable_mosaic.version = 11 : i64} {
  func.func @qkv_rope_kernel(%arg0: i32, %arg1: i32, %arg2: i32, %arg3: memref<1x16x256xf32, #tpu.memory_space<vmem>>, %arg4: memref<256x128xf32, #tpu.memory_space<vmem>>, %arg5: memref<256x128xf32, #tpu.memory_space<vmem>>, %arg6: memref<256x128xf32, #tpu.memory_space<vmem>>, %arg7: memref<1x128xf32, #tpu.memory_space<vmem>>, %arg8: memref<1x128xf32, #tpu.memory_space<vmem>>, %arg9: memref<1x128xf32, #tpu.memory_space<vmem>>, %arg10: memref<16x16xf32, #tpu.memory_space<vmem>>, %arg11: memref<16x16xf32, #tpu.memory_space<vmem>>, %arg12: memref<1x16x128xf32, #tpu.memory_space<vmem>>, %arg13: memref<1x16x128xf32, #tpu.memory_space<vmem>>, %arg14: memref<1x16x128xf32, #tpu.memory_space<vmem>>) attributes {dimension_semantics = [#tpu.dimension_semantics<parallel>, #tpu.dimension_semantics<parallel>, #tpu.dimension_semantics<parallel>], iteration_bounds = array<i64: 2, 2, 2>, scalar_prefetch = 0 : i64, scratch_operands = 0 : i64, tpu.core_type = #tpu.core_type<tc>, window_params = [{transform_indices = @transform_0, window_bounds = array<i64: 1, 16, 256>}, {pipeline_mode = #tpu.pipeline_mode<synchronous>, transform_indices = @transform_1, window_bounds = array<i64: 256, 128>}, {pipeline_mode = #tpu.pipeline_mode<synchronous>, transform_indices = @transform_2, window_bounds = array<i64: 256, 128>}, {pipeline_mode = #tpu.pipeline_mode<synchronous>, transform_indices = @transform_3, window_bounds = array<i64: 256, 128>}, {pipeline_mode = #tpu.pipeline_mode<synchronous>, transform_indices = @transform_4, window_bounds = array<i64: 1, 128>}, {pipeline_mode = #tpu.pipeline_mode<synchronous>, transform_indices = @transform_5, window_bounds = array<i64: 1, 128>}, {pipeline_mode = #tpu.pipeline_mode<synchronous>, transform_indices = @transform_6, window_bounds = array<i64: 1, 128>}, {transform_indices = @transform_7, window_bounds = array<i64: 16, 16>}, {transform_indices = @transform_8, window_bounds = array<i64: 16, 16>}, {transform_indices = @transform_9, window_bounds = array<i64: 1, 16, 128>}, {transform_indices = @transform_10, window_bounds = array<i64: 1, 16, 128>}, {transform_indices = @transform_11, window_bounds = array<i64: 1, 16, 128>}]} {
    %c0 = arith.constant 0 : index
    %c0_0 = arith.constant 0 : index
    %c0_1 = arith.constant 0 : index
    %0 = vector.load %arg3[%c0, %c0_0, %c0_1] : memref<1x16x256xf32, #tpu.memory_space<vmem>>, vector<1x16x256xf32>
    %1 = vector.shape_cast %0 : vector<1x16x256xf32> to vector<16x256xf32>
    %c0_2 = arith.constant 0 : index
    %c0_3 = arith.constant 0 : index
    %2 = vector.load %arg4[%c0_2, %c0_3] : memref<256x128xf32, #tpu.memory_space<vmem>>, vector<256x128xf32>
    %cst = arith.constant dense<0.000000e+00> : vector<16x128xf32>
    %3 = tpu.matmul %1, %2, %cst {dimension_numbers = #tpu.dot_dimension_numbers<[1], [0], [0], [1], [0, 0, 1, 1], [], []>, precision = #tpu.contract_precision<fp32>} : vector<16x256xf32>, vector<256x128xf32>, vector<16x128xf32> -> vector<16x128xf32>
    %c0_4 = arith.constant 0 : index
    %c0_5 = arith.constant 0 : index
    %4 = vector.load %arg7[%c0_4, %c0_5] : memref<1x128xf32, #tpu.memory_space<vmem>>, vector<1x128xf32>
    %5 = vector.broadcast %4 : vector<1x128xf32> to vector<16x128xf32>
    %6 = arith.addf %3, %5 : vector<16x128xf32>
    %c0_6 = arith.constant 0 : index
    %c0_7 = arith.constant 0 : index
    %7 = vector.load %arg5[%c0_6, %c0_7] : memref<256x128xf32, #tpu.memory_space<vmem>>, vector<256x128xf32>
    %cst_8 = arith.constant dense<0.000000e+00> : vector<16x128xf32>
    %8 = tpu.matmul %1, %7, %cst_8 {dimension_numbers = #tpu.dot_dimension_numbers<[1], [0], [0], [1], [0, 0, 1, 1], [], []>, precision = #tpu.contract_precision<fp32>} : vector<16x256xf32>, vector<256x128xf32>, vector<16x128xf32> -> vector<16x128xf32>
    %c0_9 = arith.constant 0 : index
    %c0_10 = arith.constant 0 : index
    %9 = vector.load %arg8[%c0_9, %c0_10] : memref<1x128xf32, #tpu.memory_space<vmem>>, vector<1x128xf32>
    %10 = vector.broadcast %9 : vector<1x128xf32> to vector<16x128xf32>
    %11 = arith.addf %8, %10 : vector<16x128xf32>
    %c0_11 = arith.constant 0 : index
    %c0_12 = arith.constant 0 : index
    %12 = vector.load %arg6[%c0_11, %c0_12] : memref<256x128xf32, #tpu.memory_space<vmem>>, vector<256x128xf32>
    %cst_13 = arith.constant dense<0.000000e+00> : vector<16x128xf32>
    %13 = tpu.matmul %1, %12, %cst_13 {dimension_numbers = #tpu.dot_dimension_numbers<[1], [0], [0], [1], [0, 0, 1, 1], [], []>, precision = #tpu.contract_precision<fp32>} : vector<16x256xf32>, vector<256x128xf32>, vector<16x128xf32> -> vector<16x128xf32>
    %c0_14 = arith.constant 0 : index
    %c0_15 = arith.constant 0 : index
    %14 = vector.load %arg9[%c0_14, %c0_15] : memref<1x128xf32, #tpu.memory_space<vmem>>, vector<1x128xf32>
    %15 = vector.broadcast %14 : vector<1x128xf32> to vector<16x128xf32>
    %16 = arith.addf %13, %15 : vector<16x128xf32>
    %c0_16 = arith.constant 0 : index
    %c0_17 = arith.constant 0 : index
    %c0_18 = arith.constant 0 : index
    %17 = vector.load %arg14[%c0_16, %c0_17, %c0_18] : memref<1x16x128xf32, #tpu.memory_space<vmem>>, vector<1x16x128xf32>
    %18 = vector.shape_cast %17 : vector<1x16x128xf32> to vector<16x128xf32>
    %19 = vector.shape_cast %16 : vector<16x128xf32> to vector<1x16x128xf32>
    tpu.vector_store %arg14[%c0_16, %c0_17, %c0_18], %19 {strides = array<i32>} : memref<1x16x128xf32, #tpu.memory_space<vmem>>, vector<1x16x128xf32>,
    %c0_19 = arith.constant 0 : index
    %c0_20 = arith.constant 0 : index
    %20 = vector.load %arg10[%c0_19, %c0_20] : memref<16x16xf32, #tpu.memory_space<vmem>>, vector<16x16xf32>
    %c0_21 = arith.constant 0 : index
    %c0_22 = arith.constant 0 : index
    %21 = vector.load %arg11[%c0_21, %c0_22] : memref<16x16xf32, #tpu.memory_space<vmem>>, vector<16x16xf32>
    %22 = vector.extract_strided_slice %6 {offsets = [0, 0], sizes = [16, 16], strides = [1, 1]} : vector<16x128xf32> to vector<16x16xf32>
    %23 = vector.extract_strided_slice %6 {offsets = [0, 16], sizes = [16, 16], strides = [1, 1]} : vector<16x128xf32> to vector<16x16xf32>
    %24 = arith.mulf %22, %20 : vector<16x16xf32>
    %25 = arith.mulf %23, %21 : vector<16x16xf32>
    %26 = arith.subf %24, %25 : vector<16x16xf32>
    %27 = arith.mulf %22, %21 : vector<16x16xf32>
    %28 = arith.mulf %23, %20 : vector<16x16xf32>
    %29 = arith.addf %27, %28 : vector<16x16xf32>
    %30 = vector.extract_strided_slice %6 {offsets = [0, 32], sizes = [16, 32], strides = [1, 1]} : vector<16x128xf32> to vector<16x32xf32>
    %31 = vector.extract_strided_slice %6 {offsets = [0, 64], sizes = [16, 16], strides = [1, 1]} : vector<16x128xf32> to vector<16x16xf32>
    %32 = vector.extract_strided_slice %6 {offsets = [0, 80], sizes = [16, 16], strides = [1, 1]} : vector<16x128xf32> to vector<16x16xf32>
    %33 = arith.mulf %31, %20 : vector<16x16xf32>
    %34 = arith.mulf %32, %21 : vector<16x16xf32>
    %35 = arith.subf %33, %34 : vector<16x16xf32>
    %36 = arith.mulf %31, %21 : vector<16x16xf32>
    %37 = arith.mulf %32, %20 : vector<16x16xf32>
    %38 = arith.addf %36, %37 : vector<16x16xf32>
    %39 = vector.extract_strided_slice %6 {offsets = [0, 96], sizes = [16, 32], strides = [1, 1]} : vector<16x128xf32> to vector<16x32xf32>
    %40 = tpu.concatenate %26, %29, %30, %35, %38, %39 in 1 : vector<16x16xf32>, vector<16x16xf32>, vector<16x32xf32>, vector<16x16xf32>, vector<16x16xf32>, vector<16x32xf32> -> vector<16x128xf32>
    %c0_23 = arith.constant 0 : index
    %c0_24 = arith.constant 0 : index
    %c0_25 = arith.constant 0 : index
    %41 = vector.load %arg12[%c0_23, %c0_24, %c0_25] : memref<1x16x128xf32, #tpu.memory_space<vmem>>, vector<1x16x128xf32>
    %42 = vector.shape_cast %41 : vector<1x16x128xf32> to vector<16x128xf32>
    %43 = vector.shape_cast %40 : vector<16x128xf32> to vector<1x16x128xf32>
    tpu.vector_store %arg12[%c0_23, %c0_24, %c0_25], %43 {strides = array<i32>} : memref<1x16x128xf32, #tpu.memory_space<vmem>>, vector<1x16x128xf32>,
    %44 = vector.extract_strided_slice %11 {offsets = [0, 0], sizes = [16, 16], strides = [1, 1]} : vector<16x128xf32> to vector<16x16xf32>
    %45 = vector.extract_strided_slice %11 {offsets = [0, 16], sizes = [16, 16], strides = [1, 1]} : vector<16x128xf32> to vector<16x16xf32>
    %46 = arith.mulf %44, %20 : vector<16x16xf32>
    %47 = arith.mulf %45, %21 : vector<16x16xf32>
    %48 = arith.subf %46, %47 : vector<16x16xf32>
    %49 = arith.mulf %44, %21 : vector<16x16xf32>
    %50 = arith.mulf %45, %20 : vector<16x16xf32>
    %51 = arith.addf %49, %50 : vector<16x16xf32>
    %52 = vector.extract_strided_slice %11 {offsets = [0, 32], sizes = [16, 32], strides = [1, 1]} : vector<16x128xf32> to vector<16x32xf32>
    %53 = vector.extract_strided_slice %11 {offsets = [0, 64], sizes = [16, 16], strides = [1, 1]} : vector<16x128xf32> to vector<16x16xf32>
    %54 = vector.extract_strided_slice %11 {offsets = [0, 80], sizes = [16, 16], strides = [1, 1]} : vector<16x128xf32> to vector<16x16xf32>
    %55 = arith.mulf %53, %20 : vector<16x16xf32>
    %56 = arith.mulf %54, %21 : vector<16x16xf32>
    %57 = arith.subf %55, %56 : vector<16x16xf32>
    %58 = arith.mulf %53, %21 : vector<16x16xf32>
    %59 = arith.mulf %54, %20 : vector<16x16xf32>
    %60 = arith.addf %58, %59 : vector<16x16xf32>
    %61 = vector.extract_strided_slice %11 {offsets = [0, 96], sizes = [16, 32], strides = [1, 1]} : vector<16x128xf32> to vector<16x32xf32>
    %62 = tpu.concatenate %48, %51, %52, %57, %60, %61 in 1 : vector<16x16xf32>, vector<16x16xf32>, vector<16x32xf32>, vector<16x16xf32>, vector<16x16xf32>, vector<16x32xf32> -> vector<16x128xf32>
    %c0_26 = arith.constant 0 : index
    %c0_27 = arith.constant 0 : index
    %c0_28 = arith.constant 0 : index
    %63 = vector.load %arg13[%c0_26, %c0_27, %c0_28] : memref<1x16x128xf32, #tpu.memory_space<vmem>>, vector<1x16x128xf32>
    %64 = vector.shape_cast %63 : vector<1x16x128xf32> to vector<16x128xf32>
    %65 = vector.shape_cast %62 : vector<16x128xf32> to vector<1x16x128xf32>
    tpu.vector_store %arg13[%c0_26, %c0_27, %c0_28], %65 {strides = array<i32>} : memref<1x16x128xf32, #tpu.memory_space<vmem>>, vector<1x16x128xf32>,
    return
  }
  func.func @transform_0(%arg0: i32, %arg1: i32, %arg2: i32) -> (i32, i32, i32) {
    %c0_i32 = arith.constant 0 : i32
    %c0_i32_0 = arith.constant 0 : i32
    return %arg0, %arg2, %c0_i32 : i32, i32, i32
  }
  func.func @transform_1(%arg0: i32, %arg1: i32, %arg2: i32) -> (i32, i32) {
    %c0_i32 = arith.constant 0 : i32
    %c0_i32_0 = arith.constant 0 : i32
    return %c0_i32, %arg1 : i32, i32
  }
  func.func @transform_2(%arg0: i32, %arg1: i32, %arg2: i32) -> (i32, i32) {
    %c0_i32 = arith.constant 0 : i32
    %c0_i32_0 = arith.constant 0 : i32
    return %c0_i32, %arg1 : i32, i32
  }
  func.func @transform_3(%arg0: i32, %arg1: i32, %arg2: i32) -> (i32, i32) {
    %c0_i32 = arith.constant 0 : i32
    %c0_i32_0 = arith.constant 0 : i32
    return %c0_i32, %arg1 : i32, i32
  }
  func.func @transform_4(%arg0: i32, %arg1: i32, %arg2: i32) -> (i32, i32) {
    %c0_i32 = arith.constant 0 : i32
    %c0_i32_0 = arith.constant 0 : i32
    return %c0_i32, %arg1 : i32, i32
  }
  func.func @transform_5(%arg0: i32, %arg1: i32, %arg2: i32) -> (i32, i32) {
    %c0_i32 = arith.constant 0 : i32
    %c0_i32_0 = arith.constant 0 : i32
    return %c0_i32, %arg1 : i32, i32
  }
  func.func @transform_6(%arg0: i32, %arg1: i32, %arg2: i32) -> (i32, i32) {
    %c0_i32 = arith.constant 0 : i32
    %c0_i32_0 = arith.constant 0 : i32
    return %c0_i32, %arg1 : i32, i32
  }
  func.func @transform_7(%arg0: i32, %arg1: i32, %arg2: i32) -> (i32, i32) {
    %c0_i32 = arith.constant 0 : i32
    %c0_i32_0 = arith.constant 0 : i32
    return %arg2, %c0_i32 : i32, i32
  }
  func.func @transform_8(%arg0: i32, %arg1: i32, %arg2: i32) -> (i32, i32) {
    %c0_i32 = arith.constant 0 : i32
    %c0_i32_0 = arith.constant 0 : i32
    return %arg2, %c0_i32 : i32, i32
  }
  func.func @transform_9(%arg0: i32, %arg1: i32, %arg2: i32) -> (i32, i32, i32) {
    %c0_i32 = arith.constant 0 : i32
    return %arg0, %arg2, %arg1 : i32, i32, i32
  }
  func.func @transform_10(%arg0: i32, %arg1: i32, %arg2: i32) -> (i32, i32, i32) {
    %c0_i32 = arith.constant 0 : i32
    return %arg0, %arg2, %arg1 : i32, i32, i32
  }
  func.func @transform_11(%arg0: i32, %arg1: i32, %arg2: i32) -> (i32, i32, i32) {
    %c0_i32 = arith.constant 0 : i32
    return %arg0, %arg2, %arg1 : i32, i32, i32
  }
}

</mosaic_0001>

<llo_original>
// kernel: tpu_custom_call.1
$region0: #{tpu_custom_call.1}
  #allocation0 [shape = 'u32[]', space=smem, size = 0x4, offset = 0x4, fixed_abs, tag = 'smem constant byte address 0x4 - core index']
  #allocation1 [shape = 'u32[144,128]{1,0:T(1,128)}', space=vmem, size = 0x12000, scoped, tag = 'internal scratch']
  %s0 = inlined_call_operand.hbm [shape: f32[2,32,256], index: 0, kind: input, shape index: {}]
  %s1 = inlined_call_operand.hbm [shape: f32[256,256], index: 1, kind: input, shape index: {}]
  %s2 = inlined_call_operand.hbm [shape: f32[256,256], index: 2, kind: input, shape index: {}]
  %s3 = inlined_call_operand.hbm [shape: f32[256,256], index: 3, kind: input, shape index: {}]
  %s4 = inlined_call_operand.hbm [shape: f32[1,256], index: 4, kind: input, shape index: {}]
  %s5 = inlined_call_operand.hbm [shape: f32[1,256], index: 5, kind: input, shape index: {}]
  %s6 = inlined_call_operand.hbm [shape: f32[1,256], index: 6, kind: input, shape index: {}]
  %s7 = inlined_call_operand.hbm [shape: f32[32,16], index: 7, kind: input, shape index: {}]
  %s8 = inlined_call_operand.hbm [shape: f32[32,16], index: 8, kind: input, shape index: {}]
  %s9 = inlined_call_operand.hbm [shape: f32[2,32,256], index: 9, kind: output, shape index: {0}]
  %s10 = inlined_call_operand.hbm [shape: f32[2,32,256], index: 10, kind: output, shape index: {1}]
  %s11 = inlined_call_operand.hbm [shape: f32[2,32,256], index: 11, kind: output, shape index: {2}]
  %12 = xla_tuple %s9, %s10, %s11
  %s13 = sld [smem:[#allocation0]]
  $region121: #{tpu_custom_call.1} parent=0
    _
  %s15 = ssub.s32 1, %s13
  %s16 = scalar_select 0, %s15, %s13
  $region1: #{tpu_custom_call.1} parent=0
    #allocation2 [shape = 'u8[32768]{0}', space=vmem, size = 0x8000, scoped, tag = 'input window, operand 0']
    #allocation3 [shape = 's32[2]{0}', space=sflag, size = 0x8, scoped, tag = 'scoped memory for tpu_custom_call.1']
    #allocation4 [shape = 's32[2]{0}', space=sflag, size = 0x8, scoped, tag = 'scoped memory for tpu_custom_call.1']
    #allocation5 [shape = 'u8[131072]{0}', space=vmem, size = 0x20000, scoped, tag = 'input window, operand 1, single buffered']
    #allocation6 [shape = 's32[1]{0}', space=sflag, size = 0x4, scoped, tag = 'scoped memory for tpu_custom_call.1']
    #allocation7 [shape = 'u8[131072]{0}', space=vmem, size = 0x20000, scoped, tag = 'input window, operand 2, single buffered']
    #allocation8 [shape = 'u8[131072]{0}', space=vmem, size = 0x20000, scoped, tag = 'input window, operand 3, single buffered']
    #allocation9 [shape = 's32[1]{0}', space=sflag, size = 0x4, scoped, tag = 'scoped memory for tpu_custom_call.1']
    #allocation10 [shape = 'u8[512]{0}', space=vmem, size = 0x400, scoped, tag = 'input window, operand 4, single buffered']
    #allocation11 [shape = 'u8[512]{0}', space=vmem, size = 0x400, scoped, tag = 'input window, operand 5, single buffered']
    #allocation12 [shape = 's32[1]{0}', space=sflag, size = 0x4, scoped, tag = 'scoped memory for tpu_custom_call.1']
    #allocation13 [shape = 'u8[512]{0}', space=vmem, size = 0x400, scoped, tag = 'input window, operand 6, single buffered']
    #allocation14 [shape = 'u8[16384]{0}', space=vmem, size = 0x4000, scoped, tag = 'input window, operand 7']
    #allocation15 [shape = 's32[2]{0}', space=sflag, size = 0x8, scoped, tag = 'scoped memory for tpu_custom_call.1']
    #allocation16 [shape = 'u8[16384]{0}', space=vmem, size = 0x4000, scoped, tag = 'input window, operand 8']
    #allocation17 [shape = 'u8[16384]{0}', space=vmem, size = 0x4000, scoped, tag = 'output window, operand 0']
    #allocation18 [shape = 'u8[16384]{0}', space=vmem, size = 0x4000, scoped, tag = 'output window, operand 1']
    #allocation19 [shape = 's32[2]{0}', space=sflag, size = 0x8, scoped, tag = 'scoped memory for tpu_custom_call.1']
    #allocation20 [shape = 'u8[16384]{0}', space=vmem, size = 0x4000, scoped, tag = 'output window, operand 2']
    %17 = vsyncpa [#allocation3], 0
    %s18 = scalar_lea.sflag [#allocation3], 1
    %19 = vsyncpa %s18, 0
    %20 = vsyncpa [#allocation6], 0
    %21 = vsyncpa [#allocation9], 0
    %22 = vsyncpa [#allocation12], 0
    %23 = vsyncpa [#allocation15], 0
    %s24 = scalar_lea.sflag [#allocation15], 1
    %25 = vsyncpa %s24, 0
    %26 = vsyncpa [#allocation4], 0
    %s27 = scalar_lea.sflag [#allocation4], 1
    %28 = vsyncpa %s27, 0
    %29 = vsyncpa [#allocation19], 0
    %s30 = scalar_lea.sflag [#allocation19], 1
    %31 = vsyncpa %s30, 0
    loop: start=0, step=1, limit=10
    $region2: #{tpu_custom_call.1} parent=1 // loop_pre_header
      _
    $region3: #{tpu_custom_call.1} parent=1 // loop_header
      %s33 = sphi 0, %s37
      %p34 = scmp.ge.s32.totalorder %s33, 10
      %s40 = sphi 0, %s59
      %s41 = sphi 0, %s55
      %s42 = sphi 0, %s51
      %s43 = sphi 0, %s40
      %s44 = sphi 0, %s41
      %s45 = sphi 0, %s42
      %s46 = sphi 0, %s43
      %s47 = sphi 0, %s44
      %s48 = sphi 0, %s45
      %s64 = sphi 0, %s66
      %s67 = sphi 0, %s64
      %s68 = sphi 0, %s67
      %s84 = sphi 0, %s68
      %s90 = sphi 0, %s92
      %s93 = sphi 0, %s90
      %s94 = sphi 0, %s93
      %s110 = sphi 0, %s94
      %s116 = sphi 0, %s118
      %s119 = sphi 0, %s116
      %s120 = sphi 0, %s119
      %s136 = sphi 0, %s120
      %s142 = sphi 0, %s144
      %s145 = sphi 0, %s142
      %s146 = sphi 0, %s145
      %s162 = sphi 0, %s146
      %s168 = sphi 0, %s170
      %s171 = sphi 0, %s168
      %s172 = sphi 0, %s171
      %s188 = sphi 0, %s172
      %s194 = sphi 0, %s196
      %s197 = sphi 0, %s194
      %s198 = sphi 0, %s197
      %s214 = sphi 0, %s198
      %s220 = sphi 0, %s222
      %s223 = sphi 0, %s220
      %s224 = sphi 0, %s223
      %s240 = sphi 0, %s224
      %s246 = sphi 0, %s248
      %s249 = sphi 0, %s246
      %s250 = sphi 0, %s249
      %s266 = sphi 0, %s250
      %s272 = sphi 0, %s274
      %s275 = sphi 0, %s272
      %s276 = sphi 0, %s275
      %s292 = sphi 0, %s276
      %s302 = sphi 0, %s304
      %s305 = sphi 0, %s302
      %s306 = sphi 0, %s305
      %s322 = sphi 0, %s306
      %s332 = sphi 0, %s334
      %s335 = sphi 0, %s332
      %s336 = sphi 0, %s335
      %s352 = sphi 0, %s336
      %s362 = sphi 0, %s364
      %s365 = sphi 0, %s362
      %s366 = sphi 0, %s365
      %s382 = sphi 0, %s366
    $region4: #{tpu_custom_call.1} parent=1 // loop_header_branch
      %36 = sbr.rel (%p34) target = $region8
    $region5: #{tpu_custom_call.1} parent=1 // loop_body
      %s38 = ssub.s32 %s33, 1
      %s39 = ssub.s32 %s33, 2
      %s49 = sadd.s32 1, %s42
      %p50 = scmp.ge.s32.totalorder %s49, 2
      %s51 = scalar_select %p50, 0, %s49
      %s52 = sadd.s32 1, %s41
      %s53 = scalar_select %p50, %s52, %s41
      %p54 = scmp.ge.s32.totalorder %s53, 2
      %s55 = scalar_select %p54, 0, %s53
      %s56 = sadd.s32 1, %s40
      %s57 = scalar_select %p54, %s56, %s40
      %p58 = scmp.ge.s32.totalorder %s57, 2
      %s59 = scalar_select %p58, 0, %s57
      %s60 = ssub.s32 %s40, %s59
      %s61 = ssub.s32 %s42, %s51
      %s62 = sor.u32 %s60, %s61
      %p63 = scmp.eq.s32.totalorder %s62, 0
      %s65 = sadd.s32 %s64, 1
      %s66 = scalar_select %p63, %s64, %s65
      %p69 = pneg %p63
      %p70 = scmp.eq.s32.totalorder %s33, 7
      %p71 = por %p69, %p70
      %p72 = scmp.ne.s32.totalorder %s64, %s67
      %p73 = scmp.eq.s32.totalorder %s33, 0
      %p74 = por %p72, %p73
      %p75 = scmp.ne.s32.totalorder %s64, %s67
      %p76 = scmp.eq.s32.totalorder %s38, 7
      %p77 = por %p75, %p76
      %p78 = scmp.ne.s32.totalorder %s67, %s68
      %p79 = scmp.eq.s32.totalorder %s38, 0
      %p80 = por %p78, %p79
      %p81 = scmp.ne.s32.totalorder %s67, %s68
      %p82 = scmp.eq.s32.totalorder %s39, 7
      %p83 = por %p81, %p82
      %p85 = scmp.ne.s32.totalorder %s68, %s84
      %p86 = scmp.eq.s32.totalorder %s39, 0
      %p87 = por %p85, %p86
      %s88 = ssub.s32 %s41, %s55
      %p89 = scmp.eq.s32.totalorder %s88, 0
      %s91 = sadd.s32 %s90, 1
      %s92 = scalar_select %p89, %s90, %s91
      %p95 = pneg %p89
      %p96 = scmp.eq.s32.totalorder %s33, 7
      %p97 = por %p95, %p96
      %p98 = scmp.ne.s32.totalorder %s90, %s93
      %p99 = scmp.eq.s32.totalorder %s33, 0
      %p100 = por %p98, %p99
      %p101 = scmp.ne.s32.totalorder %s90, %s93
      %p102 = scmp.eq.s32.totalorder %s38, 7
      %p103 = por %p101, %p102
      %p104 = scmp.ne.s32.totalorder %s93, %s94
      %p105 = scmp.eq.s32.totalorder %s38, 0
      %p106 = por %p104, %p105
      %p107 = scmp.ne.s32.totalorder %s93, %s94
      %p108 = scmp.eq.s32.totalorder %s39, 7
      %p109 = por %p107, %p108
      %p111 = scmp.ne.s32.totalorder %s94, %s110
      %p112 = scmp.eq.s32.totalorder %s39, 0
      %p113 = por %p111, %p112
      %s114 = ssub.s32 %s41, %s55
      %p115 = scmp.eq.s32.totalorder %s114, 0
      %s117 = sadd.s32 %s116, 1
      %s118 = scalar_select %p115, %s116, %s117
      %p121 = pneg %p115
      %p122 = scmp.eq.s32.totalorder %s33, 7
      %p123 = por %p121, %p122
      %p124 = scmp.ne.s32.totalorder %s116, %s119
      %p125 = scmp.eq.s32.totalorder %s33, 0
      %p126 = por %p124, %p125
      %p127 = scmp.ne.s32.totalorder %s116, %s119
      %p128 = scmp.eq.s32.totalorder %s38, 7
      %p129 = por %p127, %p128
      %p130 = scmp.ne.s32.totalorder %s119, %s120
      %p131 = scmp.eq.s32.totalorder %s38, 0
      %p132 = por %p130, %p131
      %p133 = scmp.ne.s32.totalorder %s119, %s120
      %p134 = scmp.eq.s32.totalorder %s39, 7
      %p135 = por %p133, %p134
      %p137 = scmp.ne.s32.totalorder %s120, %s136
      %p138 = scmp.eq.s32.totalorder %s39, 0
      %p139 = por %p137, %p138
      %s140 = ssub.s32 %s41, %s55
      %p141 = scmp.eq.s32.totalorder %s140, 0
      %s143 = sadd.s32 %s142, 1
      %s144 = scalar_select %p141, %s142, %s143
      %p147 = pneg %p141
      %p148 = scmp.eq.s32.totalorder %s33, 7
      %p149 = por %p147, %p148
      %p150 = scmp.ne.s32.totalorder %s142, %s145
      %p151 = scmp.eq.s32.totalorder %s33, 0
      %p152 = por %p150, %p151
      %p153 = scmp.ne.s32.totalorder %s142, %s145
      %p154 = scmp.eq.s32.totalorder %s38, 7
      %p155 = por %p153, %p154
      %p156 = scmp.ne.s32.totalorder %s145, %s146
      %p157 = scmp.eq.s32.totalorder %s38, 0
      %p158 = por %p156, %p157
      %p159 = scmp.ne.s32.totalorder %s145, %s146
      %p160 = scmp.eq.s32.totalorder %s39, 7
      %p161 = por %p159, %p160
      %p163 = scmp.ne.s32.totalorder %s146, %s162
      %p164 = scmp.eq.s32.totalorder %s39, 0
      %p165 = por %p163, %p164
      %s166 = ssub.s32 %s41, %s55
      %p167 = scmp.eq.s32.totalorder %s166, 0
      %s169 = sadd.s32 %s168, 1
      %s170 = scalar_select %p167, %s168, %s169
      %p173 = pneg %p167
      %p174 = scmp.eq.s32.totalorder %s33, 7
      %p175 = por %p173, %p174
      %p176 = scmp.ne.s32.totalorder %s168, %s171
      %p177 = scmp.eq.s32.totalorder %s33, 0
      %p178 = por %p176, %p177
      %p179 = scmp.ne.s32.totalorder %s168, %s171
      %p180 = scmp.eq.s32.totalorder %s38, 7
      %p181 = por %p179, %p180
      %p182 = scmp.ne.s32.totalorder %s171, %s172
      %p183 = scmp.eq.s32.totalorder %s38, 0
      %p184 = por %p182, %p183
      %p185 = scmp.ne.s32.totalorder %s171, %s172
      %p186 = scmp.eq.s32.totalorder %s39, 7
      %p187 = por %p185, %p186
      %p189 = scmp.ne.s32.totalorder %s172, %s188
      %p190 = scmp.eq.s32.totalorder %s39, 0
      %p191 = por %p189, %p190
      %s192 = ssub.s32 %s41, %s55
      %p193 = scmp.eq.s32.totalorder %s192, 0
      %s195 = sadd.s32 %s194, 1
      %s196 = scalar_select %p193, %s194, %s195
      %p199 = pneg %p193
      %p200 = scmp.eq.s32.totalorder %s33, 7
      %p201 = por %p199, %p200
      %p202 = scmp.ne.s32.totalorder %s194, %s197
      %p203 = scmp.eq.s32.totalorder %s33, 0
      %p204 = por %p202, %p203
      %p205 = scmp.ne.s32.totalorder %s194, %s197
      %p206 = scmp.eq.s32.totalorder %s38, 7
      %p207 = por %p205, %p206
      %p208 = scmp.ne.s32.totalorder %s197, %s198
      %p209 = scmp.eq.s32.totalorder %s38, 0
      %p210 = por %p208, %p209
      %p211 = scmp.ne.s32.totalorder %s197, %s198
      %p212 = scmp.eq.s32.totalorder %s39, 7
      %p213 = por %p211, %p212
      %p215 = scmp.ne.s32.totalorder %s198, %s214
      %p216 = scmp.eq.s32.totalorder %s39, 0
      %p217 = por %p215, %p216
      %s218 = ssub.s32 %s41, %s55
      %p219 = scmp.eq.s32.totalorder %s218, 0
      %s221 = sadd.s32 %s220, 1
      %s222 = scalar_select %p219, %s220, %s221
      %p225 = pneg %p219
      %p226 = scmp.eq.s32.totalorder %s33, 7
      %p227 = por %p225, %p226
      %p228 = scmp.ne.s32.totalorder %s220, %s223
      %p229 = scmp.eq.s32.totalorder %s33, 0
      %p230 = por %p228, %p229
      %p231 = scmp.ne.s32.totalorder %s220, %s223
      %p232 = scmp.eq.s32.totalorder %s38, 7
      %p233 = por %p231, %p232
      %p234 = scmp.ne.s32.totalorder %s223, %s224
      %p235 = scmp.eq.s32.totalorder %s38, 0
      %p236 = por %p234, %p235
      %p237 = scmp.ne.s32.totalorder %s223, %s224
      %p238 = scmp.eq.s32.totalorder %s39, 7
      %p239 = por %p237, %p238
      %p241 = scmp.ne.s32.totalorder %s224, %s240
      %p242 = scmp.eq.s32.totalorder %s39, 0
      %p243 = por %p241, %p242
      %s244 = ssub.s32 %s42, %s51
      %p245 = scmp.eq.s32.totalorder %s244, 0
      %s247 = sadd.s32 %s246, 1
      %s248 = scalar_select %p245, %s246, %s247
      %p251 = pneg %p245
      %p252 = scmp.eq.s32.totalorder %s33, 7
      %p253 = por %p251, %p252
      %p254 = scmp.ne.s32.totalorder %s246, %s249
      %p255 = scmp.eq.s32.totalorder %s33, 0
      %p256 = por %p254, %p255
      %p257 = scmp.ne.s32.totalorder %s246, %s249
      %p258 = scmp.eq.s32.totalorder %s38, 7
      %p259 = por %p257, %p258
      %p260 = scmp.ne.s32.totalorder %s249, %s250
      %p261 = scmp.eq.s32.totalorder %s38, 0
      %p262 = por %p260, %p261
      %p263 = scmp.ne.s32.totalorder %s249, %s250
      %p264 = scmp.eq.s32.totalorder %s39, 7
      %p265 = por %p263, %p264
      %p267 = scmp.ne.s32.totalorder %s250, %s266
      %p268 = scmp.eq.s32.totalorder %s39, 0
      %p269 = por %p267, %p268
      %s270 = ssub.s32 %s42, %s51
      %p271 = scmp.eq.s32.totalorder %s270, 0
      %s273 = sadd.s32 %s272, 1
      %s274 = scalar_select %p271, %s272, %s273
      %p277 = pneg %p271
      %p278 = scmp.eq.s32.totalorder %s33, 7
      %p279 = por %p277, %p278
      %p280 = scmp.ne.s32.totalorder %s272, %s275
      %p281 = scmp.eq.s32.totalorder %s33, 0
      %p282 = por %p280, %p281
      %p283 = scmp.ne.s32.totalorder %s272, %s275
      %p284 = scmp.eq.s32.totalorder %s38, 7
      %p285 = por %p283, %p284
      %p286 = scmp.ne.s32.totalorder %s275, %s276
      %p287 = scmp.eq.s32.totalorder %s38, 0
      %p288 = por %p286, %p287
      %p289 = scmp.ne.s32.totalorder %s275, %s276
      %p290 = scmp.eq.s32.totalorder %s39, 7
      %p291 = por %p289, %p290
      %p293 = scmp.ne.s32.totalorder %s276, %s292
      %p294 = scmp.eq.s32.totalorder %s39, 0
      %p295 = por %p293, %p294
      %s296 = ssub.s32 %s40, %s59
      %s297 = ssub.s32 %s42, %s51
      %s298 = sor.u32 %s296, %s297
      %s299 = ssub.s32 %s41, %s55
      %s300 = sor.u32 %s298, %s299
      %p301 = scmp.eq.s32.totalorder %s300, 0
      %s303 = sadd.s32 %s302, 1
      %s304 = scalar_select %p301, %s302, %s303
      %p307 = pneg %p301
      %p308 = scmp.eq.s32.totalorder %s33, 7
      %p309 = por %p307, %p308
      %p310 = scmp.ne.s32.totalorder %s302, %s305
      %p311 = scmp.eq.s32.totalorder %s33, 0
      %p312 = por %p310, %p311
      %p313 = scmp.ne.s32.totalorder %s302, %s305
      %p314 = scmp.eq.s32.totalorder %s38, 7
      %p315 = por %p313, %p314
      %p316 = scmp.ne.s32.totalorder %s305, %s306
      %p317 = scmp.eq.s32.totalorder %s38, 0
      %p318 = por %p316, %p317
      %p319 = scmp.ne.s32.totalorder %s305, %s306
      %p320 = scmp.eq.s32.totalorder %s39, 7
      %p321 = por %p319, %p320
      %p323 = scmp.ne.s32.totalorder %s306, %s322
      %p324 = scmp.eq.s32.totalorder %s39, 0
      %p325 = por %p323, %p324
      %s326 = ssub.s32 %s40, %s59
      %s327 = ssub.s32 %s42, %s51
      %s328 = sor.u32 %s326, %s327
      %s329 = ssub.s32 %s41, %s55
      %s330 = sor.u32 %s328, %s329
      %p331 = scmp.eq.s32.totalorder %s330, 0
      %s333 = sadd.s32 %s332, 1
      %s334 = scalar_select %p331, %s332, %s333
      %p337 = pneg %p331
      %p338 = scmp.eq.s32.totalorder %s33, 7
      %p339 = por %p337, %p338
      %p340 = scmp.ne.s32.totalorder %s332, %s335
      %p341 = scmp.eq.s32.totalorder %s33, 0
      %p342 = por %p340, %p341
      %p343 = scmp.ne.s32.totalorder %s332, %s335
      %p344 = scmp.eq.s32.totalorder %s38, 7
      %p345 = por %p343, %p344
      %p346 = scmp.ne.s32.totalorder %s335, %s336
      %p347 = scmp.eq.s32.totalorder %s38, 0
      %p348 = por %p346, %p347
      %p349 = scmp.ne.s32.totalorder %s335, %s336
      %p350 = scmp.eq.s32.totalorder %s39, 7
      %p351 = por %p349, %p350
      %p353 = scmp.ne.s32.totalorder %s336, %s352
      %p354 = scmp.eq.s32.totalorder %s39, 0
      %p355 = por %p353, %p354
      %s356 = ssub.s32 %s40, %s59
      %s357 = ssub.s32 %s42, %s51
      %s358 = sor.u32 %s356, %s357
      %s359 = ssub.s32 %s41, %s55
      %s360 = sor.u32 %s358, %s359
      %p361 = scmp.eq.s32.totalorder %s360, 0
      %s363 = sadd.s32 %s362, 1
      %s364 = scalar_select %p361, %s362, %s363
      %p367 = pneg %p361
      %p368 = scmp.eq.s32.totalorder %s33, 7
      %p369 = por %p367, %p368
      %p370 = scmp.ne.s32.totalorder %s362, %s365
      %p371 = scmp.eq.s32.totalorder %s33, 0
      %p372 = por %p370, %p371
      %p373 = scmp.ne.s32.totalorder %s362, %s365
      %p374 = scmp.eq.s32.totalorder %s38, 7
      %p375 = por %p373, %p374
      %p376 = scmp.ne.s32.totalorder %s365, %s366
      %p377 = scmp.eq.s32.totalorder %s38, 0
      %p378 = por %p376, %p377
      %p379 = scmp.ne.s32.totalorder %s365, %s366
      %p380 = scmp.eq.s32.totalorder %s39, 7
      %p381 = por %p379, %p380
      %p383 = scmp.ne.s32.totalorder %s366, %s382
      %p384 = scmp.eq.s32.totalorder %s39, 0
      %p385 = por %p383, %p384
      %p386 = scmp.le.s32.totalorder 1, %s33
      %p387 = scmp.lt.s32.totalorder %s33, 9
      %p388 = pnand %p386, %p387
      %p389 = pneg %p388
      // Predicated region
      $region9: #{tpu_custom_call.1} parent=5 // pred_check
        _
      $region10: #{tpu_custom_call.1} parent=5 // pred_check_branch
        %391 = sbr.rel (%p388) target = $region12
      $region11: #{tpu_custom_call.1} parent=5 // pred_region
        %s392 = ssub.s32 %s33, 1
        // Predicated region
        $region13: #{tpu_custom_call.1} parent=11 // pred_check
          %p393 = pneg %p106
        $region14: #{tpu_custom_call.1} parent=11 // pred_check_branch
          %395 = sbr.rel (%p393) target = $region16
        $region15: #{tpu_custom_call.1} parent=11 // pred_region
          %s397 = ssub.s32 4096, 4096
          %398 = vsyncadd [#allocation6], %s397
          %s399 = smul.addr %s44, 128
          %s400 = scalar_lea.hbm %s1, %s399
          %s401 = sshll.u32 [#allocation5], 4
          %s402 = int_to_ptr.vmem [resolvable:$true] %s401
          %407 = dma.hbm_to_vmem [thread:$0]  %s400, 4096, %s402, [#allocation6], 256, 128, 8
        $region16: #{tpu_custom_call.1} parent=11 // pred_fallthru
          _
        // Predicated region
        $region17: #{tpu_custom_call.1} parent=11 // pred_check
          %p408 = pneg %p132
        $region18: #{tpu_custom_call.1} parent=11 // pred_check_branch
          %410 = sbr.rel (%p408) target = $region20
        $region19: #{tpu_custom_call.1} parent=11 // pred_region
          %s412 = ssub.s32 4096, 4096
          %413 = vsyncadd [#allocation6], %s412
          %s414 = smul.addr %s44, 128
          %s415 = scalar_lea.hbm %s2, %s414
          %s416 = sshll.u32 [#allocation7], 4
          %s417 = int_to_ptr.vmem [resolvable:$true] %s416
          %422 = dma.hbm_to_vmem [thread:$0]  %s415, 4096, %s417, [#allocation6], 256, 128, 8
        $region20: #{tpu_custom_call.1} parent=11 // pred_fallthru
          _
        // Predicated region
        $region21: #{tpu_custom_call.1} parent=11 // pred_check
          %p423 = pneg %p158
        $region22: #{tpu_custom_call.1} parent=11 // pred_check_branch
          %425 = sbr.rel (%p423) target = $region24
        $region23: #{tpu_custom_call.1} parent=11 // pred_region
          %s427 = ssub.s32 4096, 4096
          %428 = vsyncadd [#allocation9], %s427
          %s429 = smul.addr %s44, 128
          %s430 = scalar_lea.hbm %s3, %s429
          %s431 = sshll.u32 [#allocation8], 4
          %s432 = int_to_ptr.vmem [resolvable:$true] %s431
          %437 = dma.hbm_to_vmem [thread:$0]  %s430, 4096, %s432, [#allocation9], 256, 128, 8
        $region24: #{tpu_custom_call.1} parent=11 // pred_fallthru
          _
        // Predicated region
        $region25: #{tpu_custom_call.1} parent=11 // pred_check
          %p438 = pneg %p184
        $region26: #{tpu_custom_call.1} parent=11 // pred_check_branch
          %440 = sbr.rel (%p438) target = $region28
        $region27: #{tpu_custom_call.1} parent=11 // pred_region
          %s442 = ssub.s32 16, 16
          %443 = vsyncadd [#allocation9], %s442
          %s444 = smul.addr %s44, 16
          %s445 = scalar_lea.hbm %s4, %s444
          %s447 = sshll.u32 [#allocation10], 4
          %s448 = int_to_ptr.vmem [resolvable:$true] %s447
          %450 = dma.hbm_to_vmem [thread:$0]  %s445, 16, %s448, [#allocation9]
        $region28: #{tpu_custom_call.1} parent=11 // pred_fallthru
          _
        // Predicated region
        $region29: #{tpu_custom_call.1} parent=11 // pred_check
          %p451 = pneg %p210
        $region30: #{tpu_custom_call.1} parent=11 // pred_check_branch
          %453 = sbr.rel (%p451) target = $region32
        $region31: #{tpu_custom_call.1} parent=11 // pred_region
          %s455 = ssub.s32 16, 16
          %456 = vsyncadd [#allocation12], %s455
          %s457 = smul.addr %s44, 16
          %s458 = scalar_lea.hbm %s5, %s457
          %s460 = sshll.u32 [#allocation11], 4
          %s461 = int_to_ptr.vmem [resolvable:$true] %s460
          %463 = dma.hbm_to_vmem [thread:$0]  %s458, 16, %s461, [#allocation12]
        $region32: #{tpu_custom_call.1} parent=11 // pred_fallthru
          _
        // Predicated region
        $region33: #{tpu_custom_call.1} parent=11 // pred_check
          %p464 = pneg %p236
        $region34: #{tpu_custom_call.1} parent=11 // pred_check_branch
          %466 = sbr.rel (%p464) target = $region36
        $region35: #{tpu_custom_call.1} parent=11 // pred_region
          %s468 = ssub.s32 16, 16
          %469 = vsyncadd [#allocation12], %s468
          %s470 = smul.addr %s44, 16
          %s471 = scalar_lea.hbm %s6, %s470
          %s473 = sshll.u32 [#allocation13], 4
          %s474 = int_to_ptr.vmem [resolvable:$true] %s473
          %476 = dma.hbm_to_vmem [thread:$0]  %s471, 16, %s474, [#allocation12]
        $region36: #{tpu_custom_call.1} parent=11 // pred_fallthru
          _
      $region12: #{tpu_custom_call.1} parent=5 // pred_fallthru
        _
      %p477 = scmp.lt.s32.totalorder %s33, 8
      // Predicated region
      $region37: #{tpu_custom_call.1} parent=5 // pred_check
        %p478 = pneg %p477
      $region38: #{tpu_custom_call.1} parent=5 // pred_check_branch
        %480 = sbr.rel (%p478) target = $region40
      $region39: #{tpu_custom_call.1} parent=5 // pred_region
        // Predicated region
        $region41: #{tpu_custom_call.1} parent=39 // pred_check
          %p481 = pneg %p74
        $region42: #{tpu_custom_call.1} parent=39 // pred_check_branch
          %483 = sbr.rel (%p481) target = $region44
        $region43: #{tpu_custom_call.1} parent=39 // pred_region
          %s484 = sand.u32 %s64, 1
          %s485 = scalar_lea.sflag [#allocation3], %s484
          %s486 = sand.u32 %s64, 1
          %s487 = smul.addr %s486, 32
          %s488 = scalar_lea.vmem [#allocation2], %s487
          %s489 = smul.u32 2, %s42
          %s491 = ssub.s32 512, 512
          %492 = vsyncadd %s485, %s491
          %s493 = smul.addr %s489, 2
          %s494 = smul.addr %s40, 8
          %s495 = sadd.s32 %s493, %s494
          %s496 = smul.addr %s495, 128
          %s497 = scalar_lea.hbm %s0, %s496
          %s498 = sshll.u32 %s488, 4
          %s499 = int_to_ptr.vmem [resolvable:$true] %s498
          %504 = dma.hbm_to_vmem [thread:$0]  %s497, 512, %s499, %s485, 256, 256, 16
        $region44: #{tpu_custom_call.1} parent=39 // pred_fallthru
          _
        // Predicated region
        $region45: #{tpu_custom_call.1} parent=39 // pred_check
          %p505 = pneg %p256
        $region46: #{tpu_custom_call.1} parent=39 // pred_check_branch
          %507 = sbr.rel (%p505) target = $region48
        $region47: #{tpu_custom_call.1} parent=39 // pred_region
          %s508 = sand.u32 %s33, 1
          %s509 = scalar_lea.sflag [#allocation15], %s508
          %s510 = sand.u32 %s246, 1
          %s511 = smul.addr %s510, 16
          %s512 = scalar_lea.vmem [#allocation14], %s511
          %s513 = smul.u32 2, %s42
          %s515 = ssub.s32 256, 256
          %516 = vsyncadd %s509, %s515
          %s517 = smul.addr %s513, 128
          %s518 = scalar_lea.hbm %s7, %s517
          %s519 = sshll.u32 %s512, 4
          %s520 = int_to_ptr.vmem [resolvable:$true] %s519
          %525 = dma.hbm_to_vmem [thread:$0]  %s518, 256, %s520, %s509, 128, 128, 8
        $region48: #{tpu_custom_call.1} parent=39 // pred_fallthru
          _
        // Predicated region
        $region49: #{tpu_custom_call.1} parent=39 // pred_check
          %p526 = pneg %p282
        $region50: #{tpu_custom_call.1} parent=39 // pred_check_branch
          %528 = sbr.rel (%p526) target = $region52
        $region51: #{tpu_custom_call.1} parent=39 // pred_region
          %s529 = sand.u32 %s33, 1
          %s530 = scalar_lea.sflag [#allocation15], %s529
          %s531 = sand.u32 %s272, 1
          %s532 = smul.addr %s531, 16
          %s533 = scalar_lea.vmem [#allocation16], %s532
          %s534 = smul.u32 2, %s42
          %s536 = ssub.s32 256, 256
          %537 = vsyncadd %s530, %s536
          %s538 = smul.addr %s534, 128
          %s539 = scalar_lea.hbm %s8, %s538
          %s540 = sshll.u32 %s533, 4
          %s541 = int_to_ptr.vmem [resolvable:$true] %s540
          %546 = dma.hbm_to_vmem [thread:$0]  %s539, 256, %s541, %s530, 128, 128, 8
        $region52: #{tpu_custom_call.1} parent=39 // pred_fallthru
          _
      $region40: #{tpu_custom_call.1} parent=5 // pred_fallthru
        _
      %p547 = scmp.le.s32.totalorder 1, %s33
      %p548 = scmp.lt.s32.totalorder %s33, 9
      %p549 = pnand %p547, %p548
      %p550 = pneg %p549
      // Predicated region
      $region53: #{tpu_custom_call.1} parent=5 // pred_check
        _
      $region54: #{tpu_custom_call.1} parent=5 // pred_check_branch
        %552 = sbr.rel (%p549) target = $region56
      $region55: #{tpu_custom_call.1} parent=5 // pred_region
        %s553 = ssub.s32 %s33, 1
        %s554 = sand.u32 %s67, 1
        %s555 = scalar_lea.sflag [#allocation3], %s554
        %s556 = sand.u32 %s67, 1
        %s557 = smul.addr %s556, 32
        %s558 = scalar_lea.vmem [#allocation2], %s557
        // Predicated region
        $region57: #{tpu_custom_call.1} parent=55 // pred_check
          %p559 = pneg %p80
        $region58: #{tpu_custom_call.1} parent=55 // pred_check_branch
          %561 = sbr.rel (%p559) target = $region60
        $region59: #{tpu_custom_call.1} parent=55 // pred_region
          %562 = dma.done %s555, 512
        $region60: #{tpu_custom_call.1} parent=55 // pred_fallthru
          _
        // Predicated region
        $region61: #{tpu_custom_call.1} parent=55 // pred_check
          %p563 = pneg %p106
        $region62: #{tpu_custom_call.1} parent=55 // pred_check_branch
          %565 = sbr.rel (%p563) target = $region64
        $region63: #{tpu_custom_call.1} parent=55 // pred_region
          %566 = dma.done [#allocation6], 4096
        $region64: #{tpu_custom_call.1} parent=55 // pred_fallthru
          _
        // Predicated region
        $region65: #{tpu_custom_call.1} parent=55 // pred_check
          %p567 = pneg %p132
        $region66: #{tpu_custom_call.1} parent=55 // pred_check_branch
          %569 = sbr.rel (%p567) target = $region68
        $region67: #{tpu_custom_call.1} parent=55 // pred_region
          %570 = dma.done [#allocation6], 4096
        $region68: #{tpu_custom_call.1} parent=55 // pred_fallthru
          _
        // Predicated region
        $region69: #{tpu_custom_call.1} parent=55 // pred_check
          %p571 = pneg %p158
        $region70: #{tpu_custom_call.1} parent=55 // pred_check_branch
          %573 = sbr.rel (%p571) target = $region72
        $region71: #{tpu_custom_call.1} parent=55 // pred_region
          %574 = dma.done [#allocation9], 4096
        $region72: #{tpu_custom_call.1} parent=55 // pred_fallthru
          _
        // Predicated region
        $region73: #{tpu_custom_call.1} parent=55 // pred_check
          %p575 = pneg %p184
        $region74: #{tpu_custom_call.1} parent=55 // pred_check_branch
          %577 = sbr.rel (%p575) target = $region76
        $region75: #{tpu_custom_call.1} parent=55 // pred_region
          %578 = dma.done [#allocation9], 16
        $region76: #{tpu_custom_call.1} parent=55 // pred_fallthru
          _
        // Predicated region
        $region77: #{tpu_custom_call.1} parent=55 // pred_check
          %p579 = pneg %p210
        $region78: #{tpu_custom_call.1} parent=55 // pred_check_branch
          %581 = sbr.rel (%p579) target = $region80
        $region79: #{tpu_custom_call.1} parent=55 // pred_region
          %582 = dma.done [#allocation12], 16
        $region80: #{tpu_custom_call.1} parent=55 // pred_fallthru
          _
        // Predicated region
        $region81: #{tpu_custom_call.1} parent=55 // pred_check
          %p583 = pneg %p236
        $region82: #{tpu_custom_call.1} parent=55 // pred_check_branch
          %585 = sbr.rel (%p583) target = $region84
        $region83: #{tpu_custom_call.1} parent=55 // pred_region
          %586 = dma.done [#allocation12], 16
        $region84: #{tpu_custom_call.1} parent=55 // pred_fallthru
          _
        %s587 = sand.u32 %s38, 1
        %s588 = scalar_lea.sflag [#allocation15], %s587
        %s589 = sand.u32 %s249, 1
        %s590 = smul.addr %s589, 16
        %s591 = scalar_lea.vmem [#allocation14], %s590
        // Predicated region
        $region85: #{tpu_custom_call.1} parent=55 // pred_check
          %p592 = pneg %p262
        $region86: #{tpu_custom_call.1} parent=55 // pred_check_branch
          %594 = sbr.rel (%p592) target = $region88
        $region87: #{tpu_custom_call.1} parent=55 // pred_region
          %595 = dma.done %s588, 256
        $region88: #{tpu_custom_call.1} parent=55 // pred_fallthru
          _
        %s596 = sand.u32 %s38, 1
        %s597 = scalar_lea.sflag [#allocation15], %s596
        %s598 = sand.u32 %s275, 1
        %s599 = smul.addr %s598, 16
        %s600 = scalar_lea.vmem [#allocation16], %s599
        // Predicated region
        $region89: #{tpu_custom_call.1} parent=55 // pred_check
          %p601 = pneg %p288
        $region90: #{tpu_custom_call.1} parent=55 // pred_check_branch
          %603 = sbr.rel (%p601) target = $region92
        $region91: #{tpu_custom_call.1} parent=55 // pred_region
          %604 = dma.done %s597, 256
        $region92: #{tpu_custom_call.1} parent=55 // pred_fallthru
          _
        %s605 = sand.u32 %s67, 1
        %s606 = scalar_lea.sflag [#allocation3], %s605
        %s607 = sand.u32 %s67, 1
        %s608 = smul.addr %s607, 32
        %s609 = scalar_lea.vmem [#allocation2], %s608
        %p610 = pneg %p80
        %p611 = pneg %p77
        %p612 = pneg %p106
        %p613 = pneg %p103
        %p614 = pneg %p132
        %p615 = pneg %p129
        %p616 = pneg %p158
        %p617 = pneg %p155
        %p618 = pneg %p184
        %p619 = pneg %p181
        %p620 = pneg %p210
        %p621 = pneg %p207
        %p622 = pneg %p236
        %p623 = pneg %p233
        %s624 = sand.u32 %s38, 1
        %s625 = scalar_lea.sflag [#allocation15], %s624
        %s626 = sand.u32 %s249, 1
        %s627 = smul.addr %s626, 16
        %s628 = scalar_lea.vmem [#allocation14], %s627
        %p629 = pneg %p262
        %p630 = pneg %p259
        %s631 = sand.u32 %s38, 1
        %s632 = scalar_lea.sflag [#allocation15], %s631
        %s633 = sand.u32 %s275, 1
        %s634 = smul.addr %s633, 16
        %s635 = scalar_lea.vmem [#allocation16], %s634
        %p636 = pneg %p288
        %p637 = pneg %p285
        %p638 = pneg %p318
        %p639 = pneg %p315
        %s640 = sand.u32 %s305, 1
        %s641 = scalar_lea.sflag [#allocation4], %s640
        %s642 = sand.u32 %s305, 1
        %s643 = smul.addr %s642, 16
        %s644 = scalar_lea.vmem [#allocation17], %s643
        %p645 = pneg %p348
        %p646 = pneg %p345
        %s647 = sand.u32 %s38, 1
        %s648 = scalar_lea.sflag [#allocation19], %s647
        %s649 = sand.u32 %s335, 1
        %s650 = smul.addr %s649, 16
        %s651 = scalar_lea.vmem [#allocation18], %s650
        %p652 = pneg %p378
        %p653 = pneg %p375
        %s654 = sand.u32 %s38, 1
        %s655 = scalar_lea.sflag [#allocation19], %s654
        %s656 = sand.u32 %s365, 1
        %s657 = smul.addr %s656, 16
        %s658 = scalar_lea.vmem [#allocation20], %s657
        %s659 = smul.u32 2, %s45
        %s660 = smul.u32 2, %s45
        %s661 = smul.u32 2, %s45
        %s662 = smul.u32 2, %s45
        %s663 = smul.u32 2, %s45
        %s664 = smul.u32 2, %s45
        %v665 = vld [vmem:[%s558] sm:$0xff]
        %v666 = vld [vmem:[%s558 + $0x8] sm:$0xff]
        %v667 = vld [vmem:[%s558 + $0x10] sm:$0xff]
        %v668 = vld [vmem:[%s558 + $0x18] sm:$0xff]
        %v669 = vld [vmem:[#allocation5] sm:$0xff]
        %v670 = vld [vmem:[#allocation5 + $0x8] sm:$0xff]
        %v671 = vld [vmem:[#allocation5 + $0x10] sm:$0xff]
        %v672 = vld [vmem:[#allocation5 + $0x18] sm:$0xff]
        %v673 = vld [vmem:[#allocation5 + $0x20] sm:$0xff]
        %v674 = vld [vmem:[#allocation5 + $0x28] sm:$0xff]
        %v675 = vld [vmem:[#allocation5 + $0x30] sm:$0xff]
        %v676 = vld [vmem:[#allocation5 + $0x38] sm:$0xff]
        %v677 = vld [vmem:[#allocation5 + $0x40] sm:$0xff]
        %v678 = vld [vmem:[#allocation5 + $0x48] sm:$0xff]
        %v679 = vld [vmem:[#allocation5 + $0x50] sm:$0xff]
        %v680 = vld [vmem:[#allocation5 + $0x58] sm:$0xff]
        %v681 = vld [vmem:[#allocation5 + $0x60] sm:$0xff]
        %v682 = vld [vmem:[#allocation5 + $0x68] sm:$0xff]
        %v683 = vld [vmem:[#allocation5 + $0x70] sm:$0xff]
        %v684 = vld [vmem:[#allocation5 + $0x78] sm:$0xff]
        %v685 = vld [vmem:[#allocation5 + $0x80] sm:$0xff]
        %v686 = vld [vmem:[#allocation5 + $0x88] sm:$0xff]
        %v687 = vld [vmem:[#allocation5 + $0x90] sm:$0xff]
        %v688 = vld [vmem:[#allocation5 + $0x98] sm:$0xff]
        %v689 = vld [vmem:[#allocation5 + $0xa0] sm:$0xff]
        %v690 = vld [vmem:[#allocation5 + $0xa8] sm:$0xff]
        %v691 = vld [vmem:[#allocation5 + $0xb0] sm:$0xff]
        %v692 = vld [vmem:[#allocation5 + $0xb8] sm:$0xff]
        %v693 = vld [vmem:[#allocation5 + $0xc0] sm:$0xff]
        %v694 = vld [vmem:[#allocation5 + $0xc8] sm:$0xff]
        %v695 = vld [vmem:[#allocation5 + $0xd0] sm:$0xff]
        %v696 = vld [vmem:[#allocation5 + $0xd8] sm:$0xff]
        %v697 = vld [vmem:[#allocation5 + $0xe0] sm:$0xff]
        %v698 = vld [vmem:[#allocation5 + $0xe8] sm:$0xff]
        %v699 = vld [vmem:[#allocation5 + $0xf0] sm:$0xff]
        %v700 = vld [vmem:[#allocation5 + $0xf8] sm:$0xff]
        %v701 = vld [vmem:[#allocation10] sm:$0x1]
        %v703 = vlaneseq
        %v704 = vshrl.u32 %v703, 7
        %v705 = vsub.s32 0, %v704
        %v706 = vrot.slane %v701, %v705
        %708 = vmatprep.subr.mxu0 0.0
        %v709 = vand.u32 %v669, 4294901760
        %710 = vmatpush1.msra.mxu0 %v709
        %711 = vmatprep.subr.mxu0 0.0
        %v712 = vand.u32 %v670, 4294901760
        %713 = vmatpush1.msra.mxu0 %v712
        %714 = vmatprep.subr.mxu0 0.0
        %v715 = vand.u32 %v671, 4294901760
        %716 = vmatpush1.msra.mxu0 %v715
        %717 = vmatprep.subr.mxu0 0.0
        %v718 = vand.u32 %v672, 4294901760
        %719 = vmatpush1.msra.mxu0 %v718
        %720 = vmatprep.subr.mxu0 0.0
        %v721 = vand.u32 %v673, 4294901760
        %722 = vmatpush1.msra.mxu0 %v721
        %723 = vmatprep.subr.mxu0 0.0
        %v724 = vand.u32 %v674, 4294901760
        %725 = vmatpush1.msra.mxu0 %v724
        %726 = vmatprep.subr.mxu0 0.0
        %v727 = vand.u32 %v675, 4294901760
        %728 = vmatpush1.msra.mxu0 %v727
        %729 = vmatprep.subr.mxu0 0.0
        %v730 = vand.u32 %v676, 4294901760
        %731 = vmatpush1.msra.mxu0 %v730
        %732 = vmatprep.subr.mxu0 0.0
        %v733 = vand.u32 %v677, 4294901760
        %734 = vmatpush1.msra.mxu0 %v733
        %735 = vmatprep.subr.mxu0 0.0
        %v736 = vand.u32 %v678, 4294901760
        %737 = vmatpush1.msra.mxu0 %v736
        %738 = vmatprep.subr.mxu0 0.0
        %v739 = vand.u32 %v679, 4294901760
        %740 = vmatpush1.msra.mxu0 %v739
        %741 = vmatprep.subr.mxu0 0.0
        %v742 = vand.u32 %v680, 4294901760
        %743 = vmatpush1.msra.mxu0 %v742
        %744 = vmatprep.subr.mxu0 0.0
        %v745 = vand.u32 %v681, 4294901760
        %746 = vmatpush1.msra.mxu0 %v745
        %747 = vmatprep.subr.mxu0 0.0
        %v748 = vand.u32 %v682, 4294901760
        %749 = vmatpush1.msra.mxu0 %v748
        %750 = vmatprep.subr.mxu0 0.0
        %v751 = vand.u32 %v683, 4294901760
        %752 = vmatpush1.msra.mxu0 %v751
        %753 = vmatprep.subr.mxu0 0.0
        %v754 = vand.u32 %v684, 4294901760
        %755 = vmatpush1.msra.mxu0 %v754
        %756 = vmatprep.subr.mxu0 0.0
        %v757 = vand.u32 %v685, 4294901760
        %758 = vmatpush1.msra.mxu0 %v757
        %759 = vmatprep.subr.mxu0 0.0
        %v760 = vand.u32 %v686, 4294901760
        %761 = vmatpush1.msra.mxu0 %v760
        %762 = vmatprep.subr.mxu0 0.0
        %v763 = vand.u32 %v687, 4294901760
        %764 = vmatpush1.msra.mxu0 %v763
        %765 = vmatprep.subr.mxu0 0.0
        %v766 = vand.u32 %v688, 4294901760
        %767 = vmatpush1.msra.mxu0 %v766
        %768 = vmatprep.subr.mxu0 0.0
        %v769 = vand.u32 %v689, 4294901760
        %770 = vmatpush1.msra.mxu0 %v769
        %771 = vmatprep.subr.mxu0 0.0
        %v772 = vand.u32 %v690, 4294901760
        %773 = vmatpush1.msra.mxu0 %v772
        %774 = vmatprep.subr.mxu0 0.0
        %v775 = vand.u32 %v691, 4294901760
        %776 = vmatpush1.msra.mxu0 %v775
        %777 = vmatprep.subr.mxu0 0.0
        %v778 = vand.u32 %v692, 4294901760
        %779 = vmatpush1.msra.mxu0 %v778
        %780 = vmatprep.subr.mxu0 0.0
        %v781 = vand.u32 %v693, 4294901760
        %782 = vmatpush1.msra.mxu0 %v781
        %783 = vmatprep.subr.mxu0 0.0
        %v784 = vand.u32 %v694, 4294901760
        %785 = vmatpush1.msra.mxu0 %v784
        %786 = vmatprep.subr.mxu0 0.0
        %v787 = vand.u32 %v695, 4294901760
        %788 = vmatpush1.msra.mxu0 %v787
        %789 = vmatprep.subr.mxu0 0.0
        %v790 = vand.u32 %v696, 4294901760
        %791 = vmatpush1.msra.mxu0 %v790
        %792 = vmatprep.subr.mxu0 0.0
        %v793 = vand.u32 %v697, 4294901760
        %794 = vmatpush1.msra.mxu0 %v793
        %795 = vmatprep.subr.mxu0 0.0
        %v796 = vand.u32 %v698, 4294901760
        %797 = vmatpush1.msra.mxu0 %v796
        %798 = vmatprep.subr.mxu0 0.0
        %v799 = vand.u32 %v699, 4294901760
        %800 = vmatpush1.msra.mxu0 %v799
        %801 = vmatprep.subr.mxu0 0.0
        %v802 = vand.u32 %v700, 4294901760
        %803 = vmatpush1.msra.mxu0 %v802
        %v804 = vand.u32 %v666, 4294901760
        %v805 = vsub.f32 %v666, %v804
        %v806 = vand.u32 %v805, 4294901760
        %v807 = vsub.f32 %v805, %v806
        %v808 = vand.u32 %v807, 4294901760
        %809 = vmatprep.mubr.f32.mxu0 %v808
        %v810 = vand.u32 %v665, 4294901760
        %v811 = vsub.f32 %v665, %v810
        %v812 = vand.u32 %v811, 4294901760
        %v813 = vsub.f32 %v811, %v812
        %v814 = vand.u32 %v813, 4294901760
        %815 = vmatmul.mubr.f32.gmra.mrb[0].mxu0 %v814
        %v816 = vpop.f32.mrb[0].mxu0
        %v817 = vadd.f32 %v706, %v816
        %v818 = vpop.f32.mrb[0].mxu0
        %v819 = vand.u32 %v668, 4294901760
        %v820 = vsub.f32 %v668, %v819
        %v821 = vand.u32 %v820, 4294901760
        %v822 = vsub.f32 %v820, %v821
        %v823 = vand.u32 %v822, 4294901760
        %824 = vmatprep.mubr.f32.mxu0 %v823
        %v825 = vand.u32 %v667, 4294901760
        %v826 = vsub.f32 %v667, %v825
        %v827 = vand.u32 %v826, 4294901760
        %v828 = vsub.f32 %v826, %v827
        %v829 = vand.u32 %v828, 4294901760
        %830 = vmatmul.mubr.f32.gmra.mrb[0].mxu0 %v829
        %v831 = vpop.f32.mrb[0].mxu0
        %v832 = vadd.f32 %v706, %v831
        %v833 = vpop.f32.mrb[0].mxu0
        %834 = vdwg.mxu0
        %835 = vmatprep.subr.mxu0 0.0
        %v836 = vand.u32 %v669, 4294901760
        %v837 = vsub.f32 %v669, %v836
        %v838 = vand.u32 %v837, 4294901760
        %v839 = vsub.f32 %v837, %v838
        %v840 = vand.u32 %v839, 4294901760
        %841 = vmatpush1.msra.mxu0 %v840
        %842 = vmatprep.subr.mxu0 0.0
        %v843 = vand.u32 %v670, 4294901760
        %v844 = vsub.f32 %v670, %v843
        %v845 = vand.u32 %v844, 4294901760
        %v846 = vsub.f32 %v844, %v845
        %v847 = vand.u32 %v846, 4294901760
        %848 = vmatpush1.msra.mxu0 %v847
        %849 = vmatprep.subr.mxu0 0.0
        %v850 = vand.u32 %v671, 4294901760
        %v851 = vsub.f32 %v671, %v850
        %v852 = vand.u32 %v851, 4294901760
        %v853 = vsub.f32 %v851, %v852
        %v854 = vand.u32 %v853, 4294901760
        %855 = vmatpush1.msra.mxu0 %v854
        %856 = vmatprep.subr.mxu0 0.0
        %v857 = vand.u32 %v672, 4294901760
        %v858 = vsub.f32 %v672, %v857
        %v859 = vand.u32 %v858, 4294901760
        %v860 = vsub.f32 %v858, %v859
        %v861 = vand.u32 %v860, 4294901760
        %862 = vmatpush1.msra.mxu0 %v861
        %863 = vmatprep.subr.mxu0 0.0
        %v864 = vand.u32 %v673, 4294901760
        %v865 = vsub.f32 %v673, %v864
        %v866 = vand.u32 %v865, 4294901760
        %v867 = vsub.f32 %v865, %v866
        %v868 = vand.u32 %v867, 4294901760
        %869 = vmatpush1.msra.mxu0 %v868
        %870 = vmatprep.subr.mxu0 0.0
        %v871 = vand.u32 %v674, 4294901760
        %v872 = vsub.f32 %v674, %v871
        %v873 = vand.u32 %v872, 4294901760
        %v874 = vsub.f32 %v872, %v873
        %v875 = vand.u32 %v874, 4294901760
        %876 = vmatpush1.msra.mxu0 %v875
        %877 = vmatprep.subr.mxu0 0.0
        %v878 = vand.u32 %v675, 4294901760
        %v879 = vsub.f32 %v675, %v878
        %v880 = vand.u32 %v879, 4294901760
        %v881 = vsub.f32 %v879, %v880
        %v882 = vand.u32 %v881, 4294901760
        %883 = vmatpush1.msra.mxu0 %v882
        %884 = vmatprep.subr.mxu0 0.0
        %v885 = vand.u32 %v676, 4294901760
        %v886 = vsub.f32 %v676, %v885
        %v887 = vand.u32 %v886, 4294901760
        %v888 = vsub.f32 %v886, %v887
        %v889 = vand.u32 %v888, 4294901760
        %890 = vmatpush1.msra.mxu0 %v889
        %891 = vmatprep.subr.mxu0 0.0
        %v892 = vand.u32 %v677, 4294901760
        %v893 = vsub.f32 %v677, %v892
        %v894 = vand.u32 %v893, 4294901760
        %v895 = vsub.f32 %v893, %v894
        %v896 = vand.u32 %v895, 4294901760
        %897 = vmatpush1.msra.mxu0 %v896
        %898 = vmatprep.subr.mxu0 0.0
        %v899 = vand.u32 %v678, 4294901760
        %v900 = vsub.f32 %v678, %v899
        %v901 = vand.u32 %v900, 4294901760
        %v902 = vsub.f32 %v900, %v901
        %v903 = vand.u32 %v902, 4294901760
        %904 = vmatpush1.msra.mxu0 %v903
        %905 = vmatprep.subr.mxu0 0.0
        %v906 = vand.u32 %v679, 4294901760
        %v907 = vsub.f32 %v679, %v906
        %v908 = vand.u32 %v907, 4294901760
        %v909 = vsub.f32 %v907, %v908
        %v910 = vand.u32 %v909, 4294901760
        %911 = vmatpush1.msra.mxu0 %v910
        %912 = vmatprep.subr.mxu0 0.0
        %v913 = vand.u32 %v680, 4294901760
        %v914 = vsub.f32 %v680, %v913
        %v915 = vand.u32 %v914, 4294901760
        %v916 = vsub.f32 %v914, %v915
        %v917 = vand.u32 %v916, 4294901760
        %918 = vmatpush1.msra.mxu0 %v917
        %919 = vmatprep.subr.mxu0 0.0
        %v920 = vand.u32 %v681, 4294901760
        %v921 = vsub.f32 %v681, %v920
        %v922 = vand.u32 %v921, 4294901760
        %v923 = vsub.f32 %v921, %v922
        %v924 = vand.u32 %v923, 4294901760
        %925 = vmatpush1.msra.mxu0 %v924
        %926 = vmatprep.subr.mxu0 0.0
        %v927 = vand.u32 %v682, 4294901760
        %v928 = vsub.f32 %v682, %v927
        %v929 = vand.u32 %v928, 4294901760
        %v930 = vsub.f32 %v928, %v929
        %v931 = vand.u32 %v930, 4294901760
        %932 = vmatpush1.msra.mxu0 %v931
        %933 = vmatprep.subr.mxu0 0.0
        %v934 = vand.u32 %v683, 4294901760
        %v935 = vsub.f32 %v683, %v934
        %v936 = vand.u32 %v935, 4294901760
        %v937 = vsub.f32 %v935, %v936
        %v938 = vand.u32 %v937, 4294901760
        %939 = vmatpush1.msra.mxu0 %v938
        %940 = vmatprep.subr.mxu0 0.0
        %v941 = vand.u32 %v684, 4294901760
        %v942 = vsub.f32 %v684, %v941
        %v943 = vand.u32 %v942, 4294901760
        %v944 = vsub.f32 %v942, %v943
        %v945 = vand.u32 %v944, 4294901760
        %946 = vmatpush1.msra.mxu0 %v945
        %947 = vmatprep.subr.mxu0 0.0
        %v948 = vand.u32 %v685, 4294901760
        %v949 = vsub.f32 %v685, %v948
        %v950 = vand.u32 %v949, 4294901760
        %v951 = vsub.f32 %v949, %v950
        %v952 = vand.u32 %v951, 4294901760
        %953 = vmatpush1.msra.mxu0 %v952
        %954 = vmatprep.subr.mxu0 0.0
        %v955 = vand.u32 %v686, 4294901760
        %v956 = vsub.f32 %v686, %v955
        %v957 = vand.u32 %v956, 4294901760
        %v958 = vsub.f32 %v956, %v957
        %v959 = vand.u32 %v958, 4294901760
        %960 = vmatpush1.msra.mxu0 %v959
        %961 = vmatprep.subr.mxu0 0.0
        %v962 = vand.u32 %v687, 4294901760
        %v963 = vsub.f32 %v687, %v962
        %v964 = vand.u32 %v963, 4294901760
        %v965 = vsub.f32 %v963, %v964
        %v966 = vand.u32 %v965, 4294901760
        %967 = vmatpush1.msra.mxu0 %v966
        %968 = vmatprep.subr.mxu0 0.0
        %v969 = vand.u32 %v688, 4294901760
        %v970 = vsub.f32 %v688, %v969
        %v971 = vand.u32 %v970, 4294901760
        %v972 = vsub.f32 %v970, %v971
        %v973 = vand.u32 %v972, 4294901760
        %974 = vmatpush1.msra.mxu0 %v973
        %975 = vmatprep.subr.mxu0 0.0
        %v976 = vand.u32 %v689, 4294901760
        %v977 = vsub.f32 %v689, %v976
        %v978 = vand.u32 %v977, 4294901760
        %v979 = vsub.f32 %v977, %v978
        %v980 = vand.u32 %v979, 4294901760
        %981 = vmatpush1.msra.mxu0 %v980
        %982 = vmatprep.subr.mxu0 0.0
        %v983 = vand.u32 %v690, 4294901760
        %v984 = vsub.f32 %v690, %v983
        %v985 = vand.u32 %v984, 4294901760
        %v986 = vsub.f32 %v984, %v985
        %v987 = vand.u32 %v986, 4294901760
        %988 = vmatpush1.msra.mxu0 %v987
        %989 = vmatprep.subr.mxu0 0.0
        %v990 = vand.u32 %v691, 4294901760
        %v991 = vsub.f32 %v691, %v990
        %v992 = vand.u32 %v991, 4294901760
        %v993 = vsub.f32 %v991, %v992
        %v994 = vand.u32 %v993, 4294901760
        %995 = vmatpush1.msra.mxu0 %v994
        %996 = vmatprep.subr.mxu0 0.0
        %v997 = vand.u32 %v692, 4294901760
        %v998 = vsub.f32 %v692, %v997
        %v999 = vand.u32 %v998, 4294901760
        %v1000 = vsub.f32 %v998, %v999
        %v1001 = vand.u32 %v1000, 4294901760
        %1002 = vmatpush1.msra.mxu0 %v1001
        %1003 = vmatprep.subr.mxu0 0.0
        %v1004 = vand.u32 %v693, 4294901760
        %v1005 = vsub.f32 %v693, %v1004
        %v1006 = vand.u32 %v1005, 4294901760
        %v1007 = vsub.f32 %v1005, %v1006
        %v1008 = vand.u32 %v1007, 4294901760
        %1009 = vmatpush1.msra.mxu0 %v1008
        %1010 = vmatprep.subr.mxu0 0.0
        %v1011 = vand.u32 %v694, 4294901760
        %v1012 = vsub.f32 %v694, %v1011
        %v1013 = vand.u32 %v1012, 4294901760
        %v1014 = vsub.f32 %v1012, %v1013
        %v1015 = vand.u32 %v1014, 4294901760
        %1016 = vmatpush1.msra.mxu0 %v1015
        %1017 = vmatprep.subr.mxu0 0.0
        %v1018 = vand.u32 %v695, 4294901760
        %v1019 = vsub.f32 %v695, %v1018
        %v1020 = vand.u32 %v1019, 4294901760
        %v1021 = vsub.f32 %v1019, %v1020
        %v1022 = vand.u32 %v1021, 4294901760
        %1023 = vmatpush1.msra.mxu0 %v1022
        %1024 = vmatprep.subr.mxu0 0.0
        %v1025 = vand.u32 %v696, 4294901760
        %v1026 = vsub.f32 %v696, %v1025
        %v1027 = vand.u32 %v1026, 4294901760
        %v1028 = vsub.f32 %v1026, %v1027
        %v1029 = vand.u32 %v1028, 4294901760
        %1030 = vmatpush1.msra.mxu0 %v1029
        %1031 = vmatprep.subr.mxu0 0.0
        %v1032 = vand.u32 %v697, 4294901760
        %v1033 = vsub.f32 %v697, %v1032
        %v1034 = vand.u32 %v1033, 4294901760
        %v1035 = vsub.f32 %v1033, %v1034
        %v1036 = vand.u32 %v1035, 4294901760
        %1037 = vmatpush1.msra.mxu0 %v1036
        %1038 = vmatprep.subr.mxu0 0.0
        %v1039 = vand.u32 %v698, 4294901760
        %v1040 = vsub.f32 %v698, %v1039
        %v1041 = vand.u32 %v1040, 4294901760
        %v1042 = vsub.f32 %v1040, %v1041
        %v1043 = vand.u32 %v1042, 4294901760
        %1044 = vmatpush1.msra.mxu0 %v1043
        %1045 = vmatprep.subr.mxu0 0.0
        %v1046 = vand.u32 %v699, 4294901760
        %v1047 = vsub.f32 %v699, %v1046
        %v1048 = vand.u32 %v1047, 4294901760
        %v1049 = vsub.f32 %v1047, %v1048
        %v1050 = vand.u32 %v1049, 4294901760
        %1051 = vmatpush1.msra.mxu0 %v1050
        %1052 = vmatprep.subr.mxu0 0.0
        %v1053 = vand.u32 %v700, 4294901760
        %v1054 = vsub.f32 %v700, %v1053
        %v1055 = vand.u32 %v1054, 4294901760
        %v1056 = vsub.f32 %v1054, %v1055
        %v1057 = vand.u32 %v1056, 4294901760
        %1058 = vmatpush1.msra.mxu0 %v1057
        %v1059 = vand.u32 %v666, 4294901760
        %1060 = vmatprep.mubr.f32.mxu0 %v1059
        %v1061 = vand.u32 %v665, 4294901760
        %1062 = vmatmul.mubr.f32.gmra.mrb[0].mxu0 %v1061
        %v1063 = vpop.f32.mrb[0].mxu0
        %v1064 = vadd.f32 %v817, %v1063
        %v1065 = vpop.f32.mrb[0].mxu0
        %v1066 = vand.u32 %v668, 4294901760
        %1067 = vmatprep.mubr.f32.mxu0 %v1066
        %v1068 = vand.u32 %v667, 4294901760
        %1069 = vmatmul.mubr.f32.gmra.mrb[0].mxu0 %v1068
        %v1070 = vpop.f32.mrb[0].mxu0
        %v1071 = vadd.f32 %v832, %v1070
        %v1072 = vpop.f32.mrb[0].mxu0
        %1073 = vdwg.mxu0
        %1074 = vmatprep.subr.mxu0 0.0
        %v1075 = vand.u32 %v669, 4294901760
        %v1076 = vsub.f32 %v669, %v1075
        %1077 = vmatpush1.msra.mxu0 %v1076
        %1078 = vmatprep.subr.mxu0 0.0
        %v1079 = vand.u32 %v670, 4294901760
        %v1080 = vsub.f32 %v670, %v1079
        %1081 = vmatpush1.msra.mxu0 %v1080
        %1082 = vmatprep.subr.mxu0 0.0
        %v1083 = vand.u32 %v671, 4294901760
        %v1084 = vsub.f32 %v671, %v1083
        %1085 = vmatpush1.msra.mxu0 %v1084
        %1086 = vmatprep.subr.mxu0 0.0
        %v1087 = vand.u32 %v672, 4294901760
        %v1088 = vsub.f32 %v672, %v1087
        %1089 = vmatpush1.msra.mxu0 %v1088
        %1090 = vmatprep.subr.mxu0 0.0
        %v1091 = vand.u32 %v673, 4294901760
        %v1092 = vsub.f32 %v673, %v1091
        %1093 = vmatpush1.msra.mxu0 %v1092
        %1094 = vmatprep.subr.mxu0 0.0
        %v1095 = vand.u32 %v674, 4294901760
        %v1096 = vsub.f32 %v674, %v1095
        %1097 = vmatpush1.msra.mxu0 %v1096
        %1098 = vmatprep.subr.mxu0 0.0
        %v1099 = vand.u32 %v675, 4294901760
        %v1100 = vsub.f32 %v675, %v1099
        %1101 = vmatpush1.msra.mxu0 %v1100
        %1102 = vmatprep.subr.mxu0 0.0
        %v1103 = vand.u32 %v676, 4294901760
        %v1104 = vsub.f32 %v676, %v1103
        %1105 = vmatpush1.msra.mxu0 %v1104
        %1106 = vmatprep.subr.mxu0 0.0
        %v1107 = vand.u32 %v677, 4294901760
        %v1108 = vsub.f32 %v677, %v1107
        %1109 = vmatpush1.msra.mxu0 %v1108
        %1110 = vmatprep.subr.mxu0 0.0
        %v1111 = vand.u32 %v678, 4294901760
        %v1112 = vsub.f32 %v678, %v1111
        %1113 = vmatpush1.msra.mxu0 %v1112
        %1114 = vmatprep.subr.mxu0 0.0
        %v1115 = vand.u32 %v679, 4294901760
        %v1116 = vsub.f32 %v679, %v1115
        %1117 = vmatpush1.msra.mxu0 %v1116
        %1118 = vmatprep.subr.mxu0 0.0
        %v1119 = vand.u32 %v680, 4294901760
        %v1120 = vsub.f32 %v680, %v1119
        %1121 = vmatpush1.msra.mxu0 %v1120
        %1122 = vmatprep.subr.mxu0 0.0
        %v1123 = vand.u32 %v681, 4294901760
        %v1124 = vsub.f32 %v681, %v1123
        %1125 = vmatpush1.msra.mxu0 %v1124
        %1126 = vmatprep.subr.mxu0 0.0
        %v1127 = vand.u32 %v682, 4294901760
        %v1128 = vsub.f32 %v682, %v1127
        %1129 = vmatpush1.msra.mxu0 %v1128
        %1130 = vmatprep.subr.mxu0 0.0
        %v1131 = vand.u32 %v683, 4294901760
        %v1132 = vsub.f32 %v683, %v1131
        %1133 = vmatpush1.msra.mxu0 %v1132
        %1134 = vmatprep.subr.mxu0 0.0
        %v1135 = vand.u32 %v684, 4294901760
        %v1136 = vsub.f32 %v684, %v1135
        %1137 = vmatpush1.msra.mxu0 %v1136
        %1138 = vmatprep.subr.mxu0 0.0
        %v1139 = vand.u32 %v685, 4294901760
        %v1140 = vsub.f32 %v685, %v1139
        %1141 = vmatpush1.msra.mxu0 %v1140
        %1142 = vmatprep.subr.mxu0 0.0
        %v1143 = vand.u32 %v686, 4294901760
        %v1144 = vsub.f32 %v686, %v1143
        %1145 = vmatpush1.msra.mxu0 %v1144
        %1146 = vmatprep.subr.mxu0 0.0
        %v1147 = vand.u32 %v687, 4294901760
        %v1148 = vsub.f32 %v687, %v1147
        %1149 = vmatpush1.msra.mxu0 %v1148
        %1150 = vmatprep.subr.mxu0 0.0
        %v1151 = vand.u32 %v688, 4294901760
        %v1152 = vsub.f32 %v688, %v1151
        %1153 = vmatpush1.msra.mxu0 %v1152
        %1154 = vmatprep.subr.mxu0 0.0
        %v1155 = vand.u32 %v689, 4294901760
        %v1156 = vsub.f32 %v689, %v1155
        %1157 = vmatpush1.msra.mxu0 %v1156
        %1158 = vmatprep.subr.mxu0 0.0
        %v1159 = vand.u32 %v690, 4294901760
        %v1160 = vsub.f32 %v690, %v1159
        %1161 = vmatpush1.msra.mxu0 %v1160
        %1162 = vmatprep.subr.mxu0 0.0
        %v1163 = vand.u32 %v691, 4294901760
        %v1164 = vsub.f32 %v691, %v1163
        %1165 = vmatpush1.msra.mxu0 %v1164
        %1166 = vmatprep.subr.mxu0 0.0
        %v1167 = vand.u32 %v692, 4294901760
        %v1168 = vsub.f32 %v692, %v1167
        %1169 = vmatpush1.msra.mxu0 %v1168
        %1170 = vmatprep.subr.mxu0 0.0
        %v1171 = vand.u32 %v693, 4294901760
        %v1172 = vsub.f32 %v693, %v1171
        %1173 = vmatpush1.msra.mxu0 %v1172
        %1174 = vmatprep.subr.mxu0 0.0
        %v1175 = vand.u32 %v694, 4294901760
        %v1176 = vsub.f32 %v694, %v1175
        %1177 = vmatpush1.msra.mxu0 %v1176
        %1178 = vmatprep.subr.mxu0 0.0
        %v1179 = vand.u32 %v695, 4294901760
        %v1180 = vsub.f32 %v695, %v1179
        %1181 = vmatpush1.msra.mxu0 %v1180
        %1182 = vmatprep.subr.mxu0 0.0
        %v1183 = vand.u32 %v696, 4294901760
        %v1184 = vsub.f32 %v696, %v1183
        %1185 = vmatpush1.msra.mxu0 %v1184
        %1186 = vmatprep.subr.mxu0 0.0
        %v1187 = vand.u32 %v697, 4294901760
        %v1188 = vsub.f32 %v697, %v1187
        %1189 = vmatpush1.msra.mxu0 %v1188
        %1190 = vmatprep.subr.mxu0 0.0
        %v1191 = vand.u32 %v698, 4294901760
        %v1192 = vsub.f32 %v698, %v1191
        %1193 = vmatpush1.msra.mxu0 %v1192
        %1194 = vmatprep.subr.mxu0 0.0
        %v1195 = vand.u32 %v699, 4294901760
        %v1196 = vsub.f32 %v699, %v1195
        %1197 = vmatpush1.msra.mxu0 %v1196
        %1198 = vmatprep.subr.mxu0 0.0
        %v1199 = vand.u32 %v700, 4294901760
        %v1200 = vsub.f32 %v700, %v1199
        %1201 = vmatpush1.msra.mxu0 %v1200
        %v1202 = vand.u32 %v666, 4294901760
        %v1203 = vsub.f32 %v666, %v1202
        %1204 = vmatprep.mubr.f32.mxu0 %v1203
        %v1205 = vand.u32 %v665, 4294901760
        %v1206 = vsub.f32 %v665, %v1205
        %1207 = vmatmul.mubr.f32.gmra.mrb[0].mxu0 %v1206
        %v1208 = vpop.f32.mrb[0].mxu0
        %v1209 = vadd.f32 %v1064, %v1208
        %v1210 = vpop.f32.mrb[0].mxu0
        %v1211 = vand.u32 %v668, 4294901760
        %v1212 = vsub.f32 %v668, %v1211
        %1213 = vmatprep.mubr.f32.mxu0 %v1212
        %v1214 = vand.u32 %v667, 4294901760
        %v1215 = vsub.f32 %v667, %v1214
        %1216 = vmatmul.mubr.f32.gmra.mrb[0].mxu0 %v1215
        %v1217 = vpop.f32.mrb[0].mxu0
        %v1218 = vadd.f32 %v1071, %v1217
        %v1219 = vpop.f32.mrb[0].mxu0
        %1220 = vdwg.mxu0
        %1221 = vmatprep.subr.mxu0 0.0
        %v1222 = vand.u32 %v669, 4294901760
        %1223 = vmatpush1.msra.mxu0 %v1222
        %1224 = vmatprep.subr.mxu0 0.0
        %v1225 = vand.u32 %v670, 4294901760
        %1226 = vmatpush1.msra.mxu0 %v1225
        %1227 = vmatprep.subr.mxu0 0.0
        %v1228 = vand.u32 %v671, 4294901760
        %1229 = vmatpush1.msra.mxu0 %v1228
        %1230 = vmatprep.subr.mxu0 0.0
        %v1231 = vand.u32 %v672, 4294901760
        %1232 = vmatpush1.msra.mxu0 %v1231
        %1233 = vmatprep.subr.mxu0 0.0
        %v1234 = vand.u32 %v673, 4294901760
        %1235 = vmatpush1.msra.mxu0 %v1234
        %1236 = vmatprep.subr.mxu0 0.0
        %v1237 = vand.u32 %v674, 4294901760
        %1238 = vmatpush1.msra.mxu0 %v1237
        %1239 = vmatprep.subr.mxu0 0.0
        %v1240 = vand.u32 %v675, 4294901760
        %1241 = vmatpush1.msra.mxu0 %v1240
        %1242 = vmatprep.subr.mxu0 0.0
        %v1243 = vand.u32 %v676, 4294901760
        %1244 = vmatpush1.msra.mxu0 %v1243
        %1245 = vmatprep.subr.mxu0 0.0
        %v1246 = vand.u32 %v677, 4294901760
        %1247 = vmatpush1.msra.mxu0 %v1246
        %1248 = vmatprep.subr.mxu0 0.0
        %v1249 = vand.u32 %v678, 4294901760
        %1250 = vmatpush1.msra.mxu0 %v1249
        %1251 = vmatprep.subr.mxu0 0.0
        %v1252 = vand.u32 %v679, 4294901760
        %1253 = vmatpush1.msra.mxu0 %v1252
        %1254 = vmatprep.subr.mxu0 0.0
        %v1255 = vand.u32 %v680, 4294901760
        %1256 = vmatpush1.msra.mxu0 %v1255
        %1257 = vmatprep.subr.mxu0 0.0
        %v1258 = vand.u32 %v681, 4294901760
        %1259 = vmatpush1.msra.mxu0 %v1258
        %1260 = vmatprep.subr.mxu0 0.0
        %v1261 = vand.u32 %v682, 4294901760
        %1262 = vmatpush1.msra.mxu0 %v1261
        %1263 = vmatprep.subr.mxu0 0.0
        %v1264 = vand.u32 %v683, 4294901760
        %1265 = vmatpush1.msra.mxu0 %v1264
        %1266 = vmatprep.subr.mxu0 0.0
        %v1267 = vand.u32 %v684, 4294901760
        %1268 = vmatpush1.msra.mxu0 %v1267
        %1269 = vmatprep.subr.mxu0 0.0
        %v1270 = vand.u32 %v685, 4294901760
        %1271 = vmatpush1.msra.mxu0 %v1270
        %1272 = vmatprep.subr.mxu0 0.0
        %v1273 = vand.u32 %v686, 4294901760
        %1274 = vmatpush1.msra.mxu0 %v1273
        %1275 = vmatprep.subr.mxu0 0.0
        %v1276 = vand.u32 %v687, 4294901760
        %1277 = vmatpush1.msra.mxu0 %v1276
        %1278 = vmatprep.subr.mxu0 0.0
        %v1279 = vand.u32 %v688, 4294901760
        %1280 = vmatpush1.msra.mxu0 %v1279
        %1281 = vmatprep.subr.mxu0 0.0
        %v1282 = vand.u32 %v689, 4294901760
        %1283 = vmatpush1.msra.mxu0 %v1282
        %1284 = vmatprep.subr.mxu0 0.0
        %v1285 = vand.u32 %v690, 4294901760
        %1286 = vmatpush1.msra.mxu0 %v1285
        %1287 = vmatprep.subr.mxu0 0.0
        %v1288 = vand.u32 %v691, 4294901760
        %1289 = vmatpush1.msra.mxu0 %v1288
        %1290 = vmatprep.subr.mxu0 0.0
        %v1291 = vand.u32 %v692, 4294901760
        %1292 = vmatpush1.msra.mxu0 %v1291
        %1293 = vmatprep.subr.mxu0 0.0
        %v1294 = vand.u32 %v693, 4294901760
        %1295 = vmatpush1.msra.mxu0 %v1294
        %1296 = vmatprep.subr.mxu0 0.0
        %v1297 = vand.u32 %v694, 4294901760
        %1298 = vmatpush1.msra.mxu0 %v1297
        %1299 = vmatprep.subr.mxu0 0.0
        %v1300 = vand.u32 %v695, 4294901760
        %1301 = vmatpush1.msra.mxu0 %v1300
        %1302 = vmatprep.subr.mxu0 0.0
        %v1303 = vand.u32 %v696, 4294901760
        %1304 = vmatpush1.msra.mxu0 %v1303
        %1305 = vmatprep.subr.mxu0 0.0
        %v1306 = vand.u32 %v697, 4294901760
        %1307 = vmatpush1.msra.mxu0 %v1306
        %1308 = vmatprep.subr.mxu0 0.0
        %v1309 = vand.u32 %v698, 4294901760
        %1310 = vmatpush1.msra.mxu0 %v1309
        %1311 = vmatprep.subr.mxu0 0.0
        %v1312 = vand.u32 %v699, 4294901760
        %1313 = vmatpush1.msra.mxu0 %v1312
        %1314 = vmatprep.subr.mxu0 0.0
        %v1315 = vand.u32 %v700, 4294901760
        %1316 = vmatpush1.msra.mxu0 %v1315
        %v1317 = vand.u32 %v666, 4294901760
        %v1318 = vsub.f32 %v666, %v1317
        %v1319 = vand.u32 %v1318, 4294901760
        %1320 = vmatprep.mubr.f32.mxu0 %v1319
        %v1321 = vand.u32 %v665, 4294901760
        %v1322 = vsub.f32 %v665, %v1321
        %v1323 = vand.u32 %v1322, 4294901760
        %1324 = vmatmul.mubr.f32.gmra.mrb[0].mxu0 %v1323
        %v1325 = vpop.f32.mrb[0].mxu0
        %v1326 = vadd.f32 %v1209, %v1325
        %v1327 = vpop.f32.mrb[0].mxu0
        %v1328 = vand.u32 %v668, 4294901760
        %v1329 = vsub.f32 %v668, %v1328
        %v1330 = vand.u32 %v1329, 4294901760
        %1331 = vmatprep.mubr.f32.mxu0 %v1330
        %v1332 = vand.u32 %v667, 4294901760
        %v1333 = vsub.f32 %v667, %v1332
        %v1334 = vand.u32 %v1333, 4294901760
        %1335 = vmatmul.mubr.f32.gmra.mrb[0].mxu0 %v1334
        %v1336 = vpop.f32.mrb[0].mxu0
        %v1337 = vadd.f32 %v1218, %v1336
        %v1338 = vpop.f32.mrb[0].mxu0
        %1339 = vdwg.mxu0
        %1340 = vmatprep.subr.mxu0 0.0
        %v1341 = vand.u32 %v669, 4294901760
        %v1342 = vsub.f32 %v669, %v1341
        %v1343 = vand.u32 %v1342, 4294901760
        %1344 = vmatpush1.msra.mxu0 %v1343
        %1345 = vmatprep.subr.mxu0 0.0
        %v1346 = vand.u32 %v670, 4294901760
        %v1347 = vsub.f32 %v670, %v1346
        %v1348 = vand.u32 %v1347, 4294901760
        %1349 = vmatpush1.msra.mxu0 %v1348
        %1350 = vmatprep.subr.mxu0 0.0
        %v1351 = vand.u32 %v671, 4294901760
        %v1352 = vsub.f32 %v671, %v1351
        %v1353 = vand.u32 %v1352, 4294901760
        %1354 = vmatpush1.msra.mxu0 %v1353
        %1355 = vmatprep.subr.mxu0 0.0
        %v1356 = vand.u32 %v672, 4294901760
        %v1357 = vsub.f32 %v672, %v1356
        %v1358 = vand.u32 %v1357, 4294901760
        %1359 = vmatpush1.msra.mxu0 %v1358
        %1360 = vmatprep.subr.mxu0 0.0
        %v1361 = vand.u32 %v673, 4294901760
        %v1362 = vsub.f32 %v673, %v1361
        %v1363 = vand.u32 %v1362, 4294901760
        %1364 = vmatpush1.msra.mxu0 %v1363
        %1365 = vmatprep.subr.mxu0 0.0
        %v1366 = vand.u32 %v674, 4294901760
        %v1367 = vsub.f32 %v674, %v1366
        %v1368 = vand.u32 %v1367, 4294901760
        %1369 = vmatpush1.msra.mxu0 %v1368
        %1370 = vmatprep.subr.mxu0 0.0
        %v1371 = vand.u32 %v675, 4294901760
        %v1372 = vsub.f32 %v675, %v1371
        %v1373 = vand.u32 %v1372, 4294901760
        %1374 = vmatpush1.msra.mxu0 %v1373
        %1375 = vmatprep.subr.mxu0 0.0
        %v1376 = vand.u32 %v676, 4294901760
        %v1377 = vsub.f32 %v676, %v1376
        %v1378 = vand.u32 %v1377, 4294901760
        %1379 = vmatpush1.msra.mxu0 %v1378
        %1380 = vmatprep.subr.mxu0 0.0
        %v1381 = vand.u32 %v677, 4294901760
        %v1382 = vsub.f32 %v677, %v1381
        %v1383 = vand.u32 %v1382, 4294901760
        %1384 = vmatpush1.msra.mxu0 %v1383
        %1385 = vmatprep.subr.mxu0 0.0
        %v1386 = vand.u32 %v678, 4294901760
        %v1387 = vsub.f32 %v678, %v1386
        %v1388 = vand.u32 %v1387, 4294901760
        %1389 = vmatpush1.msra.mxu0 %v1388
        %1390 = vmatprep.subr.mxu0 0.0
        %v1391 = vand.u32 %v679, 4294901760
        %v1392 = vsub.f32 %v679, %v1391
        %v1393 = vand.u32 %v1392, 4294901760
        %1394 = vmatpush1.msra.mxu0 %v1393
        %1395 = vmatprep.subr.mxu0 0.0
        %v1396 = vand.u32 %v680, 4294901760
        %v1397 = vsub.f32 %v680, %v1396
        %v1398 = vand.u32 %v1397, 4294901760
        %1399 = vmatpush1.msra.mxu0 %v1398
        %1400 = vmatprep.subr.mxu0 0.0
        %v1401 = vand.u32 %v681, 4294901760
        %v1402 = vsub.f32 %v681, %v1401
        %v1403 = vand.u32 %v1402, 4294901760
        %1404 = vmatpush1.msra.mxu0 %v1403
        %1405 = vmatprep.subr.mxu0 0.0
        %v1406 = vand.u32 %v682, 4294901760
        %v1407 = vsub.f32 %v682, %v1406
        %v1408 = vand.u32 %v1407, 4294901760
        %1409 = vmatpush1.msra.mxu0 %v1408
        %1410 = vmatprep.subr.mxu0 0.0
        %v1411 = vand.u32 %v683, 4294901760
        %v1412 = vsub.f32 %v683, %v1411
        %v1413 = vand.u32 %v1412, 4294901760
        %1414 = vmatpush1.msra.mxu0 %v1413
        %1415 = vmatprep.subr.mxu0 0.0
        %v1416 = vand.u32 %v684, 4294901760
        %v1417 = vsub.f32 %v684, %v1416
        %v1418 = vand.u32 %v1417, 4294901760
        %1419 = vmatpush1.msra.mxu0 %v1418
        %1420 = vmatprep.subr.mxu0 0.0
        %v1421 = vand.u32 %v685, 4294901760
        %v1422 = vsub.f32 %v685, %v1421
        %v1423 = vand.u32 %v1422, 4294901760
        %1424 = vmatpush1.msra.mxu0 %v1423
        %1425 = vmatprep.subr.mxu0 0.0
        %v1426 = vand.u32 %v686, 4294901760
        %v1427 = vsub.f32 %v686, %v1426
        %v1428 = vand.u32 %v1427, 4294901760
        %1429 = vmatpush1.msra.mxu0 %v1428
        %1430 = vmatprep.subr.mxu0 0.0
        %v1431 = vand.u32 %v687, 4294901760
        %v1432 = vsub.f32 %v687, %v1431
        %v1433 = vand.u32 %v1432, 4294901760
        %1434 = vmatpush1.msra.mxu0 %v1433
        %1435 = vmatprep.subr.mxu0 0.0
        %v1436 = vand.u32 %v688, 4294901760
        %v1437 = vsub.f32 %v688, %v1436
        %v1438 = vand.u32 %v1437, 4294901760
        %1439 = vmatpush1.msra.mxu0 %v1438
        %1440 = vmatprep.subr.mxu0 0.0
        %v1441 = vand.u32 %v689, 4294901760
        %v1442 = vsub.f32 %v689, %v1441
        %v1443 = vand.u32 %v1442, 4294901760
        %1444 = vmatpush1.msra.mxu0 %v1443
        %1445 = vmatprep.subr.mxu0 0.0
        %v1446 = vand.u32 %v690, 4294901760
        %v1447 = vsub.f32 %v690, %v1446
        %v1448 = vand.u32 %v1447, 4294901760
        %1449 = vmatpush1.msra.mxu0 %v1448
        %1450 = vmatprep.subr.mxu0 0.0
        %v1451 = vand.u32 %v691, 4294901760
        %v1452 = vsub.f32 %v691, %v1451
        %v1453 = vand.u32 %v1452, 4294901760
        %1454 = vmatpush1.msra.mxu0 %v1453
        %1455 = vmatprep.subr.mxu0 0.0
        %v1456 = vand.u32 %v692, 4294901760
        %v1457 = vsub.f32 %v692, %v1456
        %v1458 = vand.u32 %v1457, 4294901760
        %1459 = vmatpush1.msra.mxu0 %v1458
        %1460 = vmatprep.subr.mxu0 0.0
        %v1461 = vand.u32 %v693, 4294901760
        %v1462 = vsub.f32 %v693, %v1461
        %v1463 = vand.u32 %v1462, 4294901760
        %1464 = vmatpush1.msra.mxu0 %v1463
        %1465 = vmatprep.subr.mxu0 0.0
        %v1466 = vand.u32 %v694, 4294901760
        %v1467 = vsub.f32 %v694, %v1466
        %v1468 = vand.u32 %v1467, 4294901760
        %1469 = vmatpush1.msra.mxu0 %v1468
        %1470 = vmatprep.subr.mxu0 0.0
        %v1471 = vand.u32 %v695, 4294901760
        %v1472 = vsub.f32 %v695, %v1471
        %v1473 = vand.u32 %v1472, 4294901760
        %1474 = vmatpush1.msra.mxu0 %v1473
        %1475 = vmatprep.subr.mxu0 0.0
        %v1476 = vand.u32 %v696, 4294901760
        %v1477 = vsub.f32 %v696, %v1476
        %v1478 = vand.u32 %v1477, 4294901760
        %1479 = vmatpush1.msra.mxu0 %v1478
        %1480 = vmatprep.subr.mxu0 0.0
        %v1481 = vand.u32 %v697, 4294901760
        %v1482 = vsub.f32 %v697, %v1481
        %v1483 = vand.u32 %v1482, 4294901760
        %1484 = vmatpush1.msra.mxu0 %v1483
        %1485 = vmatprep.subr.mxu0 0.0
        %v1486 = vand.u32 %v698, 4294901760
        %v1487 = vsub.f32 %v698, %v1486
        %v1488 = vand.u32 %v1487, 4294901760
        %1489 = vmatpush1.msra.mxu0 %v1488
        %1490 = vmatprep.subr.mxu0 0.0
        %v1491 = vand.u32 %v699, 4294901760
        %v1492 = vsub.f32 %v699, %v1491
        %v1493 = vand.u32 %v1492, 4294901760
        %1494 = vmatpush1.msra.mxu0 %v1493
        %1495 = vmatprep.subr.mxu0 0.0
        %v1496 = vand.u32 %v700, 4294901760
        %v1497 = vsub.f32 %v700, %v1496
        %v1498 = vand.u32 %v1497, 4294901760
        %1499 = vmatpush1.msra.mxu0 %v1498
        %v1500 = vand.u32 %v666, 4294901760
        %1501 = vmatprep.mubr.f32.mxu0 %v1500
        %v1502 = vand.u32 %v665, 4294901760
        %1503 = vmatmul.mubr.f32.gmra.mrb[0].mxu0 %v1502
        %v1504 = vpop.f32.mrb[0].mxu0
        %v1505 = vadd.f32 %v1326, %v1504
        %v1506 = vpop.f32.mrb[0].mxu0
        %v1507 = vand.u32 %v668, 4294901760
        %1508 = vmatprep.mubr.f32.mxu0 %v1507
        %v1509 = vand.u32 %v667, 4294901760
        %1510 = vmatmul.mubr.f32.gmra.mrb[0].mxu0 %v1509
        %v1511 = vpop.f32.mrb[0].mxu0
        %v1512 = vadd.f32 %v1337, %v1511
        %v1513 = vpop.f32.mrb[0].mxu0
        %1514 = vdwg.mxu0
        %1515 = vmatprep.subr.mxu0 0.0
        %v1516 = vand.u32 %v669, 4294901760
        %1517 = vmatpush1.msra.mxu0 %v1516
        %1518 = vmatprep.subr.mxu0 0.0
        %v1519 = vand.u32 %v670, 4294901760
        %1520 = vmatpush1.msra.mxu0 %v1519
        %1521 = vmatprep.subr.mxu0 0.0
        %v1522 = vand.u32 %v671, 4294901760
        %1523 = vmatpush1.msra.mxu0 %v1522
        %1524 = vmatprep.subr.mxu0 0.0
        %v1525 = vand.u32 %v672, 4294901760
        %1526 = vmatpush1.msra.mxu0 %v1525
        %1527 = vmatprep.subr.mxu0 0.0
        %v1528 = vand.u32 %v673, 4294901760
        %1529 = vmatpush1.msra.mxu0 %v1528
        %1530 = vmatprep.subr.mxu0 0.0
        %v1531 = vand.u32 %v674, 4294901760
        %1532 = vmatpush1.msra.mxu0 %v1531
        %1533 = vmatprep.subr.mxu0 0.0
        %v1534 = vand.u32 %v675, 4294901760
        %1535 = vmatpush1.msra.mxu0 %v1534
        %1536 = vmatprep.subr.mxu0 0.0
        %v1537 = vand.u32 %v676, 4294901760
        %1538 = vmatpush1.msra.mxu0 %v1537
        %1539 = vmatprep.subr.mxu0 0.0
        %v1540 = vand.u32 %v677, 4294901760
        %1541 = vmatpush1.msra.mxu0 %v1540
        %1542 = vmatprep.subr.mxu0 0.0
        %v1543 = vand.u32 %v678, 4294901760
        %1544 = vmatpush1.msra.mxu0 %v1543
        %1545 = vmatprep.subr.mxu0 0.0
        %v1546 = vand.u32 %v679, 4294901760
        %1547 = vmatpush1.msra.mxu0 %v1546
        %1548 = vmatprep.subr.mxu0 0.0
        %v1549 = vand.u32 %v680, 4294901760
        %1550 = vmatpush1.msra.mxu0 %v1549
        %1551 = vmatprep.subr.mxu0 0.0
        %v1552 = vand.u32 %v681, 4294901760
        %1553 = vmatpush1.msra.mxu0 %v1552
        %1554 = vmatprep.subr.mxu0 0.0
        %v1555 = vand.u32 %v682, 4294901760
        %1556 = vmatpush1.msra.mxu0 %v1555
        %1557 = vmatprep.subr.mxu0 0.0
        %v1558 = vand.u32 %v683, 4294901760
        %1559 = vmatpush1.msra.mxu0 %v1558
        %1560 = vmatprep.subr.mxu0 0.0
        %v1561 = vand.u32 %v684, 4294901760
        %1562 = vmatpush1.msra.mxu0 %v1561
        %1563 = vmatprep.subr.mxu0 0.0
        %v1564 = vand.u32 %v685, 4294901760
        %1565 = vmatpush1.msra.mxu0 %v1564
        %1566 = vmatprep.subr.mxu0 0.0
        %v1567 = vand.u32 %v686, 4294901760
        %1568 = vmatpush1.msra.mxu0 %v1567
        %1569 = vmatprep.subr.mxu0 0.0
        %v1570 = vand.u32 %v687, 4294901760
        %1571 = vmatpush1.msra.mxu0 %v1570
        %1572 = vmatprep.subr.mxu0 0.0
        %v1573 = vand.u32 %v688, 4294901760
        %1574 = vmatpush1.msra.mxu0 %v1573
        %1575 = vmatprep.subr.mxu0 0.0
        %v1576 = vand.u32 %v689, 4294901760
        %1577 = vmatpush1.msra.mxu0 %v1576
        %1578 = vmatprep.subr.mxu0 0.0
        %v1579 = vand.u32 %v690, 4294901760
        %1580 = vmatpush1.msra.mxu0 %v1579
        %1581 = vmatprep.subr.mxu0 0.0
        %v1582 = vand.u32 %v691, 4294901760
        %1583 = vmatpush1.msra.mxu0 %v1582
        %1584 = vmatprep.subr.mxu0 0.0
        %v1585 = vand.u32 %v692, 4294901760
        %1586 = vmatpush1.msra.mxu0 %v1585
        %1587 = vmatprep.subr.mxu0 0.0
        %v1588 = vand.u32 %v693, 4294901760
        %1589 = vmatpush1.msra.mxu0 %v1588
        %1590 = vmatprep.subr.mxu0 0.0
        %v1591 = vand.u32 %v694, 4294901760
        %1592 = vmatpush1.msra.mxu0 %v1591
        %1593 = vmatprep.subr.mxu0 0.0
        %v1594 = vand.u32 %v695, 4294901760
        %1595 = vmatpush1.msra.mxu0 %v1594
        %1596 = vmatprep.subr.mxu0 0.0
        %v1597 = vand.u32 %v696, 4294901760
        %1598 = vmatpush1.msra.mxu0 %v1597
        %1599 = vmatprep.subr.mxu0 0.0
        %v1600 = vand.u32 %v697, 4294901760
        %1601 = vmatpush1.msra.mxu0 %v1600
        %1602 = vmatprep.subr.mxu0 0.0
        %v1603 = vand.u32 %v698, 4294901760
        %1604 = vmatpush1.msra.mxu0 %v1603
        %1605 = vmatprep.subr.mxu0 0.0
        %v1606 = vand.u32 %v699, 4294901760
        %1607 = vmatpush1.msra.mxu0 %v1606
        %1608 = vmatprep.subr.mxu0 0.0
        %v1609 = vand.u32 %v700, 4294901760
        %1610 = vmatpush1.msra.mxu0 %v1609
        %v1611 = vand.u32 %v666, 4294901760
        %1612 = vmatprep.mubr.f32.mxu0 %v1611
        %v1613 = vand.u32 %v665, 4294901760
        %1614 = vmatmul.mubr.f32.gmra.mrb[0].mxu0 %v1613
        %v1615 = vpop.f32.mrb[0].mxu0
        %v1616 = vadd.f32 %v1505, %v1615
        %v1617 = vpop.f32.mrb[0].mxu0
        %v1618 = vand.u32 %v668, 4294901760
        %1619 = vmatprep.mubr.f32.mxu0 %v1618
        %v1620 = vand.u32 %v667, 4294901760
        %1621 = vmatmul.mubr.f32.gmra.mrb[0].mxu0 %v1620
        %v1622 = vpop.f32.mrb[0].mxu0
        %v1623 = vadd.f32 %v1512, %v1622
        %v1624 = vpop.f32.mrb[0].mxu0
        %1625 = vdwg.mxu0
        %v1626 = vld [vmem:[#allocation7] sm:$0xff]
        %v1627 = vld [vmem:[#allocation7 + $0x8] sm:$0xff]
        %v1628 = vld [vmem:[#allocation7 + $0x10] sm:$0xff]
        %v1629 = vld [vmem:[#allocation7 + $0x18] sm:$0xff]
        %v1630 = vld [vmem:[#allocation7 + $0x20] sm:$0xff]
        %v1631 = vld [vmem:[#allocation7 + $0x28] sm:$0xff]
        %v1632 = vld [vmem:[#allocation7 + $0x30] sm:$0xff]
        %v1633 = vld [vmem:[#allocation7 + $0x38] sm:$0xff]
        %v1634 = vld [vmem:[#allocation7 + $0x40] sm:$0xff]
        %v1635 = vld [vmem:[#allocation7 + $0x48] sm:$0xff]
        %v1636 = vld [vmem:[#allocation7 + $0x50] sm:$0xff]
        %v1637 = vld [vmem:[#allocation7 + $0x58] sm:$0xff]
        %v1638 = vld [vmem:[#allocation7 + $0x60] sm:$0xff]
        %v1639 = vld [vmem:[#allocation7 + $0x68] sm:$0xff]
        %v1640 = vld [vmem:[#allocation7 + $0x70] sm:$0xff]
        %v1641 = vld [vmem:[#allocation7 + $0x78] sm:$0xff]
        %v1642 = vld [vmem:[#allocation7 + $0x80] sm:$0xff]
        %v1643 = vld [vmem:[#allocation7 + $0x88] sm:$0xff]
        %v1644 = vld [vmem:[#allocation7 + $0x90] sm:$0xff]
        %v1645 = vld [vmem:[#allocation7 + $0x98] sm:$0xff]
        %v1646 = vld [vmem:[#allocation7 + $0xa0] sm:$0xff]
        %v1647 = vld [vmem:[#allocation7 + $0xa8] sm:$0xff]
        %v1648 = vld [vmem:[#allocation7 + $0xb0] sm:$0xff]
        %v1649 = vld [vmem:[#allocation7 + $0xb8] sm:$0xff]
        %v1650 = vld [vmem:[#allocation7 + $0xc0] sm:$0xff]
        %v1651 = vld [vmem:[#allocation7 + $0xc8] sm:$0xff]
        %v1652 = vld [vmem:[#allocation7 + $0xd0] sm:$0xff]
        %v1653 = vld [vmem:[#allocation7 + $0xd8] sm:$0xff]
        %v1654 = vld [vmem:[#allocation7 + $0xe0] sm:$0xff]
        %v1655 = vld [vmem:[#allocation7 + $0xe8] sm:$0xff]
        %v1656 = vld [vmem:[#allocation7 + $0xf0] sm:$0xff]
        %v1657 = vld [vmem:[#allocation7 + $0xf8] sm:$0xff]
        %v1658 = vld [vmem:[#allocation11] sm:$0x1]
        %v1660 = vlaneseq
        %v1661 = vshrl.u32 %v1660, 7
        %v1662 = vsub.s32 0, %v1661
        %v1663 = vrot.slane %v1658, %v1662
        %1665 = vmatprep.subr.mxu0 0.0
        %v1666 = vand.u32 %v1626, 4294901760
        %1667 = vmatpush1.msra.mxu0 %v1666
        %1668 = vmatprep.subr.mxu0 0.0
        %v1669 = vand.u32 %v1627, 4294901760
        %1670 = vmatpush1.msra.mxu0 %v1669
        %1671 = vmatprep.subr.mxu0 0.0
        %v1672 = vand.u32 %v1628, 4294901760
        %1673 = vmatpush1.msra.mxu0 %v1672
        %1674 = vmatprep.subr.mxu0 0.0
        %v1675 = vand.u32 %v1629, 4294901760
        %1676 = vmatpush1.msra.mxu0 %v1675
        %1677 = vmatprep.subr.mxu0 0.0
        %v1678 = vand.u32 %v1630, 4294901760
        %1679 = vmatpush1.msra.mxu0 %v1678
        %1680 = vmatprep.subr.mxu0 0.0
        %v1681 = vand.u32 %v1631, 4294901760
        %1682 = vmatpush1.msra.mxu0 %v1681
        %1683 = vmatprep.subr.mxu0 0.0
        %v1684 = vand.u32 %v1632, 4294901760
        %1685 = vmatpush1.msra.mxu0 %v1684
        %1686 = vmatprep.subr.mxu0 0.0
        %v1687 = vand.u32 %v1633, 4294901760
        %1688 = vmatpush1.msra.mxu0 %v1687
        %1689 = vmatprep.subr.mxu0 0.0
        %v1690 = vand.u32 %v1634, 4294901760
        %1691 = vmatpush1.msra.mxu0 %v1690
        %1692 = vmatprep.subr.mxu0 0.0
        %v1693 = vand.u32 %v1635, 4294901760
        %1694 = vmatpush1.msra.mxu0 %v1693
        %1695 = vmatprep.subr.mxu0 0.0
        %v1696 = vand.u32 %v1636, 4294901760
        %1697 = vmatpush1.msra.mxu0 %v1696
        %1698 = vmatprep.subr.mxu0 0.0
        %v1699 = vand.u32 %v1637, 4294901760
        %1700 = vmatpush1.msra.mxu0 %v1699
        %1701 = vmatprep.subr.mxu0 0.0
        %v1702 = vand.u32 %v1638, 4294901760
        %1703 = vmatpush1.msra.mxu0 %v1702
        %1704 = vmatprep.subr.mxu0 0.0
        %v1705 = vand.u32 %v1639, 4294901760
        %1706 = vmatpush1.msra.mxu0 %v1705
        %1707 = vmatprep.subr.mxu0 0.0
        %v1708 = vand.u32 %v1640, 4294901760
        %1709 = vmatpush1.msra.mxu0 %v1708
        %1710 = vmatprep.subr.mxu0 0.0
        %v1711 = vand.u32 %v1641, 4294901760
        %1712 = vmatpush1.msra.mxu0 %v1711
        %1713 = vmatprep.subr.mxu0 0.0
        %v1714 = vand.u32 %v1642, 4294901760
        %1715 = vmatpush1.msra.mxu0 %v1714
        %1716 = vmatprep.subr.mxu0 0.0
        %v1717 = vand.u32 %v1643, 4294901760
        %1718 = vmatpush1.msra.mxu0 %v1717
        %1719 = vmatprep.subr.mxu0 0.0
        %v1720 = vand.u32 %v1644, 4294901760
        %1721 = vmatpush1.msra.mxu0 %v1720
        %1722 = vmatprep.subr.mxu0 0.0
        %v1723 = vand.u32 %v1645, 4294901760
        %1724 = vmatpush1.msra.mxu0 %v1723
        %1725 = vmatprep.subr.mxu0 0.0
        %v1726 = vand.u32 %v1646, 4294901760
        %1727 = vmatpush1.msra.mxu0 %v1726
        %1728 = vmatprep.subr.mxu0 0.0
        %v1729 = vand.u32 %v1647, 4294901760
        %1730 = vmatpush1.msra.mxu0 %v1729
        %1731 = vmatprep.subr.mxu0 0.0
        %v1732 = vand.u32 %v1648, 4294901760
        %1733 = vmatpush1.msra.mxu0 %v1732
        %1734 = vmatprep.subr.mxu0 0.0
        %v1735 = vand.u32 %v1649, 4294901760
        %1736 = vmatpush1.msra.mxu0 %v1735
        %1737 = vmatprep.subr.mxu0 0.0
        %v1738 = vand.u32 %v1650, 4294901760
        %1739 = vmatpush1.msra.mxu0 %v1738
        %1740 = vmatprep.subr.mxu0 0.0
        %v1741 = vand.u32 %v1651, 4294901760
        %1742 = vmatpush1.msra.mxu0 %v1741
        %1743 = vmatprep.subr.mxu0 0.0
        %v1744 = vand.u32 %v1652, 4294901760
        %1745 = vmatpush1.msra.mxu0 %v1744
        %1746 = vmatprep.subr.mxu0 0.0
        %v1747 = vand.u32 %v1653, 4294901760
        %1748 = vmatpush1.msra.mxu0 %v1747
        %1749 = vmatprep.subr.mxu0 0.0
        %v1750 = vand.u32 %v1654, 4294901760
        %1751 = vmatpush1.msra.mxu0 %v1750
        %1752 = vmatprep.subr.mxu0 0.0
        %v1753 = vand.u32 %v1655, 4294901760
        %1754 = vmatpush1.msra.mxu0 %v1753
        %1755 = vmatprep.subr.mxu0 0.0
        %v1756 = vand.u32 %v1656, 4294901760
        %1757 = vmatpush1.msra.mxu0 %v1756
        %1758 = vmatprep.subr.mxu0 0.0
        %v1759 = vand.u32 %v1657, 4294901760
        %1760 = vmatpush1.msra.mxu0 %v1759
        %v1761 = vand.u32 %v666, 4294901760
        %v1762 = vsub.f32 %v666, %v1761
        %v1763 = vand.u32 %v1762, 4294901760
        %v1764 = vsub.f32 %v1762, %v1763
        %v1765 = vand.u32 %v1764, 4294901760
        %1766 = vmatprep.mubr.f32.mxu0 %v1765
        %v1767 = vand.u32 %v665, 4294901760
        %v1768 = vsub.f32 %v665, %v1767
        %v1769 = vand.u32 %v1768, 4294901760
        %v1770 = vsub.f32 %v1768, %v1769
        %v1771 = vand.u32 %v1770, 4294901760
        %1772 = vmatmul.mubr.f32.gmra.mrb[0].mxu0 %v1771
        %v1773 = vpop.f32.mrb[0].mxu0
        %v1774 = vadd.f32 %v1663, %v1773
        %v1775 = vpop.f32.mrb[0].mxu0
        %v1776 = vand.u32 %v668, 4294901760
        %v1777 = vsub.f32 %v668, %v1776
        %v1778 = vand.u32 %v1777, 4294901760
        %v1779 = vsub.f32 %v1777, %v1778
        %v1780 = vand.u32 %v1779, 4294901760
        %1781 = vmatprep.mubr.f32.mxu0 %v1780
        %v1782 = vand.u32 %v667, 4294901760
        %v1783 = vsub.f32 %v667, %v1782
        %v1784 = vand.u32 %v1783, 4294901760
        %v1785 = vsub.f32 %v1783, %v1784
        %v1786 = vand.u32 %v1785, 4294901760
        %1787 = vmatmul.mubr.f32.gmra.mrb[0].mxu0 %v1786
        %v1788 = vpop.f32.mrb[0].mxu0
        %v1789 = vadd.f32 %v1663, %v1788
        %v1790 = vpop.f32.mrb[0].mxu0
        %1791 = vdwg.mxu0
        %1792 = vmatprep.subr.mxu0 0.0
        %v1793 = vand.u32 %v1626, 4294901760
        %v1794 = vsub.f32 %v1626, %v1793
        %v1795 = vand.u32 %v1794, 4294901760
        %v1796 = vsub.f32 %v1794, %v1795
        %v1797 = vand.u32 %v1796, 4294901760
        %1798 = vmatpush1.msra.mxu0 %v1797
        %1799 = vmatprep.subr.mxu0 0.0
        %v1800 = vand.u32 %v1627, 4294901760
        %v1801 = vsub.f32 %v1627, %v1800
        %v1802 = vand.u32 %v1801, 4294901760
        %v1803 = vsub.f32 %v1801, %v1802
        %v1804 = vand.u32 %v1803, 4294901760
        %1805 = vmatpush1.msra.mxu0 %v1804
        %1806 = vmatprep.subr.mxu0 0.0
        %v1807 = vand.u32 %v1628, 4294901760
        %v1808 = vsub.f32 %v1628, %v1807
        %v1809 = vand.u32 %v1808, 4294901760
        %v1810 = vsub.f32 %v1808, %v1809
        %v1811 = vand.u32 %v1810, 4294901760
        %1812 = vmatpush1.msra.mxu0 %v1811
        %1813 = vmatprep.subr.mxu0 0.0
        %v1814 = vand.u32 %v1629, 4294901760
        %v1815 = vsub.f32 %v1629, %v1814
        %v1816 = vand.u32 %v1815, 4294901760
        %v1817 = vsub.f32 %v1815, %v1816
        %v1818 = vand.u32 %v1817, 4294901760
        %1819 = vmatpush1.msra.mxu0 %v1818
        %1820 = vmatprep.subr.mxu0 0.0
        %v1821 = vand.u32 %v1630, 4294901760
        %v1822 = vsub.f32 %v1630, %v1821
        %v1823 = vand.u32 %v1822, 4294901760
        %v1824 = vsub.f32 %v1822, %v1823
        %v1825 = vand.u32 %v1824, 4294901760
        %1826 = vmatpush1.msra.mxu0 %v1825
        %1827 = vmatprep.subr.mxu0 0.0
        %v1828 = vand.u32 %v1631, 4294901760
        %v1829 = vsub.f32 %v1631, %v1828
        %v1830 = vand.u32 %v1829, 4294901760
        %v1831 = vsub.f32 %v1829, %v1830
        %v1832 = vand.u32 %v1831, 4294901760
        %1833 = vmatpush1.msra.mxu0 %v1832
        %1834 = vmatprep.subr.mxu0 0.0
        %v1835 = vand.u32 %v1632, 4294901760
        %v1836 = vsub.f32 %v1632, %v1835
        %v1837 = vand.u32 %v1836, 4294901760
        %v1838 = vsub.f32 %v1836, %v1837
        %v1839 = vand.u32 %v1838, 4294901760
        %1840 = vmatpush1.msra.mxu0 %v1839
        %1841 = vmatprep.subr.mxu0 0.0
        %v1842 = vand.u32 %v1633, 4294901760
        %v1843 = vsub.f32 %v1633, %v1842
        %v1844 = vand.u32 %v1843, 4294901760
        %v1845 = vsub.f32 %v1843, %v1844
        %v1846 = vand.u32 %v1845, 4294901760
        %1847 = vmatpush1.msra.mxu0 %v1846
        %1848 = vmatprep.subr.mxu0 0.0
        %v1849 = vand.u32 %v1634, 4294901760
        %v1850 = vsub.f32 %v1634, %v1849
        %v1851 = vand.u32 %v1850, 4294901760
        %v1852 = vsub.f32 %v1850, %v1851
        %v1853 = vand.u32 %v1852, 4294901760
        %1854 = vmatpush1.msra.mxu0 %v1853
        %1855 = vmatprep.subr.mxu0 0.0
        %v1856 = vand.u32 %v1635, 4294901760
        %v1857 = vsub.f32 %v1635, %v1856
        %v1858 = vand.u32 %v1857, 4294901760
        %v1859 = vsub.f32 %v1857, %v1858
        %v1860 = vand.u32 %v1859, 4294901760
        %1861 = vmatpush1.msra.mxu0 %v1860
        %1862 = vmatprep.subr.mxu0 0.0
        %v1863 = vand.u32 %v1636, 4294901760
        %v1864 = vsub.f32 %v1636, %v1863
        %v1865 = vand.u32 %v1864, 4294901760
        %v1866 = vsub.f32 %v1864, %v1865
        %v1867 = vand.u32 %v1866, 4294901760
        %1868 = vmatpush1.msra.mxu0 %v1867
        %1869 = vmatprep.subr.mxu0 0.0
        %v1870 = vand.u32 %v1637, 4294901760
        %v1871 = vsub.f32 %v1637, %v1870
        %v1872 = vand.u32 %v1871, 4294901760
        %v1873 = vsub.f32 %v1871, %v1872
        %v1874 = vand.u32 %v1873, 4294901760
        %1875 = vmatpush1.msra.mxu0 %v1874
        %1876 = vmatprep.subr.mxu0 0.0
        %v1877 = vand.u32 %v1638, 4294901760
        %v1878 = vsub.f32 %v1638, %v1877
        %v1879 = vand.u32 %v1878, 4294901760
        %v1880 = vsub.f32 %v1878, %v1879
        %v1881 = vand.u32 %v1880, 4294901760
        %1882 = vmatpush1.msra.mxu0 %v1881
        %1883 = vmatprep.subr.mxu0 0.0
        %v1884 = vand.u32 %v1639, 4294901760
        %v1885 = vsub.f32 %v1639, %v1884
        %v1886 = vand.u32 %v1885, 4294901760
        %v1887 = vsub.f32 %v1885, %v1886
        %v1888 = vand.u32 %v1887, 4294901760
        %1889 = vmatpush1.msra.mxu0 %v1888
        %1890 = vmatprep.subr.mxu0 0.0
        %v1891 = vand.u32 %v1640, 4294901760
        %v1892 = vsub.f32 %v1640, %v1891
        %v1893 = vand.u32 %v1892, 4294901760
        %v1894 = vsub.f32 %v1892, %v1893
        %v1895 = vand.u32 %v1894, 4294901760
        %1896 = vmatpush1.msra.mxu0 %v1895
        %1897 = vmatprep.subr.mxu0 0.0
        %v1898 = vand.u32 %v1641, 4294901760
        %v1899 = vsub.f32 %v1641, %v1898
        %v1900 = vand.u32 %v1899, 4294901760
        %v1901 = vsub.f32 %v1899, %v1900
        %v1902 = vand.u32 %v1901, 4294901760
        %1903 = vmatpush1.msra.mxu0 %v1902
        %1904 = vmatprep.subr.mxu0 0.0
        %v1905 = vand.u32 %v1642, 4294901760
        %v1906 = vsub.f32 %v1642, %v1905
        %v1907 = vand.u32 %v1906, 4294901760
        %v1908 = vsub.f32 %v1906, %v1907
        %v1909 = vand.u32 %v1908, 4294901760
        %1910 = vmatpush1.msra.mxu0 %v1909
        %1911 = vmatprep.subr.mxu0 0.0
        %v1912 = vand.u32 %v1643, 4294901760
        %v1913 = vsub.f32 %v1643, %v1912
        %v1914 = vand.u32 %v1913, 4294901760
        %v1915 = vsub.f32 %v1913, %v1914
        %v1916 = vand.u32 %v1915, 4294901760
        %1917 = vmatpush1.msra.mxu0 %v1916
        %1918 = vmatprep.subr.mxu0 0.0
        %v1919 = vand.u32 %v1644, 4294901760
        %v1920 = vsub.f32 %v1644, %v1919
        %v1921 = vand.u32 %v1920, 4294901760
        %v1922 = vsub.f32 %v1920, %v1921
        %v1923 = vand.u32 %v1922, 4294901760
        %1924 = vmatpush1.msra.mxu0 %v1923
        %1925 = vmatprep.subr.mxu0 0.0
        %v1926 = vand.u32 %v1645, 4294901760
        %v1927 = vsub.f32 %v1645, %v1926
        %v1928 = vand.u32 %v1927, 4294901760
        %v1929 = vsub.f32 %v1927, %v1928
        %v1930 = vand.u32 %v1929, 4294901760
        %1931 = vmatpush1.msra.mxu0 %v1930
        %1932 = vmatprep.subr.mxu0 0.0
        %v1933 = vand.u32 %v1646, 4294901760
        %v1934 = vsub.f32 %v1646, %v1933
        %v1935 = vand.u32 %v1934, 4294901760
        %v1936 = vsub.f32 %v1934, %v1935
        %v1937 = vand.u32 %v1936, 4294901760
        %1938 = vmatpush1.msra.mxu0 %v1937
        %1939 = vmatprep.subr.mxu0 0.0
        %v1940 = vand.u32 %v1647, 4294901760
        %v1941 = vsub.f32 %v1647, %v1940
        %v1942 = vand.u32 %v1941, 4294901760
        %v1943 = vsub.f32 %v1941, %v1942
        %v1944 = vand.u32 %v1943, 4294901760
        %1945 = vmatpush1.msra.mxu0 %v1944
        %1946 = vmatprep.subr.mxu0 0.0
        %v1947 = vand.u32 %v1648, 4294901760
        %v1948 = vsub.f32 %v1648, %v1947
        %v1949 = vand.u32 %v1948, 4294901760
        %v1950 = vsub.f32 %v1948, %v1949
        %v1951 = vand.u32 %v1950, 4294901760
        %1952 = vmatpush1.msra.mxu0 %v1951
        %1953 = vmatprep.subr.mxu0 0.0
        %v1954 = vand.u32 %v1649, 4294901760
        %v1955 = vsub.f32 %v1649, %v1954
        %v1956 = vand.u32 %v1955, 4294901760
        %v1957 = vsub.f32 %v1955, %v1956
        %v1958 = vand.u32 %v1957, 4294901760
        %1959 = vmatpush1.msra.mxu0 %v1958
        %1960 = vmatprep.subr.mxu0 0.0
        %v1961 = vand.u32 %v1650, 4294901760
        %v1962 = vsub.f32 %v1650, %v1961
        %v1963 = vand.u32 %v1962, 4294901760
        %v1964 = vsub.f32 %v1962, %v1963
        %v1965 = vand.u32 %v1964, 4294901760
        %1966 = vmatpush1.msra.mxu0 %v1965
        %1967 = vmatprep.subr.mxu0 0.0
        %v1968 = vand.u32 %v1651, 4294901760
        %v1969 = vsub.f32 %v1651, %v1968
        %v1970 = vand.u32 %v1969, 4294901760
        %v1971 = vsub.f32 %v1969, %v1970
        %v1972 = vand.u32 %v1971, 4294901760
        %1973 = vmatpush1.msra.mxu0 %v1972
        %1974 = vmatprep.subr.mxu0 0.0
        %v1975 = vand.u32 %v1652, 4294901760
        %v1976 = vsub.f32 %v1652, %v1975
        %v1977 = vand.u32 %v1976, 4294901760
        %v1978 = vsub.f32 %v1976, %v1977
        %v1979 = vand.u32 %v1978, 4294901760
        %1980 = vmatpush1.msra.mxu0 %v1979
        %1981 = vmatprep.subr.mxu0 0.0
        %v1982 = vand.u32 %v1653, 4294901760
        %v1983 = vsub.f32 %v1653, %v1982
        %v1984 = vand.u32 %v1983, 4294901760
        %v1985 = vsub.f32 %v1983, %v1984
        %v1986 = vand.u32 %v1985, 4294901760
        %1987 = vmatpush1.msra.mxu0 %v1986
        %1988 = vmatprep.subr.mxu0 0.0
        %v1989 = vand.u32 %v1654, 4294901760
        %v1990 = vsub.f32 %v1654, %v1989
        %v1991 = vand.u32 %v1990, 4294901760
        %v1992 = vsub.f32 %v1990, %v1991
        %v1993 = vand.u32 %v1992, 4294901760
        %1994 = vmatpush1.msra.mxu0 %v1993
        %1995 = vmatprep.subr.mxu0 0.0
        %v1996 = vand.u32 %v1655, 4294901760
        %v1997 = vsub.f32 %v1655, %v1996
        %v1998 = vand.u32 %v1997, 4294901760
        %v1999 = vsub.f32 %v1997, %v1998
        %v2000 = vand.u32 %v1999, 4294901760
        %2001 = vmatpush1.msra.mxu0 %v2000
        %2002 = vmatprep.subr.mxu0 0.0
        %v2003 = vand.u32 %v1656, 4294901760
        %v2004 = vsub.f32 %v1656, %v2003
        %v2005 = vand.u32 %v2004, 4294901760
        %v2006 = vsub.f32 %v2004, %v2005
        %v2007 = vand.u32 %v2006, 4294901760
        %2008 = vmatpush1.msra.mxu0 %v2007
        %2009 = vmatprep.subr.mxu0 0.0
        %v2010 = vand.u32 %v1657, 4294901760
        %v2011 = vsub.f32 %v1657, %v2010
        %v2012 = vand.u32 %v2011, 4294901760
        %v2013 = vsub.f32 %v2011, %v2012
        %v2014 = vand.u32 %v2013, 4294901760
        %2015 = vmatpush1.msra.mxu0 %v2014
        %v2016 = vand.u32 %v666, 4294901760
        %2017 = vmatprep.mubr.f32.mxu0 %v2016
        %v2018 = vand.u32 %v665, 4294901760
        %2019 = vmatmul.mubr.f32.gmra.mrb[0].mxu0 %v2018
        %v2020 = vpop.f32.mrb[0].mxu0
        %v2021 = vadd.f32 %v1774, %v2020
        %v2022 = vpop.f32.mrb[0].mxu0
        %v2023 = vand.u32 %v668, 4294901760
        %2024 = vmatprep.mubr.f32.mxu0 %v2023
        %v2025 = vand.u32 %v667, 4294901760
        %2026 = vmatmul.mubr.f32.gmra.mrb[0].mxu0 %v2025
        %v2027 = vpop.f32.mrb[0].mxu0
        %v2028 = vadd.f32 %v1789, %v2027
        %v2029 = vpop.f32.mrb[0].mxu0
        %2030 = vdwg.mxu0
        %2031 = vmatprep.subr.mxu0 0.0
        %v2032 = vand.u32 %v1626, 4294901760
        %v2033 = vsub.f32 %v1626, %v2032
        %2034 = vmatpush1.msra.mxu0 %v2033
        %2035 = vmatprep.subr.mxu0 0.0
        %v2036 = vand.u32 %v1627, 4294901760
        %v2037 = vsub.f32 %v1627, %v2036
        %2038 = vmatpush1.msra.mxu0 %v2037
        %2039 = vmatprep.subr.mxu0 0.0
        %v2040 = vand.u32 %v1628, 4294901760
        %v2041 = vsub.f32 %v1628, %v2040
        %2042 = vmatpush1.msra.mxu0 %v2041
        %2043 = vmatprep.subr.mxu0 0.0
        %v2044 = vand.u32 %v1629, 4294901760
        %v2045 = vsub.f32 %v1629, %v2044
        %2046 = vmatpush1.msra.mxu0 %v2045
        %2047 = vmatprep.subr.mxu0 0.0
        %v2048 = vand.u32 %v1630, 4294901760
        %v2049 = vsub.f32 %v1630, %v2048
        %2050 = vmatpush1.msra.mxu0 %v2049
        %2051 = vmatprep.subr.mxu0 0.0
        %v2052 = vand.u32 %v1631, 4294901760
        %v2053 = vsub.f32 %v1631, %v2052
        %2054 = vmatpush1.msra.mxu0 %v2053
        %2055 = vmatprep.subr.mxu0 0.0
        %v2056 = vand.u32 %v1632, 4294901760
        %v2057 = vsub.f32 %v1632, %v2056
        %2058 = vmatpush1.msra.mxu0 %v2057
        %2059 = vmatprep.subr.mxu0 0.0
        %v2060 = vand.u32 %v1633, 4294901760
        %v2061 = vsub.f32 %v1633, %v2060
        %2062 = vmatpush1.msra.mxu0 %v2061
        %2063 = vmatprep.subr.mxu0 0.0
        %v2064 = vand.u32 %v1634, 4294901760
        %v2065 = vsub.f32 %v1634, %v2064
        %2066 = vmatpush1.msra.mxu0 %v2065
        %2067 = vmatprep.subr.mxu0 0.0
        %v2068 = vand.u32 %v1635, 4294901760
        %v2069 = vsub.f32 %v1635, %v2068
        %2070 = vmatpush1.msra.mxu0 %v2069
        %2071 = vmatprep.subr.mxu0 0.0
        %v2072 = vand.u32 %v1636, 4294901760
        %v2073 = vsub.f32 %v1636, %v2072
        %2074 = vmatpush1.msra.mxu0 %v2073
        %2075 = vmatprep.subr.mxu0 0.0
        %v2076 = vand.u32 %v1637, 4294901760
        %v2077 = vsub.f32 %v1637, %v2076
        %2078 = vmatpush1.msra.mxu0 %v2077
        %2079 = vmatprep.subr.mxu0 0.0
        %v2080 = vand.u32 %v1638, 4294901760
        %v2081 = vsub.f32 %v1638, %v2080
        %2082 = vmatpush1.msra.mxu0 %v2081
        %2083 = vmatprep.subr.mxu0 0.0
        %v2084 = vand.u32 %v1639, 4294901760
        %v2085 = vsub.f32 %v1639, %v2084
        %2086 = vmatpush1.msra.mxu0 %v2085
        %2087 = vmatprep.subr.mxu0 0.0
        %v2088 = vand.u32 %v1640, 4294901760
        %v2089 = vsub.f32 %v1640, %v2088
        %2090 = vmatpush1.msra.mxu0 %v2089
        %2091 = vmatprep.subr.mxu0 0.0
        %v2092 = vand.u32 %v1641, 4294901760
        %v2093 = vsub.f32 %v1641, %v2092
        %2094 = vmatpush1.msra.mxu0 %v2093
        %2095 = vmatprep.subr.mxu0 0.0
        %v2096 = vand.u32 %v1642, 4294901760
        %v2097 = vsub.f32 %v1642, %v2096
        %2098 = vmatpush1.msra.mxu0 %v2097
        %2099 = vmatprep.subr.mxu0 0.0
        %v2100 = vand.u32 %v1643, 4294901760
        %v2101 = vsub.f32 %v1643, %v2100
        %2102 = vmatpush1.msra.mxu0 %v2101
        %2103 = vmatprep.subr.mxu0 0.0
        %v2104 = vand.u32 %v1644, 4294901760
        %v2105 = vsub.f32 %v1644, %v2104
        %2106 = vmatpush1.msra.mxu0 %v2105
        %2107 = vmatprep.subr.mxu0 0.0
        %v2108 = vand.u32 %v1645, 4294901760
        %v2109 = vsub.f32 %v1645, %v2108
        %2110 = vmatpush1.msra.mxu0 %v2109
        %2111 = vmatprep.subr.mxu0 0.0
        %v2112 = vand.u32 %v1646, 4294901760
        %v2113 = vsub.f32 %v1646, %v2112
        %2114 = vmatpush1.msra.mxu0 %v2113
        %2115 = vmatprep.subr.mxu0 0.0
        %v2116 = vand.u32 %v1647, 4294901760
        %v2117 = vsub.f32 %v1647, %v2116
        %2118 = vmatpush1.msra.mxu0 %v2117
        %2119 = vmatprep.subr.mxu0 0.0
        %v2120 = vand.u32 %v1648, 4294901760
        %v2121 = vsub.f32 %v1648, %v2120
        %2122 = vmatpush1.msra.mxu0 %v2121
        %2123 = vmatprep.subr.mxu0 0.0
        %v2124 = vand.u32 %v1649, 4294901760
        %v2125 = vsub.f32 %v1649, %v2124
        %2126 = vmatpush1.msra.mxu0 %v2125
        %2127 = vmatprep.subr.mxu0 0.0
        %v2128 = vand.u32 %v1650, 4294901760
        %v2129 = vsub.f32 %v1650, %v2128
        %2130 = vmatpush1.msra.mxu0 %v2129
        %2131 = vmatprep.subr.mxu0 0.0
        %v2132 = vand.u32 %v1651, 4294901760
        %v2133 = vsub.f32 %v1651, %v2132
        %2134 = vmatpush1.msra.mxu0 %v2133
        %2135 = vmatprep.subr.mxu0 0.0
        %v2136 = vand.u32 %v1652, 4294901760
        %v2137 = vsub.f32 %v1652, %v2136
        %2138 = vmatpush1.msra.mxu0 %v2137
        %2139 = vmatprep.subr.mxu0 0.0
        %v2140 = vand.u32 %v1653, 4294901760
        %v2141 = vsub.f32 %v1653, %v2140
        %2142 = vmatpush1.msra.mxu0 %v2141
        %2143 = vmatprep.subr.mxu0 0.0
        %v2144 = vand.u32 %v1654, 4294901760
        %v2145 = vsub.f32 %v1654, %v2144
        %2146 = vmatpush1.msra.mxu0 %v2145
        %2147 = vmatprep.subr.mxu0 0.0
        %v2148 = vand.u32 %v1655, 4294901760
        %v2149 = vsub.f32 %v1655, %v2148
        %2150 = vmatpush1.msra.mxu0 %v2149
        %2151 = vmatprep.subr.mxu0 0.0
        %v2152 = vand.u32 %v1656, 4294901760
        %v2153 = vsub.f32 %v1656, %v2152
        %2154 = vmatpush1.msra.mxu0 %v2153
        %2155 = vmatprep.subr.mxu0 0.0
        %v2156 = vand.u32 %v1657, 4294901760
        %v2157 = vsub.f32 %v1657, %v2156
        %2158 = vmatpush1.msra.mxu0 %v2157
        %v2159 = vand.u32 %v666, 4294901760
        %v2160 = vsub.f32 %v666, %v2159
        %2161 = vmatprep.mubr.f32.mxu0 %v2160
        %v2162 = vand.u32 %v665, 4294901760
        %v2163 = vsub.f32 %v665, %v2162
        %2164 = vmatmul.mubr.f32.gmra.mrb[0].mxu0 %v2163
        %v2165 = vpop.f32.mrb[0].mxu0
        %v2166 = vadd.f32 %v2021, %v2165
        %v2167 = vpop.f32.mrb[0].mxu0
        %v2168 = vand.u32 %v668, 4294901760
        %v2169 = vsub.f32 %v668, %v2168
        %2170 = vmatprep.mubr.f32.mxu0 %v2169
        %v2171 = vand.u32 %v667, 4294901760
        %v2172 = vsub.f32 %v667, %v2171
        %2173 = vmatmul.mubr.f32.gmra.mrb[0].mxu0 %v2172
        %v2174 = vpop.f32.mrb[0].mxu0
        %v2175 = vadd.f32 %v2028, %v2174
        %v2176 = vpop.f32.mrb[0].mxu0
        %2177 = vdwg.mxu0
        %2178 = vmatprep.subr.mxu0 0.0
        %v2179 = vand.u32 %v1626, 4294901760
        %2180 = vmatpush1.msra.mxu0 %v2179
        %2181 = vmatprep.subr.mxu0 0.0
        %v2182 = vand.u32 %v1627, 4294901760
        %2183 = vmatpush1.msra.mxu0 %v2182
        %2184 = vmatprep.subr.mxu0 0.0
        %v2185 = vand.u32 %v1628, 4294901760
        %2186 = vmatpush1.msra.mxu0 %v2185
        %2187 = vmatprep.subr.mxu0 0.0
        %v2188 = vand.u32 %v1629, 4294901760
        %2189 = vmatpush1.msra.mxu0 %v2188
        %2190 = vmatprep.subr.mxu0 0.0
        %v2191 = vand.u32 %v1630, 4294901760
        %2192 = vmatpush1.msra.mxu0 %v2191
        %2193 = vmatprep.subr.mxu0 0.0
        %v2194 = vand.u32 %v1631, 4294901760
        %2195 = vmatpush1.msra.mxu0 %v2194
        %2196 = vmatprep.subr.mxu0 0.0
        %v2197 = vand.u32 %v1632, 4294901760
        %2198 = vmatpush1.msra.mxu0 %v2197
        %2199 = vmatprep.subr.mxu0 0.0
        %v2200 = vand.u32 %v1633, 4294901760
        %2201 = vmatpush1.msra.mxu0 %v2200
        %2202 = vmatprep.subr.mxu0 0.0
        %v2203 = vand.u32 %v1634, 4294901760
        %2204 = vmatpush1.msra.mxu0 %v2203
        %2205 = vmatprep.subr.mxu0 0.0
        %v2206 = vand.u32 %v1635, 4294901760
        %2207 = vmatpush1.msra.mxu0 %v2206
        %2208 = vmatprep.subr.mxu0 0.0
        %v2209 = vand.u32 %v1636, 4294901760
        %2210 = vmatpush1.msra.mxu0 %v2209
        %2211 = vmatprep.subr.mxu0 0.0
        %v2212 = vand.u32 %v1637, 4294901760
        %2213 = vmatpush1.msra.mxu0 %v2212
        %2214 = vmatprep.subr.mxu0 0.0
        %v2215 = vand.u32 %v1638, 4294901760
        %2216 = vmatpush1.msra.mxu0 %v2215
        %2217 = vmatprep.subr.mxu0 0.0
        %v2218 = vand.u32 %v1639, 4294901760
        %2219 = vmatpush1.msra.mxu0 %v2218
        %2220 = vmatprep.subr.mxu0 0.0
        %v2221 = vand.u32 %v1640, 4294901760
        %2222 = vmatpush1.msra.mxu0 %v2221
        %2223 = vmatprep.subr.mxu0 0.0
        %v2224 = vand.u32 %v1641, 4294901760
        %2225 = vmatpush1.msra.mxu0 %v2224
        %2226 = vmatprep.subr.mxu0 0.0
        %v2227 = vand.u32 %v1642, 4294901760
        %2228 = vmatpush1.msra.mxu0 %v2227
        %2229 = vmatprep.subr.mxu0 0.0
        %v2230 = vand.u32 %v1643, 4294901760
        %2231 = vmatpush1.msra.mxu0 %v2230
        %2232 = vmatprep.subr.mxu0 0.0
        %v2233 = vand.u32 %v1644, 4294901760
        %2234 = vmatpush1.msra.mxu0 %v2233
        %2235 = vmatprep.subr.mxu0 0.0
        %v2236 = vand.u32 %v1645, 4294901760
        %2237 = vmatpush1.msra.mxu0 %v2236
        %2238 = vmatprep.subr.mxu0 0.0
        %v2239 = vand.u32 %v1646, 4294901760
        %2240 = vmatpush1.msra.mxu0 %v2239
        %2241 = vmatprep.subr.mxu0 0.0
        %v2242 = vand.u32 %v1647, 4294901760
        %2243 = vmatpush1.msra.mxu0 %v2242
        %2244 = vmatprep.subr.mxu0 0.0
        %v2245 = vand.u32 %v1648, 4294901760
        %2246 = vmatpush1.msra.mxu0 %v2245
        %2247 = vmatprep.subr.mxu0 0.0
        %v2248 = vand.u32 %v1649, 4294901760
        %2249 = vmatpush1.msra.mxu0 %v2248
        %2250 = vmatprep.subr.mxu0 0.0
        %v2251 = vand.u32 %v1650, 4294901760
        %2252 = vmatpush1.msra.mxu0 %v2251
        %2253 = vmatprep.subr.mxu0 0.0
        %v2254 = vand.u32 %v1651, 4294901760
        %2255 = vmatpush1.msra.mxu0 %v2254
        %2256 = vmatprep.subr.mxu0 0.0
        %v2257 = vand.u32 %v1652, 4294901760
        %2258 = vmatpush1.msra.mxu0 %v2257
        %2259 = vmatprep.subr.mxu0 0.0
        %v2260 = vand.u32 %v1653, 4294901760
        %2261 = vmatpush1.msra.mxu0 %v2260
        %2262 = vmatprep.subr.mxu0 0.0
        %v2263 = vand.u32 %v1654, 4294901760
        %2264 = vmatpush1.msra.mxu0 %v2263
        %2265 = vmatprep.subr.mxu0 0.0
        %v2266 = vand.u32 %v1655, 4294901760
        %2267 = vmatpush1.msra.mxu0 %v2266
        %2268 = vmatprep.subr.mxu0 0.0
        %v2269 = vand.u32 %v1656, 4294901760
        %2270 = vmatpush1.msra.mxu0 %v2269
        %2271 = vmatprep.subr.mxu0 0.0
        %v2272 = vand.u32 %v1657, 4294901760
        %2273 = vmatpush1.msra.mxu0 %v2272
        %v2274 = vand.u32 %v666, 4294901760
        %v2275 = vsub.f32 %v666, %v2274
        %v2276 = vand.u32 %v2275, 4294901760
        %2277 = vmatprep.mubr.f32.mxu0 %v2276
        %v2278 = vand.u32 %v665, 4294901760
        %v2279 = vsub.f32 %v665, %v2278
        %v2280 = vand.u32 %v2279, 4294901760
        %2281 = vmatmul.mubr.f32.gmra.mrb[0].mxu0 %v2280
        %v2282 = vpop.f32.mrb[0].mxu0
        %v2283 = vadd.f32 %v2166, %v2282
        %v2284 = vpop.f32.mrb[0].mxu0
        %v2285 = vand.u32 %v668, 4294901760
        %v2286 = vsub.f32 %v668, %v2285
        %v2287 = vand.u32 %v2286, 4294901760
        %2288 = vmatprep.mubr.f32.mxu0 %v2287
        %v2289 = vand.u32 %v667, 4294901760
        %v2290 = vsub.f32 %v667, %v2289
        %v2291 = vand.u32 %v2290, 4294901760
        %2292 = vmatmul.mubr.f32.gmra.mrb[0].mxu0 %v2291
        %v2293 = vpop.f32.mrb[0].mxu0
        %v2294 = vadd.f32 %v2175, %v2293
        %v2295 = vpop.f32.mrb[0].mxu0
        %2296 = vdwg.mxu0
        %2297 = vmatprep.subr.mxu0 0.0
        %v2298 = vand.u32 %v1626, 4294901760
        %v2299 = vsub.f32 %v1626, %v2298
        %v2300 = vand.u32 %v2299, 4294901760
        %2301 = vmatpush1.msra.mxu0 %v2300
        %2302 = vmatprep.subr.mxu0 0.0
        %v2303 = vand.u32 %v1627, 4294901760
        %v2304 = vsub.f32 %v1627, %v2303
        %v2305 = vand.u32 %v2304, 4294901760
        %2306 = vmatpush1.msra.mxu0 %v2305
        %2307 = vmatprep.subr.mxu0 0.0
        %v2308 = vand.u32 %v1628, 4294901760
        %v2309 = vsub.f32 %v1628, %v2308
        %v2310 = vand.u32 %v2309, 4294901760
        %2311 = vmatpush1.msra.mxu0 %v2310
        %2312 = vmatprep.subr.mxu0 0.0
        %v2313 = vand.u32 %v1629, 4294901760
        %v2314 = vsub.f32 %v1629, %v2313
        %v2315 = vand.u32 %v2314, 4294901760
        %2316 = vmatpush1.msra.mxu0 %v2315
        %2317 = vmatprep.subr.mxu0 0.0
        %v2318 = vand.u32 %v1630, 4294901760
        %v2319 = vsub.f32 %v1630, %v2318
        %v2320 = vand.u32 %v2319, 4294901760
        %2321 = vmatpush1.msra.mxu0 %v2320
        %2322 = vmatprep.subr.mxu0 0.0
        %v2323 = vand.u32 %v1631, 4294901760
        %v2324 = vsub.f32 %v1631, %v2323
        %v2325 = vand.u32 %v2324, 4294901760
        %2326 = vmatpush1.msra.mxu0 %v2325
        %2327 = vmatprep.subr.mxu0 0.0
        %v2328 = vand.u32 %v1632, 4294901760
        %v2329 = vsub.f32 %v1632, %v2328
        %v2330 = vand.u32 %v2329, 4294901760
        %2331 = vmatpush1.msra.mxu0 %v2330
        %2332 = vmatprep.subr.mxu0 0.0
        %v2333 = vand.u32 %v1633, 4294901760
        %v2334 = vsub.f32 %v1633, %v2333
        %v2335 = vand.u32 %v2334, 4294901760
        %2336 = vmatpush1.msra.mxu0 %v2335
        %2337 = vmatprep.subr.mxu0 0.0
        %v2338 = vand.u32 %v1634, 4294901760
        %v2339 = vsub.f32 %v1634, %v2338
        %v2340 = vand.u32 %v2339, 4294901760
        %2341 = vmatpush1.msra.mxu0 %v2340
        %2342 = vmatprep.subr.mxu0 0.0
        %v2343 = vand.u32 %v1635, 4294901760
        %v2344 = vsub.f32 %v1635, %v2343
        %v2345 = vand.u32 %v2344, 4294901760
        %2346 = vmatpush1.msra.mxu0 %v2345
        %2347 = vmatprep.subr.mxu0 0.0
        %v2348 = vand.u32 %v1636, 4294901760
        %v2349 = vsub.f32 %v1636, %v2348
        %v2350 = vand.u32 %v2349, 4294901760
        %2351 = vmatpush1.msra.mxu0 %v2350
        %2352 = vmatprep.subr.mxu0 0.0
        %v2353 = vand.u32 %v1637, 4294901760
        %v2354 = vsub.f32 %v1637, %v2353
        %v2355 = vand.u32 %v2354, 4294901760
        %2356 = vmatpush1.msra.mxu0 %v2355
        %2357 = vmatprep.subr.mxu0 0.0
        %v2358 = vand.u32 %v1638, 4294901760
        %v2359 = vsub.f32 %v1638, %v2358
        %v2360 = vand.u32 %v2359, 4294901760
        %2361 = vmatpush1.msra.mxu0 %v2360
        %2362 = vmatprep.subr.mxu0 0.0
        %v2363 = vand.u32 %v1639, 4294901760
        %v2364 = vsub.f32 %v1639, %v2363
        %v2365 = vand.u32 %v2364, 4294901760
        %2366 = vmatpush1.msra.mxu0 %v2365
        %2367 = vmatprep.subr.mxu0 0.0
        %v2368 = vand.u32 %v1640, 4294901760
        %v2369 = vsub.f32 %v1640, %v2368
        %v2370 = vand.u32 %v2369, 4294901760
        %2371 = vmatpush1.msra.mxu0 %v2370
        %2372 = vmatprep.subr.mxu0 0.0
        %v2373 = vand.u32 %v1641, 4294901760
        %v2374 = vsub.f32 %v1641, %v2373
        %v2375 = vand.u32 %v2374, 4294901760
        %2376 = vmatpush1.msra.mxu0 %v2375
        %2377 = vmatprep.subr.mxu0 0.0
        %v2378 = vand.u32 %v1642, 4294901760
        %v2379 = vsub.f32 %v1642, %v2378
        %v2380 = vand.u32 %v2379, 4294901760
        %2381 = vmatpush1.msra.mxu0 %v2380
        %2382 = vmatprep.subr.mxu0 0.0
        %v2383 = vand.u32 %v1643, 4294901760
        %v2384 = vsub.f32 %v1643, %v2383
        %v2385 = vand.u32 %v2384, 4294901760
        %2386 = vmatpush1.msra.mxu0 %v2385
        %2387 = vmatprep.subr.mxu0 0.0
        %v2388 = vand.u32 %v1644, 4294901760
        %v2389 = vsub.f32 %v1644, %v2388
        %v2390 = vand.u32 %v2389, 4294901760
        %2391 = vmatpush1.msra.mxu0 %v2390
        %2392 = vmatprep.subr.mxu0 0.0
        %v2393 = vand.u32 %v1645, 4294901760
        %v2394 = vsub.f32 %v1645, %v2393
        %v2395 = vand.u32 %v2394, 4294901760
        %2396 = vmatpush1.msra.mxu0 %v2395
        %2397 = vmatprep.subr.mxu0 0.0
        %v2398 = vand.u32 %v1646, 4294901760
        %v2399 = vsub.f32 %v1646, %v2398
        %v2400 = vand.u32 %v2399, 4294901760
        %2401 = vmatpush1.msra.mxu0 %v2400
        %2402 = vmatprep.subr.mxu0 0.0
        %v2403 = vand.u32 %v1647, 4294901760
        %v2404 = vsub.f32 %v1647, %v2403
        %v2405 = vand.u32 %v2404, 4294901760
        %2406 = vmatpush1.msra.mxu0 %v2405
        %2407 = vmatprep.subr.mxu0 0.0
        %v2408 = vand.u32 %v1648, 4294901760
        %v2409 = vsub.f32 %v1648, %v2408
        %v2410 = vand.u32 %v2409, 4294901760
        %2411 = vmatpush1.msra.mxu0 %v2410
        %2412 = vmatprep.subr.mxu0 0.0
        %v2413 = vand.u32 %v1649, 4294901760
        %v2414 = vsub.f32 %v1649, %v2413
        %v2415 = vand.u32 %v2414, 4294901760
        %2416 = vmatpush1.msra.mxu0 %v2415
        %2417 = vmatprep.subr.mxu0 0.0
        %v2418 = vand.u32 %v1650, 4294901760
        %v2419 = vsub.f32 %v1650, %v2418
        %v2420 = vand.u32 %v2419, 4294901760
        %2421 = vmatpush1.msra.mxu0 %v2420
        %2422 = vmatprep.subr.mxu0 0.0
        %v2423 = vand.u32 %v1651, 4294901760
        %v2424 = vsub.f32 %v1651, %v2423
        %v2425 = vand.u32 %v2424, 4294901760
        %2426 = vmatpush1.msra.mxu0 %v2425
        %2427 = vmatprep.subr.mxu0 0.0
        %v2428 = vand.u32 %v1652, 4294901760
        %v2429 = vsub.f32 %v1652, %v2428
        %v2430 = vand.u32 %v2429, 4294901760
        %2431 = vmatpush1.msra.mxu0 %v2430
        %2432 = vmatprep.subr.mxu0 0.0
        %v2433 = vand.u32 %v1653, 4294901760
        %v2434 = vsub.f32 %v1653, %v2433
        %v2435 = vand.u32 %v2434, 4294901760
        %2436 = vmatpush1.msra.mxu0 %v2435
        %2437 = vmatprep.subr.mxu0 0.0
        %v2438 = vand.u32 %v1654, 4294901760
        %v2439 = vsub.f32 %v1654, %v2438
        %v2440 = vand.u32 %v2439, 4294901760
        %2441 = vmatpush1.msra.mxu0 %v2440
        %2442 = vmatprep.subr.mxu0 0.0
        %v2443 = vand.u32 %v1655, 4294901760
        %v2444 = vsub.f32 %v1655, %v2443
        %v2445 = vand.u32 %v2444, 4294901760
        %2446 = vmatpush1.msra.mxu0 %v2445
        %2447 = vmatprep.subr.mxu0 0.0
        %v2448 = vand.u32 %v1656, 4294901760
        %v2449 = vsub.f32 %v1656, %v2448
        %v2450 = vand.u32 %v2449, 4294901760
        %2451 = vmatpush1.msra.mxu0 %v2450
        %2452 = vmatprep.subr.mxu0 0.0
        %v2453 = vand.u32 %v1657, 4294901760
        %v2454 = vsub.f32 %v1657, %v2453
        %v2455 = vand.u32 %v2454, 4294901760
        %2456 = vmatpush1.msra.mxu0 %v2455
        %v2457 = vand.u32 %v666, 4294901760
        %2458 = vmatprep.mubr.f32.mxu0 %v2457
        %v2459 = vand.u32 %v665, 4294901760
        %2460 = vmatmul.mubr.f32.gmra.mrb[0].mxu0 %v2459
        %v2461 = vpop.f32.mrb[0].mxu0
        %v2462 = vadd.f32 %v2283, %v2461
        %v2463 = vpop.f32.mrb[0].mxu0
        %v2464 = vand.u32 %v668, 4294901760
        %2465 = vmatprep.mubr.f32.mxu0 %v2464
        %v2466 = vand.u32 %v667, 4294901760
        %2467 = vmatmul.mubr.f32.gmra.mrb[0].mxu0 %v2466
        %v2468 = vpop.f32.mrb[0].mxu0
        %v2469 = vadd.f32 %v2294, %v2468
        %v2470 = vpop.f32.mrb[0].mxu0
        %2471 = vdwg.mxu0
        %2472 = vmatprep.subr.mxu0 0.0
        %v2473 = vand.u32 %v1626, 4294901760
        %2474 = vmatpush1.msra.mxu0 %v2473
        %2475 = vmatprep.subr.mxu0 0.0
        %v2476 = vand.u32 %v1627, 4294901760
        %2477 = vmatpush1.msra.mxu0 %v2476
        %2478 = vmatprep.subr.mxu0 0.0
        %v2479 = vand.u32 %v1628, 4294901760
        %2480 = vmatpush1.msra.mxu0 %v2479
        %2481 = vmatprep.subr.mxu0 0.0
        %v2482 = vand.u32 %v1629, 4294901760
        %2483 = vmatpush1.msra.mxu0 %v2482
        %2484 = vmatprep.subr.mxu0 0.0
        %v2485 = vand.u32 %v1630, 4294901760
        %2486 = vmatpush1.msra.mxu0 %v2485
        %2487 = vmatprep.subr.mxu0 0.0
        %v2488 = vand.u32 %v1631, 4294901760
        %2489 = vmatpush1.msra.mxu0 %v2488
        %2490 = vmatprep.subr.mxu0 0.0
        %v2491 = vand.u32 %v1632, 4294901760
        %2492 = vmatpush1.msra.mxu0 %v2491
        %2493 = vmatprep.subr.mxu0 0.0
        %v2494 = vand.u32 %v1633, 4294901760
        %2495 = vmatpush1.msra.mxu0 %v2494
        %2496 = vmatprep.subr.mxu0 0.0
        %v2497 = vand.u32 %v1634, 4294901760
        %2498 = vmatpush1.msra.mxu0 %v2497
        %2499 = vmatprep.subr.mxu0 0.0
        %v2500 = vand.u32 %v1635, 4294901760
        %2501 = vmatpush1.msra.mxu0 %v2500
        %2502 = vmatprep.subr.mxu0 0.0
        %v2503 = vand.u32 %v1636, 4294901760
        %2504 = vmatpush1.msra.mxu0 %v2503
        %2505 = vmatprep.subr.mxu0 0.0
        %v2506 = vand.u32 %v1637, 4294901760
        %2507 = vmatpush1.msra.mxu0 %v2506
        %2508 = vmatprep.subr.mxu0 0.0
        %v2509 = vand.u32 %v1638, 4294901760
        %2510 = vmatpush1.msra.mxu0 %v2509
        %2511 = vmatprep.subr.mxu0 0.0
        %v2512 = vand.u32 %v1639, 4294901760
        %2513 = vmatpush1.msra.mxu0 %v2512
        %2514 = vmatprep.subr.mxu0 0.0
        %v2515 = vand.u32 %v1640, 4294901760
        %2516 = vmatpush1.msra.mxu0 %v2515
        %2517 = vmatprep.subr.mxu0 0.0
        %v2518 = vand.u32 %v1641, 4294901760
        %2519 = vmatpush1.msra.mxu0 %v2518
        %2520 = vmatprep.subr.mxu0 0.0
        %v2521 = vand.u32 %v1642, 4294901760
        %2522 = vmatpush1.msra.mxu0 %v2521
        %2523 = vmatprep.subr.mxu0 0.0
        %v2524 = vand.u32 %v1643, 4294901760
        %2525 = vmatpush1.msra.mxu0 %v2524
        %2526 = vmatprep.subr.mxu0 0.0
        %v2527 = vand.u32 %v1644, 4294901760
        %2528 = vmatpush1.msra.mxu0 %v2527
        %2529 = vmatprep.subr.mxu0 0.0
        %v2530 = vand.u32 %v1645, 4294901760
        %2531 = vmatpush1.msra.mxu0 %v2530
        %2532 = vmatprep.subr.mxu0 0.0
        %v2533 = vand.u32 %v1646, 4294901760
        %2534 = vmatpush1.msra.mxu0 %v2533
        %2535 = vmatprep.subr.mxu0 0.0
        %v2536 = vand.u32 %v1647, 4294901760
        %2537 = vmatpush1.msra.mxu0 %v2536
        %2538 = vmatprep.subr.mxu0 0.0
        %v2539 = vand.u32 %v1648, 4294901760
        %2540 = vmatpush1.msra.mxu0 %v2539
        %2541 = vmatprep.subr.mxu0 0.0
        %v2542 = vand.u32 %v1649, 4294901760
        %2543 = vmatpush1.msra.mxu0 %v2542
        %2544 = vmatprep.subr.mxu0 0.0
        %v2545 = vand.u32 %v1650, 4294901760
        %2546 = vmatpush1.msra.mxu0 %v2545
        %2547 = vmatprep.subr.mxu0 0.0
        %v2548 = vand.u32 %v1651, 4294901760
        %2549 = vmatpush1.msra.mxu0 %v2548
        %2550 = vmatprep.subr.mxu0 0.0
        %v2551 = vand.u32 %v1652, 4294901760
        %2552 = vmatpush1.msra.mxu0 %v2551
        %2553 = vmatprep.subr.mxu0 0.0
        %v2554 = vand.u32 %v1653, 4294901760
        %2555 = vmatpush1.msra.mxu0 %v2554
        %2556 = vmatprep.subr.mxu0 0.0
        %v2557 = vand.u32 %v1654, 4294901760
        %2558 = vmatpush1.msra.mxu0 %v2557
        %2559 = vmatprep.subr.mxu0 0.0
        %v2560 = vand.u32 %v1655, 4294901760
        %2561 = vmatpush1.msra.mxu0 %v2560
        %2562 = vmatprep.subr.mxu0 0.0
        %v2563 = vand.u32 %v1656, 4294901760
        %2564 = vmatpush1.msra.mxu0 %v2563
        %2565 = vmatprep.subr.mxu0 0.0
        %v2566 = vand.u32 %v1657, 4294901760
        %2567 = vmatpush1.msra.mxu0 %v2566
        %v2568 = vand.u32 %v666, 4294901760
        %2569 = vmatprep.mubr.f32.mxu0 %v2568
        %v2570 = vand.u32 %v665, 4294901760
        %2571 = vmatmul.mubr.f32.gmra.mrb[0].mxu0 %v2570
        %v2572 = vpop.f32.mrb[0].mxu0
        %v2573 = vadd.f32 %v2462, %v2572
        %v2574 = vpop.f32.mrb[0].mxu0
        %v2575 = vand.u32 %v668, 4294901760
        %2576 = vmatprep.mubr.f32.mxu0 %v2575
        %v2577 = vand.u32 %v667, 4294901760
        %2578 = vmatmul.mubr.f32.gmra.mrb[0].mxu0 %v2577
        %v2579 = vpop.f32.mrb[0].mxu0
        %v2580 = vadd.f32 %v2469, %v2579
        %v2581 = vpop.f32.mrb[0].mxu0
        %2582 = vdwg.mxu0
        %v2583 = vld [vmem:[#allocation8] sm:$0xff]
        %v2584 = vld [vmem:[#allocation8 + $0x8] sm:$0xff]
        %v2585 = vld [vmem:[#allocation8 + $0x10] sm:$0xff]
        %v2586 = vld [vmem:[#allocation8 + $0x18] sm:$0xff]
        %v2587 = vld [vmem:[#allocation8 + $0x20] sm:$0xff]
        %v2588 = vld [vmem:[#allocation8 + $0x28] sm:$0xff]
        %v2589 = vld [vmem:[#allocation8 + $0x30] sm:$0xff]
        %v2590 = vld [vmem:[#allocation8 + $0x38] sm:$0xff]
        %v2591 = vld [vmem:[#allocation8 + $0x40] sm:$0xff]
        %v2592 = vld [vmem:[#allocation8 + $0x48] sm:$0xff]
        %v2593 = vld [vmem:[#allocation8 + $0x50] sm:$0xff]
        %v2594 = vld [vmem:[#allocation8 + $0x58] sm:$0xff]
        %v2595 = vld [vmem:[#allocation8 + $0x60] sm:$0xff]
        %v2596 = vld [vmem:[#allocation8 + $0x68] sm:$0xff]
        %v2597 = vld [vmem:[#allocation8 + $0x70] sm:$0xff]
        %v2598 = vld [vmem:[#allocation8 + $0x78] sm:$0xff]
        %v2599 = vld [vmem:[#allocation8 + $0x80] sm:$0xff]
        %v2600 = vld [vmem:[#allocation8 + $0x88] sm:$0xff]
        %v2601 = vld [vmem:[#allocation8 + $0x90] sm:$0xff]
        %v2602 = vld [vmem:[#allocation8 + $0x98] sm:$0xff]
        %v2603 = vld [vmem:[#allocation8 + $0xa0] sm:$0xff]
        %v2604 = vld [vmem:[#allocation8 + $0xa8] sm:$0xff]
        %v2605 = vld [vmem:[#allocation8 + $0xb0] sm:$0xff]
        %v2606 = vld [vmem:[#allocation8 + $0xb8] sm:$0xff]
        %v2607 = vld [vmem:[#allocation8 + $0xc0] sm:$0xff]
        %v2608 = vld [vmem:[#allocation8 + $0xc8] sm:$0xff]
        %v2609 = vld [vmem:[#allocation8 + $0xd0] sm:$0xff]
        %v2610 = vld [vmem:[#allocation8 + $0xd8] sm:$0xff]
        %v2611 = vld [vmem:[#allocation8 + $0xe0] sm:$0xff]
        %v2612 = vld [vmem:[#allocation8 + $0xe8] sm:$0xff]
        %v2613 = vld [vmem:[#allocation8 + $0xf0] sm:$0xff]
        %v2614 = vld [vmem:[#allocation8 + $0xf8] sm:$0xff]
        %v2615 = vld [vmem:[#allocation13] sm:$0x1]
        %v2617 = vlaneseq
        %v2618 = vshrl.u32 %v2617, 7
        %v2619 = vsub.s32 0, %v2618
        %v2620 = vrot.slane %v2615, %v2619
        %2622 = vmatprep.subr.mxu0 0.0
        %v2623 = vand.u32 %v2583, 4294901760
        %2624 = vmatpush1.msra.mxu0 %v2623
        %2625 = vmatprep.subr.mxu0 0.0
        %v2626 = vand.u32 %v2584, 4294901760
        %2627 = vmatpush1.msra.mxu0 %v2626
        %2628 = vmatprep.subr.mxu0 0.0
        %v2629 = vand.u32 %v2585, 4294901760
        %2630 = vmatpush1.msra.mxu0 %v2629
        %2631 = vmatprep.subr.mxu0 0.0
        %v2632 = vand.u32 %v2586, 4294901760
        %2633 = vmatpush1.msra.mxu0 %v2632
        %2634 = vmatprep.subr.mxu0 0.0
        %v2635 = vand.u32 %v2587, 4294901760
        %2636 = vmatpush1.msra.mxu0 %v2635
        %2637 = vmatprep.subr.mxu0 0.0
        %v2638 = vand.u32 %v2588, 4294901760
        %2639 = vmatpush1.msra.mxu0 %v2638
        %2640 = vmatprep.subr.mxu0 0.0
        %v2641 = vand.u32 %v2589, 4294901760
        %2642 = vmatpush1.msra.mxu0 %v2641
        %2643 = vmatprep.subr.mxu0 0.0
        %v2644 = vand.u32 %v2590, 4294901760
        %2645 = vmatpush1.msra.mxu0 %v2644
        %2646 = vmatprep.subr.mxu0 0.0
        %v2647 = vand.u32 %v2591, 4294901760
        %2648 = vmatpush1.msra.mxu0 %v2647
        %2649 = vmatprep.subr.mxu0 0.0
        %v2650 = vand.u32 %v2592, 4294901760
        %2651 = vmatpush1.msra.mxu0 %v2650
        %2652 = vmatprep.subr.mxu0 0.0
        %v2653 = vand.u32 %v2593, 4294901760
        %2654 = vmatpush1.msra.mxu0 %v2653
        %2655 = vmatprep.subr.mxu0 0.0
        %v2656 = vand.u32 %v2594, 4294901760
        %2657 = vmatpush1.msra.mxu0 %v2656
        %2658 = vmatprep.subr.mxu0 0.0
        %v2659 = vand.u32 %v2595, 4294901760
        %2660 = vmatpush1.msra.mxu0 %v2659
        %2661 = vmatprep.subr.mxu0 0.0
        %v2662 = vand.u32 %v2596, 4294901760
        %2663 = vmatpush1.msra.mxu0 %v2662
        %2664 = vmatprep.subr.mxu0 0.0
        %v2665 = vand.u32 %v2597, 4294901760
        %2666 = vmatpush1.msra.mxu0 %v2665
        %2667 = vmatprep.subr.mxu0 0.0
        %v2668 = vand.u32 %v2598, 4294901760
        %2669 = vmatpush1.msra.mxu0 %v2668
        %2670 = vmatprep.subr.mxu0 0.0
        %v2671 = vand.u32 %v2599, 4294901760
        %2672 = vmatpush1.msra.mxu0 %v2671
        %2673 = vmatprep.subr.mxu0 0.0
        %v2674 = vand.u32 %v2600, 4294901760
        %2675 = vmatpush1.msra.mxu0 %v2674
        %2676 = vmatprep.subr.mxu0 0.0
        %v2677 = vand.u32 %v2601, 4294901760
        %2678 = vmatpush1.msra.mxu0 %v2677
        %2679 = vmatprep.subr.mxu0 0.0
        %v2680 = vand.u32 %v2602, 4294901760
        %2681 = vmatpush1.msra.mxu0 %v2680
        %2682 = vmatprep.subr.mxu0 0.0
        %v2683 = vand.u32 %v2603, 4294901760
        %2684 = vmatpush1.msra.mxu0 %v2683
        %2685 = vmatprep.subr.mxu0 0.0
        %v2686 = vand.u32 %v2604, 4294901760
        %2687 = vmatpush1.msra.mxu0 %v2686
        %2688 = vmatprep.subr.mxu0 0.0
        %v2689 = vand.u32 %v2605, 4294901760
        %2690 = vmatpush1.msra.mxu0 %v2689
        %2691 = vmatprep.subr.mxu0 0.0
        %v2692 = vand.u32 %v2606, 4294901760
        %2693 = vmatpush1.msra.mxu0 %v2692
        %2694 = vmatprep.subr.mxu0 0.0
        %v2695 = vand.u32 %v2607, 4294901760
        %2696 = vmatpush1.msra.mxu0 %v2695
        %2697 = vmatprep.subr.mxu0 0.0
        %v2698 = vand.u32 %v2608, 4294901760
        %2699 = vmatpush1.msra.mxu0 %v2698
        %2700 = vmatprep.subr.mxu0 0.0
        %v2701 = vand.u32 %v2609, 4294901760
        %2702 = vmatpush1.msra.mxu0 %v2701
        %2703 = vmatprep.subr.mxu0 0.0
        %v2704 = vand.u32 %v2610, 4294901760
        %2705 = vmatpush1.msra.mxu0 %v2704
        %2706 = vmatprep.subr.mxu0 0.0
        %v2707 = vand.u32 %v2611, 4294901760
        %2708 = vmatpush1.msra.mxu0 %v2707
        %2709 = vmatprep.subr.mxu0 0.0
        %v2710 = vand.u32 %v2612, 4294901760
        %2711 = vmatpush1.msra.mxu0 %v2710
        %2712 = vmatprep.subr.mxu0 0.0
        %v2713 = vand.u32 %v2613, 4294901760
        %2714 = vmatpush1.msra.mxu0 %v2713
        %2715 = vmatprep.subr.mxu0 0.0
        %v2716 = vand.u32 %v2614, 4294901760
        %2717 = vmatpush1.msra.mxu0 %v2716
        %v2718 = vand.u32 %v666, 4294901760
        %v2719 = vsub.f32 %v666, %v2718
        %v2720 = vand.u32 %v2719, 4294901760
        %v2721 = vsub.f32 %v2719, %v2720
        %v2722 = vand.u32 %v2721, 4294901760
        %2723 = vmatprep.mubr.f32.mxu0 %v2722
        %v2724 = vand.u32 %v665, 4294901760
        %v2725 = vsub.f32 %v665, %v2724
        %v2726 = vand.u32 %v2725, 4294901760
        %v2727 = vsub.f32 %v2725, %v2726
        %v2728 = vand.u32 %v2727, 4294901760
        %2729 = vmatmul.mubr.f32.gmra.mrb[0].mxu0 %v2728
        %v2730 = vpop.f32.mrb[0].mxu0
        %v2731 = vadd.f32 %v2620, %v2730
        %v2732 = vpop.f32.mrb[0].mxu0
        %v2733 = vand.u32 %v668, 4294901760
        %v2734 = vsub.f32 %v668, %v2733
        %v2735 = vand.u32 %v2734, 4294901760
        %v2736 = vsub.f32 %v2734, %v2735
        %v2737 = vand.u32 %v2736, 4294901760
        %2738 = vmatprep.mubr.f32.mxu0 %v2737
        %v2739 = vand.u32 %v667, 4294901760
        %v2740 = vsub.f32 %v667, %v2739
        %v2741 = vand.u32 %v2740, 4294901760
        %v2742 = vsub.f32 %v2740, %v2741
        %v2743 = vand.u32 %v2742, 4294901760
        %2744 = vmatmul.mubr.f32.gmra.mrb[0].mxu0 %v2743
        %v2745 = vpop.f32.mrb[0].mxu0
        %v2746 = vadd.f32 %v2620, %v2745
        %v2747 = vpop.f32.mrb[0].mxu0
        %2748 = vdwg.mxu0
        %2749 = vmatprep.subr.mxu0 0.0
        %v2750 = vand.u32 %v2583, 4294901760
        %v2751 = vsub.f32 %v2583, %v2750
        %v2752 = vand.u32 %v2751, 4294901760
        %v2753 = vsub.f32 %v2751, %v2752
        %v2754 = vand.u32 %v2753, 4294901760
        %2755 = vmatpush1.msra.mxu0 %v2754
        %2756 = vmatprep.subr.mxu0 0.0
        %v2757 = vand.u32 %v2584, 4294901760
        %v2758 = vsub.f32 %v2584, %v2757
        %v2759 = vand.u32 %v2758, 4294901760
        %v2760 = vsub.f32 %v2758, %v2759
        %v2761 = vand.u32 %v2760, 4294901760
        %2762 = vmatpush1.msra.mxu0 %v2761
        %2763 = vmatprep.subr.mxu0 0.0
        %v2764 = vand.u32 %v2585, 4294901760
        %v2765 = vsub.f32 %v2585, %v2764
        %v2766 = vand.u32 %v2765, 4294901760
        %v2767 = vsub.f32 %v2765, %v2766
        %v2768 = vand.u32 %v2767, 4294901760
        %2769 = vmatpush1.msra.mxu0 %v2768
        %2770 = vmatprep.subr.mxu0 0.0
        %v2771 = vand.u32 %v2586, 4294901760
        %v2772 = vsub.f32 %v2586, %v2771
        %v2773 = vand.u32 %v2772, 4294901760
        %v2774 = vsub.f32 %v2772, %v2773
        %v2775 = vand.u32 %v2774, 4294901760
        %2776 = vmatpush1.msra.mxu0 %v2775
        %2777 = vmatprep.subr.mxu0 0.0
        %v2778 = vand.u32 %v2587, 4294901760
        %v2779 = vsub.f32 %v2587, %v2778
        %v2780 = vand.u32 %v2779, 4294901760
        %v2781 = vsub.f32 %v2779, %v2780
        %v2782 = vand.u32 %v2781, 4294901760
        %2783 = vmatpush1.msra.mxu0 %v2782
        %2784 = vmatprep.subr.mxu0 0.0
        %v2785 = vand.u32 %v2588, 4294901760
        %v2786 = vsub.f32 %v2588, %v2785
        %v2787 = vand.u32 %v2786, 4294901760
        %v2788 = vsub.f32 %v2786, %v2787
        %v2789 = vand.u32 %v2788, 4294901760
        %2790 = vmatpush1.msra.mxu0 %v2789
        %2791 = vmatprep.subr.mxu0 0.0
        %v2792 = vand.u32 %v2589, 4294901760
        %v2793 = vsub.f32 %v2589, %v2792
        %v2794 = vand.u32 %v2793, 4294901760
        %v2795 = vsub.f32 %v2793, %v2794
        %v2796 = vand.u32 %v2795, 4294901760
        %2797 = vmatpush1.msra.mxu0 %v2796
        %2798 = vmatprep.subr.mxu0 0.0
        %v2799 = vand.u32 %v2590, 4294901760
        %v2800 = vsub.f32 %v2590, %v2799
        %v2801 = vand.u32 %v2800, 4294901760
        %v2802 = vsub.f32 %v2800, %v2801
        %v2803 = vand.u32 %v2802, 4294901760
        %2804 = vmatpush1.msra.mxu0 %v2803
        %2805 = vmatprep.subr.mxu0 0.0
        %v2806 = vand.u32 %v2591, 4294901760
        %v2807 = vsub.f32 %v2591, %v2806
        %v2808 = vand.u32 %v2807, 4294901760
        %v2809 = vsub.f32 %v2807, %v2808
        %v2810 = vand.u32 %v2809, 4294901760
        %2811 = vmatpush1.msra.mxu0 %v2810
        %2812 = vmatprep.subr.mxu0 0.0
        %v2813 = vand.u32 %v2592, 4294901760
        %v2814 = vsub.f32 %v2592, %v2813
        %v2815 = vand.u32 %v2814, 4294901760
        %v2816 = vsub.f32 %v2814, %v2815
        %v2817 = vand.u32 %v2816, 4294901760
        %2818 = vmatpush1.msra.mxu0 %v2817
        %2819 = vmatprep.subr.mxu0 0.0
        %v2820 = vand.u32 %v2593, 4294901760
        %v2821 = vsub.f32 %v2593, %v2820
        %v2822 = vand.u32 %v2821, 4294901760
        %v2823 = vsub.f32 %v2821, %v2822
        %v2824 = vand.u32 %v2823, 4294901760
        %2825 = vmatpush1.msra.mxu0 %v2824
        %2826 = vmatprep.subr.mxu0 0.0
        %v2827 = vand.u32 %v2594, 4294901760
        %v2828 = vsub.f32 %v2594, %v2827
        %v2829 = vand.u32 %v2828, 4294901760
        %v2830 = vsub.f32 %v2828, %v2829
        %v2831 = vand.u32 %v2830, 4294901760
        %2832 = vmatpush1.msra.mxu0 %v2831
        %2833 = vmatprep.subr.mxu0 0.0
        %v2834 = vand.u32 %v2595, 4294901760
        %v2835 = vsub.f32 %v2595, %v2834
        %v2836 = vand.u32 %v2835, 4294901760
        %v2837 = vsub.f32 %v2835, %v2836
        %v2838 = vand.u32 %v2837, 4294901760
        %2839 = vmatpush1.msra.mxu0 %v2838
        %2840 = vmatprep.subr.mxu0 0.0
        %v2841 = vand.u32 %v2596, 4294901760
        %v2842 = vsub.f32 %v2596, %v2841
        %v2843 = vand.u32 %v2842, 4294901760
        %v2844 = vsub.f32 %v2842, %v2843
        %v2845 = vand.u32 %v2844, 4294901760
        %2846 = vmatpush1.msra.mxu0 %v2845
        %2847 = vmatprep.subr.mxu0 0.0
        %v2848 = vand.u32 %v2597, 4294901760
        %v2849 = vsub.f32 %v2597, %v2848
        %v2850 = vand.u32 %v2849, 4294901760
        %v2851 = vsub.f32 %v2849, %v2850
        %v2852 = vand.u32 %v2851, 4294901760
        %2853 = vmatpush1.msra.mxu0 %v2852
        %2854 = vmatprep.subr.mxu0 0.0
        %v2855 = vand.u32 %v2598, 4294901760
        %v2856 = vsub.f32 %v2598, %v2855
        %v2857 = vand.u32 %v2856, 4294901760
        %v2858 = vsub.f32 %v2856, %v2857
        %v2859 = vand.u32 %v2858, 4294901760
        %2860 = vmatpush1.msra.mxu0 %v2859
        %2861 = vmatprep.subr.mxu0 0.0
        %v2862 = vand.u32 %v2599, 4294901760
        %v2863 = vsub.f32 %v2599, %v2862
        %v2864 = vand.u32 %v2863, 4294901760
        %v2865 = vsub.f32 %v2863, %v2864
        %v2866 = vand.u32 %v2865, 4294901760
        %2867 = vmatpush1.msra.mxu0 %v2866
        %2868 = vmatprep.subr.mxu0 0.0
        %v2869 = vand.u32 %v2600, 4294901760
        %v2870 = vsub.f32 %v2600, %v2869
        %v2871 = vand.u32 %v2870, 4294901760
        %v2872 = vsub.f32 %v2870, %v2871
        %v2873 = vand.u32 %v2872, 4294901760
        %2874 = vmatpush1.msra.mxu0 %v2873
        %2875 = vmatprep.subr.mxu0 0.0
        %v2876 = vand.u32 %v2601, 4294901760
        %v2877 = vsub.f32 %v2601, %v2876
        %v2878 = vand.u32 %v2877, 4294901760
        %v2879 = vsub.f32 %v2877, %v2878
        %v2880 = vand.u32 %v2879, 4294901760
        %2881 = vmatpush1.msra.mxu0 %v2880
        %2882 = vmatprep.subr.mxu0 0.0
        %v2883 = vand.u32 %v2602, 4294901760
        %v2884 = vsub.f32 %v2602, %v2883
        %v2885 = vand.u32 %v2884, 4294901760
        %v2886 = vsub.f32 %v2884, %v2885
        %v2887 = vand.u32 %v2886, 4294901760
        %2888 = vmatpush1.msra.mxu0 %v2887
        %2889 = vmatprep.subr.mxu0 0.0
        %v2890 = vand.u32 %v2603, 4294901760
        %v2891 = vsub.f32 %v2603, %v2890
        %v2892 = vand.u32 %v2891, 4294901760
        %v2893 = vsub.f32 %v2891, %v2892
        %v2894 = vand.u32 %v2893, 4294901760
        %2895 = vmatpush1.msra.mxu0 %v2894
        %2896 = vmatprep.subr.mxu0 0.0
        %v2897 = vand.u32 %v2604, 4294901760
        %v2898 = vsub.f32 %v2604, %v2897
        %v2899 = vand.u32 %v2898, 4294901760
        %v2900 = vsub.f32 %v2898, %v2899
        %v2901 = vand.u32 %v2900, 4294901760
        %2902 = vmatpush1.msra.mxu0 %v2901
        %2903 = vmatprep.subr.mxu0 0.0
        %v2904 = vand.u32 %v2605, 4294901760
        %v2905 = vsub.f32 %v2605, %v2904
        %v2906 = vand.u32 %v2905, 4294901760
        %v2907 = vsub.f32 %v2905, %v2906
        %v2908 = vand.u32 %v2907, 4294901760
        %2909 = vmatpush1.msra.mxu0 %v2908
        %2910 = vmatprep.subr.mxu0 0.0
        %v2911 = vand.u32 %v2606, 4294901760
        %v2912 = vsub.f32 %v2606, %v2911
        %v2913 = vand.u32 %v2912, 4294901760
        %v2914 = vsub.f32 %v2912, %v2913
        %v2915 = vand.u32 %v2914, 4294901760
        %2916 = vmatpush1.msra.mxu0 %v2915
        %2917 = vmatprep.subr.mxu0 0.0
        %v2918 = vand.u32 %v2607, 4294901760
        %v2919 = vsub.f32 %v2607, %v2918
        %v2920 = vand.u32 %v2919, 4294901760
        %v2921 = vsub.f32 %v2919, %v2920
        %v2922 = vand.u32 %v2921, 4294901760
        %2923 = vmatpush1.msra.mxu0 %v2922
        %2924 = vmatprep.subr.mxu0 0.0
        %v2925 = vand.u32 %v2608, 4294901760
        %v2926 = vsub.f32 %v2608, %v2925
        %v2927 = vand.u32 %v2926, 4294901760
        %v2928 = vsub.f32 %v2926, %v2927
        %v2929 = vand.u32 %v2928, 4294901760
        %2930 = vmatpush1.msra.mxu0 %v2929
        %2931 = vmatprep.subr.mxu0 0.0
        %v2932 = vand.u32 %v2609, 4294901760
        %v2933 = vsub.f32 %v2609, %v2932
        %v2934 = vand.u32 %v2933, 4294901760
        %v2935 = vsub.f32 %v2933, %v2934
        %v2936 = vand.u32 %v2935, 4294901760
        %2937 = vmatpush1.msra.mxu0 %v2936
        %2938 = vmatprep.subr.mxu0 0.0
        %v2939 = vand.u32 %v2610, 4294901760
        %v2940 = vsub.f32 %v2610, %v2939
        %v2941 = vand.u32 %v2940, 4294901760
        %v2942 = vsub.f32 %v2940, %v2941
        %v2943 = vand.u32 %v2942, 4294901760
        %2944 = vmatpush1.msra.mxu0 %v2943
        %2945 = vmatprep.subr.mxu0 0.0
        %v2946 = vand.u32 %v2611, 4294901760
        %v2947 = vsub.f32 %v2611, %v2946
        %v2948 = vand.u32 %v2947, 4294901760
        %v2949 = vsub.f32 %v2947, %v2948
        %v2950 = vand.u32 %v2949, 4294901760
        %2951 = vmatpush1.msra.mxu0 %v2950
        %2952 = vmatprep.subr.mxu0 0.0
        %v2953 = vand.u32 %v2612, 4294901760
        %v2954 = vsub.f32 %v2612, %v2953
        %v2955 = vand.u32 %v2954, 4294901760
        %v2956 = vsub.f32 %v2954, %v2955
        %v2957 = vand.u32 %v2956, 4294901760
        %2958 = vmatpush1.msra.mxu0 %v2957
        %2959 = vmatprep.subr.mxu0 0.0
        %v2960 = vand.u32 %v2613, 4294901760
        %v2961 = vsub.f32 %v2613, %v2960
        %v2962 = vand.u32 %v2961, 4294901760
        %v2963 = vsub.f32 %v2961, %v2962
        %v2964 = vand.u32 %v2963, 4294901760
        %2965 = vmatpush1.msra.mxu0 %v2964
        %2966 = vmatprep.subr.mxu0 0.0
        %v2967 = vand.u32 %v2614, 4294901760
        %v2968 = vsub.f32 %v2614, %v2967
        %v2969 = vand.u32 %v2968, 4294901760
        %v2970 = vsub.f32 %v2968, %v2969
        %v2971 = vand.u32 %v2970, 4294901760
        %2972 = vmatpush1.msra.mxu0 %v2971
        %v2973 = vand.u32 %v666, 4294901760
        %2974 = vmatprep.mubr.f32.mxu0 %v2973
        %v2975 = vand.u32 %v665, 4294901760
        %2976 = vmatmul.mubr.f32.gmra.mrb[0].mxu0 %v2975
        %v2977 = vpop.f32.mrb[0].mxu0
        %v2978 = vadd.f32 %v2731, %v2977
        %v2979 = vpop.f32.mrb[0].mxu0
        %v2980 = vand.u32 %v668, 4294901760
        %2981 = vmatprep.mubr.f32.mxu0 %v2980
        %v2982 = vand.u32 %v667, 4294901760
        %2983 = vmatmul.mubr.f32.gmra.mrb[0].mxu0 %v2982
        %v2984 = vpop.f32.mrb[0].mxu0
        %v2985 = vadd.f32 %v2746, %v2984
        %v2986 = vpop.f32.mrb[0].mxu0
        %2987 = vdwg.mxu0
        %2988 = vmatprep.subr.mxu0 0.0
        %v2989 = vand.u32 %v2583, 4294901760
        %v2990 = vsub.f32 %v2583, %v2989
        %2991 = vmatpush1.msra.mxu0 %v2990
        %2992 = vmatprep.subr.mxu0 0.0
        %v2993 = vand.u32 %v2584, 4294901760
        %v2994 = vsub.f32 %v2584, %v2993
        %2995 = vmatpush1.msra.mxu0 %v2994
        %2996 = vmatprep.subr.mxu0 0.0
        %v2997 = vand.u32 %v2585, 4294901760
        %v2998 = vsub.f32 %v2585, %v2997
        %2999 = vmatpush1.msra.mxu0 %v2998
        %3000 = vmatprep.subr.mxu0 0.0
        %v3001 = vand.u32 %v2586, 4294901760
        %v3002 = vsub.f32 %v2586, %v3001
        %3003 = vmatpush1.msra.mxu0 %v3002
        %3004 = vmatprep.subr.mxu0 0.0
        %v3005 = vand.u32 %v2587, 4294901760
        %v3006 = vsub.f32 %v2587, %v3005
        %3007 = vmatpush1.msra.mxu0 %v3006
        %3008 = vmatprep.subr.mxu0 0.0
        %v3009 = vand.u32 %v2588, 4294901760
        %v3010 = vsub.f32 %v2588, %v3009
        %3011 = vmatpush1.msra.mxu0 %v3010
        %3012 = vmatprep.subr.mxu0 0.0
        %v3013 = vand.u32 %v2589, 4294901760
        %v3014 = vsub.f32 %v2589, %v3013
        %3015 = vmatpush1.msra.mxu0 %v3014
        %3016 = vmatprep.subr.mxu0 0.0
        %v3017 = vand.u32 %v2590, 4294901760
        %v3018 = vsub.f32 %v2590, %v3017
        %3019 = vmatpush1.msra.mxu0 %v3018
        %3020 = vmatprep.subr.mxu0 0.0
        %v3021 = vand.u32 %v2591, 4294901760
        %v3022 = vsub.f32 %v2591, %v3021
        %3023 = vmatpush1.msra.mxu0 %v3022
        %3024 = vmatprep.subr.mxu0 0.0
        %v3025 = vand.u32 %v2592, 4294901760
        %v3026 = vsub.f32 %v2592, %v3025
        %3027 = vmatpush1.msra.mxu0 %v3026
        %3028 = vmatprep.subr.mxu0 0.0
        %v3029 = vand.u32 %v2593, 4294901760
        %v3030 = vsub.f32 %v2593, %v3029
        %3031 = vmatpush1.msra.mxu0 %v3030
        %3032 = vmatprep.subr.mxu0 0.0
        %v3033 = vand.u32 %v2594, 4294901760
        %v3034 = vsub.f32 %v2594, %v3033
        %3035 = vmatpush1.msra.mxu0 %v3034
        %3036 = vmatprep.subr.mxu0 0.0
        %v3037 = vand.u32 %v2595, 4294901760
        %v3038 = vsub.f32 %v2595, %v3037
        %3039 = vmatpush1.msra.mxu0 %v3038
        %3040 = vmatprep.subr.mxu0 0.0
        %v3041 = vand.u32 %v2596, 4294901760
        %v3042 = vsub.f32 %v2596, %v3041
        %3043 = vmatpush1.msra.mxu0 %v3042
        %3044 = vmatprep.subr.mxu0 0.0
        %v3045 = vand.u32 %v2597, 4294901760
        %v3046 = vsub.f32 %v2597, %v3045
        %3047 = vmatpush1.msra.mxu0 %v3046
        %3048 = vmatprep.subr.mxu0 0.0
        %v3049 = vand.u32 %v2598, 4294901760
        %v3050 = vsub.f32 %v2598, %v3049
        %3051 = vmatpush1.msra.mxu0 %v3050
        %3052 = vmatprep.subr.mxu0 0.0
        %v3053 = vand.u32 %v2599, 4294901760
        %v3054 = vsub.f32 %v2599, %v3053
        %3055 = vmatpush1.msra.mxu0 %v3054
        %3056 = vmatprep.subr.mxu0 0.0
        %v3057 = vand.u32 %v2600, 4294901760
        %v3058 = vsub.f32 %v2600, %v3057
        %3059 = vmatpush1.msra.mxu0 %v3058
        %3060 = vmatprep.subr.mxu0 0.0
        %v3061 = vand.u32 %v2601, 4294901760
        %v3062 = vsub.f32 %v2601, %v3061
        %3063 = vmatpush1.msra.mxu0 %v3062
        %3064 = vmatprep.subr.mxu0 0.0
        %v3065 = vand.u32 %v2602, 4294901760
        %v3066 = vsub.f32 %v2602, %v3065
        %3067 = vmatpush1.msra.mxu0 %v3066
        %3068 = vmatprep.subr.mxu0 0.0
        %v3069 = vand.u32 %v2603, 4294901760
        %v3070 = vsub.f32 %v2603, %v3069
        %3071 = vmatpush1.msra.mxu0 %v3070
        %3072 = vmatprep.subr.mxu0 0.0
        %v3073 = vand.u32 %v2604, 4294901760
        %v3074 = vsub.f32 %v2604, %v3073
        %3075 = vmatpush1.msra.mxu0 %v3074
        %3076 = vmatprep.subr.mxu0 0.0
        %v3077 = vand.u32 %v2605, 4294901760
        %v3078 = vsub.f32 %v2605, %v3077
        %3079 = vmatpush1.msra.mxu0 %v3078
        %3080 = vmatprep.subr.mxu0 0.0
        %v3081 = vand.u32 %v2606, 4294901760
        %v3082 = vsub.f32 %v2606, %v3081
        %3083 = vmatpush1.msra.mxu0 %v3082
        %3084 = vmatprep.subr.mxu0 0.0
        %v3085 = vand.u32 %v2607, 4294901760
        %v3086 = vsub.f32 %v2607, %v3085
        %3087 = vmatpush1.msra.mxu0 %v3086
        %3088 = vmatprep.subr.mxu0 0.0
        %v3089 = vand.u32 %v2608, 4294901760
        %v3090 = vsub.f32 %v2608, %v3089
        %3091 = vmatpush1.msra.mxu0 %v3090
        %3092 = vmatprep.subr.mxu0 0.0
        %v3093 = vand.u32 %v2609, 4294901760
        %v3094 = vsub.f32 %v2609, %v3093
        %3095 = vmatpush1.msra.mxu0 %v3094
        %3096 = vmatprep.subr.mxu0 0.0
        %v3097 = vand.u32 %v2610, 4294901760
        %v3098 = vsub.f32 %v2610, %v3097
        %3099 = vmatpush1.msra.mxu0 %v3098
        %3100 = vmatprep.subr.mxu0 0.0
        %v3101 = vand.u32 %v2611, 4294901760
        %v3102 = vsub.f32 %v2611, %v3101
        %3103 = vmatpush1.msra.mxu0 %v3102
        %3104 = vmatprep.subr.mxu0 0.0
        %v3105 = vand.u32 %v2612, 4294901760
        %v3106 = vsub.f32 %v2612, %v3105
        %3107 = vmatpush1.msra.mxu0 %v3106
        %3108 = vmatprep.subr.mxu0 0.0
        %v3109 = vand.u32 %v2613, 4294901760
        %v3110 = vsub.f32 %v2613, %v3109
        %3111 = vmatpush1.msra.mxu0 %v3110
        %3112 = vmatprep.subr.mxu0 0.0
        %v3113 = vand.u32 %v2614, 4294901760
        %v3114 = vsub.f32 %v2614, %v3113
        %3115 = vmatpush1.msra.mxu0 %v3114
        %v3116 = vand.u32 %v666, 4294901760
        %v3117 = vsub.f32 %v666, %v3116
        %3118 = vmatprep.mubr.f32.mxu0 %v3117
        %v3119 = vand.u32 %v665, 4294901760
        %v3120 = vsub.f32 %v665, %v3119
        %3121 = vmatmul.mubr.f32.gmra.mrb[0].mxu0 %v3120
        %v3122 = vpop.f32.mrb[0].mxu0
        %v3123 = vadd.f32 %v2978, %v3122
        %v3124 = vpop.f32.mrb[0].mxu0
        %v3125 = vand.u32 %v668, 4294901760
        %v3126 = vsub.f32 %v668, %v3125
        %3127 = vmatprep.mubr.f32.mxu0 %v3126
        %v3128 = vand.u32 %v667, 4294901760
        %v3129 = vsub.f32 %v667, %v3128
        %3130 = vmatmul.mubr.f32.gmra.mrb[0].mxu0 %v3129
        %v3131 = vpop.f32.mrb[0].mxu0
        %v3132 = vadd.f32 %v2985, %v3131
        %v3133 = vpop.f32.mrb[0].mxu0
        %3134 = vdwg.mxu0
        %3135 = vmatprep.subr.mxu0 0.0
        %v3136 = vand.u32 %v2583, 4294901760
        %3137 = vmatpush1.msra.mxu0 %v3136
        %3138 = vmatprep.subr.mxu0 0.0
        %v3139 = vand.u32 %v2584, 4294901760
        %3140 = vmatpush1.msra.mxu0 %v3139
        %3141 = vmatprep.subr.mxu0 0.0
        %v3142 = vand.u32 %v2585, 4294901760
        %3143 = vmatpush1.msra.mxu0 %v3142
        %3144 = vmatprep.subr.mxu0 0.0
        %v3145 = vand.u32 %v2586, 4294901760
        %3146 = vmatpush1.msra.mxu0 %v3145
        %3147 = vmatprep.subr.mxu0 0.0
        %v3148 = vand.u32 %v2587, 4294901760
        %3149 = vmatpush1.msra.mxu0 %v3148
        %3150 = vmatprep.subr.mxu0 0.0
        %v3151 = vand.u32 %v2588, 4294901760
        %3152 = vmatpush1.msra.mxu0 %v3151
        %3153 = vmatprep.subr.mxu0 0.0
        %v3154 = vand.u32 %v2589, 4294901760
        %3155 = vmatpush1.msra.mxu0 %v3154
        %3156 = vmatprep.subr.mxu0 0.0
        %v3157 = vand.u32 %v2590, 4294901760
        %3158 = vmatpush1.msra.mxu0 %v3157
        %3159 = vmatprep.subr.mxu0 0.0
        %v3160 = vand.u32 %v2591, 4294901760
        %3161 = vmatpush1.msra.mxu0 %v3160
        %3162 = vmatprep.subr.mxu0 0.0
        %v3163 = vand.u32 %v2592, 4294901760
        %3164 = vmatpush1.msra.mxu0 %v3163
        %3165 = vmatprep.subr.mxu0 0.0
        %v3166 = vand.u32 %v2593, 4294901760
        %3167 = vmatpush1.msra.mxu0 %v3166
        %3168 = vmatprep.subr.mxu0 0.0
        %v3169 = vand.u32 %v2594, 4294901760
        %3170 = vmatpush1.msra.mxu0 %v3169
        %3171 = vmatprep.subr.mxu0 0.0
        %v3172 = vand.u32 %v2595, 4294901760
        %3173 = vmatpush1.msra.mxu0 %v3172
        %3174 = vmatprep.subr.mxu0 0.0
        %v3175 = vand.u32 %v2596, 4294901760
        %3176 = vmatpush1.msra.mxu0 %v3175
        %3177 = vmatprep.subr.mxu0 0.0
        %v3178 = vand.u32 %v2597, 4294901760
        %3179 = vmatpush1.msra.mxu0 %v3178
        %3180 = vmatprep.subr.mxu0 0.0
        %v3181 = vand.u32 %v2598, 4294901760
        %3182 = vmatpush1.msra.mxu0 %v3181
        %3183 = vmatprep.subr.mxu0 0.0
        %v3184 = vand.u32 %v2599, 4294901760
        %3185 = vmatpush1.msra.mxu0 %v3184
        %3186 = vmatprep.subr.mxu0 0.0
        %v3187 = vand.u32 %v2600, 4294901760
        %3188 = vmatpush1.msra.mxu0 %v3187
        %3189 = vmatprep.subr.mxu0 0.0
        %v3190 = vand.u32 %v2601, 4294901760
        %3191 = vmatpush1.msra.mxu0 %v3190
        %3192 = vmatprep.subr.mxu0 0.0
        %v3193 = vand.u32 %v2602, 4294901760
        %3194 = vmatpush1.msra.mxu0 %v3193
        %3195 = vmatprep.subr.mxu0 0.0
        %v3196 = vand.u32 %v2603, 4294901760
        %3197 = vmatpush1.msra.mxu0 %v3196
        %3198 = vmatprep.subr.mxu0 0.0
        %v3199 = vand.u32 %v2604, 4294901760
        %3200 = vmatpush1.msra.mxu0 %v3199
        %3201 = vmatprep.subr.mxu0 0.0
        %v3202 = vand.u32 %v2605, 4294901760
        %3203 = vmatpush1.msra.mxu0 %v3202
        %3204 = vmatprep.subr.mxu0 0.0
        %v3205 = vand.u32 %v2606, 4294901760
        %3206 = vmatpush1.msra.mxu0 %v3205
        %3207 = vmatprep.subr.mxu0 0.0
        %v3208 = vand.u32 %v2607, 4294901760
        %3209 = vmatpush1.msra.mxu0 %v3208
        %3210 = vmatprep.subr.mxu0 0.0
        %v3211 = vand.u32 %v2608, 4294901760
        %3212 = vmatpush1.msra.mxu0 %v3211
        %3213 = vmatprep.subr.mxu0 0.0
        %v3214 = vand.u32 %v2609, 4294901760
        %3215 = vmatpush1.msra.mxu0 %v3214
        %3216 = vmatprep.subr.mxu0 0.0
        %v3217 = vand.u32 %v2610, 4294901760
        %3218 = vmatpush1.msra.mxu0 %v3217
        %3219 = vmatprep.subr.mxu0 0.0
        %v3220 = vand.u32 %v2611, 4294901760
        %3221 = vmatpush1.msra.mxu0 %v3220
        %3222 = vmatprep.subr.mxu0 0.0
        %v3223 = vand.u32 %v2612, 4294901760
        %3224 = vmatpush1.msra.mxu0 %v3223
        %3225 = vmatprep.subr.mxu0 0.0
        %v3226 = vand.u32 %v2613, 4294901760
        %3227 = vmatpush1.msra.mxu0 %v3226
        %3228 = vmatprep.subr.mxu0 0.0
        %v3229 = vand.u32 %v2614, 4294901760
        %3230 = vmatpush1.msra.mxu0 %v3229
        %v3231 = vand.u32 %v666, 4294901760
        %v3232 = vsub.f32 %v666, %v3231
        %v3233 = vand.u32 %v3232, 4294901760
        %3234 = vmatprep.mubr.f32.mxu0 %v3233
        %v3235 = vand.u32 %v665, 4294901760
        %v3236 = vsub.f32 %v665, %v3235
        %v3237 = vand.u32 %v3236, 4294901760
        %3238 = vmatmul.mubr.f32.gmra.mrb[0].mxu0 %v3237
        %v3239 = vpop.f32.mrb[0].mxu0
        %v3240 = vadd.f32 %v3123, %v3239
        %v3241 = vpop.f32.mrb[0].mxu0
        %v3242 = vand.u32 %v668, 4294901760
        %v3243 = vsub.f32 %v668, %v3242
        %v3244 = vand.u32 %v3243, 4294901760
        %3245 = vmatprep.mubr.f32.mxu0 %v3244
        %v3246 = vand.u32 %v667, 4294901760
        %v3247 = vsub.f32 %v667, %v3246
        %v3248 = vand.u32 %v3247, 4294901760
        %3249 = vmatmul.mubr.f32.gmra.mrb[0].mxu0 %v3248
        %v3250 = vpop.f32.mrb[0].mxu0
        %v3251 = vadd.f32 %v3132, %v3250
        %v3252 = vpop.f32.mrb[0].mxu0
        %3253 = vdwg.mxu0
        %3254 = vmatprep.subr.mxu0 0.0
        %v3255 = vand.u32 %v2583, 4294901760
        %v3256 = vsub.f32 %v2583, %v3255
        %v3257 = vand.u32 %v3256, 4294901760
        %3258 = vmatpush1.msra.mxu0 %v3257
        %3259 = vmatprep.subr.mxu0 0.0
        %v3260 = vand.u32 %v2584, 4294901760
        %v3261 = vsub.f32 %v2584, %v3260
        %v3262 = vand.u32 %v3261, 4294901760
        %3263 = vmatpush1.msra.mxu0 %v3262
        %3264 = vmatprep.subr.mxu0 0.0
        %v3265 = vand.u32 %v2585, 4294901760
        %v3266 = vsub.f32 %v2585, %v3265
        %v3267 = vand.u32 %v3266, 4294901760
        %3268 = vmatpush1.msra.mxu0 %v3267
        %3269 = vmatprep.subr.mxu0 0.0
        %v3270 = vand.u32 %v2586, 4294901760
        %v3271 = vsub.f32 %v2586, %v3270
        %v3272 = vand.u32 %v3271, 4294901760
        %3273 = vmatpush1.msra.mxu0 %v3272
        %3274 = vmatprep.subr.mxu0 0.0
        %v3275 = vand.u32 %v2587, 4294901760
        %v3276 = vsub.f32 %v2587, %v3275
        %v3277 = vand.u32 %v3276, 4294901760
        %3278 = vmatpush1.msra.mxu0 %v3277
        %3279 = vmatprep.subr.mxu0 0.0
        %v3280 = vand.u32 %v2588, 4294901760
        %v3281 = vsub.f32 %v2588, %v3280
        %v3282 = vand.u32 %v3281, 4294901760
        %3283 = vmatpush1.msra.mxu0 %v3282
        %3284 = vmatprep.subr.mxu0 0.0
        %v3285 = vand.u32 %v2589, 4294901760
        %v3286 = vsub.f32 %v2589, %v3285
        %v3287 = vand.u32 %v3286, 4294901760
        %3288 = vmatpush1.msra.mxu0 %v3287
        %3289 = vmatprep.subr.mxu0 0.0
        %v3290 = vand.u32 %v2590, 4294901760
        %v3291 = vsub.f32 %v2590, %v3290
        %v3292 = vand.u32 %v3291, 4294901760
        %3293 = vmatpush1.msra.mxu0 %v3292
        %3294 = vmatprep.subr.mxu0 0.0
        %v3295 = vand.u32 %v2591, 4294901760
        %v3296 = vsub.f32 %v2591, %v3295
        %v3297 = vand.u32 %v3296, 4294901760
        %3298 = vmatpush1.msra.mxu0 %v3297
        %3299 = vmatprep.subr.mxu0 0.0
        %v3300 = vand.u32 %v2592, 4294901760
        %v3301 = vsub.f32 %v2592, %v3300
        %v3302 = vand.u32 %v3301, 4294901760
        %3303 = vmatpush1.msra.mxu0 %v3302
        %3304 = vmatprep.subr.mxu0 0.0
        %v3305 = vand.u32 %v2593, 4294901760
        %v3306 = vsub.f32 %v2593, %v3305
        %v3307 = vand.u32 %v3306, 4294901760
        %3308 = vmatpush1.msra.mxu0 %v3307
        %3309 = vmatprep.subr.mxu0 0.0
        %v3310 = vand.u32 %v2594, 4294901760
        %v3311 = vsub.f32 %v2594, %v3310
        %v3312 = vand.u32 %v3311, 4294901760
        %3313 = vmatpush1.msra.mxu0 %v3312
        %3314 = vmatprep.subr.mxu0 0.0
        %v3315 = vand.u32 %v2595, 4294901760
        %v3316 = vsub.f32 %v2595, %v3315
        %v3317 = vand.u32 %v3316, 4294901760
        %3318 = vmatpush1.msra.mxu0 %v3317
        %3319 = vmatprep.subr.mxu0 0.0
        %v3320 = vand.u32 %v2596, 4294901760
        %v3321 = vsub.f32 %v2596, %v3320
        %v3322 = vand.u32 %v3321, 4294901760
        %3323 = vmatpush1.msra.mxu0 %v3322
        %3324 = vmatprep.subr.mxu0 0.0
        %v3325 = vand.u32 %v2597, 4294901760
        %v3326 = vsub.f32 %v2597, %v3325
        %v3327 = vand.u32 %v3326, 4294901760
        %3328 = vmatpush1.msra.mxu0 %v3327
        %3329 = vmatprep.subr.mxu0 0.0
        %v3330 = vand.u32 %v2598, 4294901760
        %v3331 = vsub.f32 %v2598, %v3330
        %v3332 = vand.u32 %v3331, 4294901760
        %3333 = vmatpush1.msra.mxu0 %v3332
        %3334 = vmatprep.subr.mxu0 0.0
        %v3335 = vand.u32 %v2599, 4294901760
        %v3336 = vsub.f32 %v2599, %v3335
        %v3337 = vand.u32 %v3336, 4294901760
        %3338 = vmatpush1.msra.mxu0 %v3337
        %3339 = vmatprep.subr.mxu0 0.0
        %v3340 = vand.u32 %v2600, 4294901760
        %v3341 = vsub.f32 %v2600, %v3340
        %v3342 = vand.u32 %v3341, 4294901760
        %3343 = vmatpush1.msra.mxu0 %v3342
        %3344 = vmatprep.subr.mxu0 0.0
        %v3345 = vand.u32 %v2601, 4294901760
        %v3346 = vsub.f32 %v2601, %v3345
        %v3347 = vand.u32 %v3346, 4294901760
        %3348 = vmatpush1.msra.mxu0 %v3347
        %3349 = vmatprep.subr.mxu0 0.0
        %v3350 = vand.u32 %v2602, 4294901760
        %v3351 = vsub.f32 %v2602, %v3350
        %v3352 = vand.u32 %v3351, 4294901760
        %3353 = vmatpush1.msra.mxu0 %v3352
        %3354 = vmatprep.subr.mxu0 0.0
        %v3355 = vand.u32 %v2603, 4294901760
        %v3356 = vsub.f32 %v2603, %v3355
        %v3357 = vand.u32 %v3356, 4294901760
        %3358 = vmatpush1.msra.mxu0 %v3357
        %3359 = vmatprep.subr.mxu0 0.0
        %v3360 = vand.u32 %v2604, 4294901760
        %v3361 = vsub.f32 %v2604, %v3360
        %v3362 = vand.u32 %v3361, 4294901760
        %3363 = vmatpush1.msra.mxu0 %v3362
        %3364 = vmatprep.subr.mxu0 0.0
        %v3365 = vand.u32 %v2605, 4294901760
        %v3366 = vsub.f32 %v2605, %v3365
        %v3367 = vand.u32 %v3366, 4294901760
        %3368 = vmatpush1.msra.mxu0 %v3367
        %3369 = vmatprep.subr.mxu0 0.0
        %v3370 = vand.u32 %v2606, 4294901760
        %v3371 = vsub.f32 %v2606, %v3370
        %v3372 = vand.u32 %v3371, 4294901760
        %3373 = vmatpush1.msra.mxu0 %v3372
        %3374 = vmatprep.subr.mxu0 0.0
        %v3375 = vand.u32 %v2607, 4294901760
        %v3376 = vsub.f32 %v2607, %v3375
        %v3377 = vand.u32 %v3376, 4294901760
        %3378 = vmatpush1.msra.mxu0 %v3377
        %3379 = vmatprep.subr.mxu0 0.0
        %v3380 = vand.u32 %v2608, 4294901760
        %v3381 = vsub.f32 %v2608, %v3380
        %v3382 = vand.u32 %v3381, 4294901760
        %3383 = vmatpush1.msra.mxu0 %v3382
        %3384 = vmatprep.subr.mxu0 0.0
        %v3385 = vand.u32 %v2609, 4294901760
        %v3386 = vsub.f32 %v2609, %v3385
        %v3387 = vand.u32 %v3386, 4294901760
        %3388 = vmatpush1.msra.mxu0 %v3387
        %3389 = vmatprep.subr.mxu0 0.0
        %v3390 = vand.u32 %v2610, 4294901760
        %v3391 = vsub.f32 %v2610, %v3390
        %v3392 = vand.u32 %v3391, 4294901760
        %3393 = vmatpush1.msra.mxu0 %v3392
        %3394 = vmatprep.subr.mxu0 0.0
        %v3395 = vand.u32 %v2611, 4294901760
        %v3396 = vsub.f32 %v2611, %v3395
        %v3397 = vand.u32 %v3396, 4294901760
        %3398 = vmatpush1.msra.mxu0 %v3397
        %3399 = vmatprep.subr.mxu0 0.0
        %v3400 = vand.u32 %v2612, 4294901760
        %v3401 = vsub.f32 %v2612, %v3400
        %v3402 = vand.u32 %v3401, 4294901760
        %3403 = vmatpush1.msra.mxu0 %v3402
        %3404 = vmatprep.subr.mxu0 0.0
        %v3405 = vand.u32 %v2613, 4294901760
        %v3406 = vsub.f32 %v2613, %v3405
        %v3407 = vand.u32 %v3406, 4294901760
        %3408 = vmatpush1.msra.mxu0 %v3407
        %3409 = vmatprep.subr.mxu0 0.0
        %v3410 = vand.u32 %v2614, 4294901760
        %v3411 = vsub.f32 %v2614, %v3410
        %v3412 = vand.u32 %v3411, 4294901760
        %3413 = vmatpush1.msra.mxu0 %v3412
        %v3414 = vand.u32 %v666, 4294901760
        %3415 = vmatprep.mubr.f32.mxu0 %v3414
        %v3416 = vand.u32 %v665, 4294901760
        %3417 = vmatmul.mubr.f32.gmra.mrb[0].mxu0 %v3416
        %v3418 = vpop.f32.mrb[0].mxu0
        %v3419 = vadd.f32 %v3240, %v3418
        %v3420 = vpop.f32.mrb[0].mxu0
        %v3421 = vand.u32 %v668, 4294901760
        %3422 = vmatprep.mubr.f32.mxu0 %v3421
        %v3423 = vand.u32 %v667, 4294901760
        %3424 = vmatmul.mubr.f32.gmra.mrb[0].mxu0 %v3423
        %v3425 = vpop.f32.mrb[0].mxu0
        %v3426 = vadd.f32 %v3251, %v3425
        %v3427 = vpop.f32.mrb[0].mxu0
        %3428 = vdwg.mxu0
        %3429 = vmatprep.subr.mxu0 0.0
        %v3430 = vand.u32 %v2583, 4294901760
        %3431 = vmatpush1.msra.mxu0 %v3430
        %3432 = vmatprep.subr.mxu0 0.0
        %v3433 = vand.u32 %v2584, 4294901760
        %3434 = vmatpush1.msra.mxu0 %v3433
        %3435 = vmatprep.subr.mxu0 0.0
        %v3436 = vand.u32 %v2585, 4294901760
        %3437 = vmatpush1.msra.mxu0 %v3436
        %3438 = vmatprep.subr.mxu0 0.0
        %v3439 = vand.u32 %v2586, 4294901760
        %3440 = vmatpush1.msra.mxu0 %v3439
        %3441 = vmatprep.subr.mxu0 0.0
        %v3442 = vand.u32 %v2587, 4294901760
        %3443 = vmatpush1.msra.mxu0 %v3442
        %3444 = vmatprep.subr.mxu0 0.0
        %v3445 = vand.u32 %v2588, 4294901760
        %3446 = vmatpush1.msra.mxu0 %v3445
        %3447 = vmatprep.subr.mxu0 0.0
        %v3448 = vand.u32 %v2589, 4294901760
        %3449 = vmatpush1.msra.mxu0 %v3448
        %3450 = vmatprep.subr.mxu0 0.0
        %v3451 = vand.u32 %v2590, 4294901760
        %3452 = vmatpush1.msra.mxu0 %v3451
        %3453 = vmatprep.subr.mxu0 0.0
        %v3454 = vand.u32 %v2591, 4294901760
        %3455 = vmatpush1.msra.mxu0 %v3454
        %3456 = vmatprep.subr.mxu0 0.0
        %v3457 = vand.u32 %v2592, 4294901760
        %3458 = vmatpush1.msra.mxu0 %v3457
        %3459 = vmatprep.subr.mxu0 0.0
        %v3460 = vand.u32 %v2593, 4294901760
        %3461 = vmatpush1.msra.mxu0 %v3460
        %3462 = vmatprep.subr.mxu0 0.0
        %v3463 = vand.u32 %v2594, 4294901760
        %3464 = vmatpush1.msra.mxu0 %v3463
        %3465 = vmatprep.subr.mxu0 0.0
        %v3466 = vand.u32 %v2595, 4294901760
        %3467 = vmatpush1.msra.mxu0 %v3466
        %3468 = vmatprep.subr.mxu0 0.0
        %v3469 = vand.u32 %v2596, 4294901760
        %3470 = vmatpush1.msra.mxu0 %v3469
        %3471 = vmatprep.subr.mxu0 0.0
        %v3472 = vand.u32 %v2597, 4294901760
        %3473 = vmatpush1.msra.mxu0 %v3472
        %3474 = vmatprep.subr.mxu0 0.0
        %v3475 = vand.u32 %v2598, 4294901760
        %3476 = vmatpush1.msra.mxu0 %v3475
        %3477 = vmatprep.subr.mxu0 0.0
        %v3478 = vand.u32 %v2599, 4294901760
        %3479 = vmatpush1.msra.mxu0 %v3478
        %3480 = vmatprep.subr.mxu0 0.0
        %v3481 = vand.u32 %v2600, 4294901760
        %3482 = vmatpush1.msra.mxu0 %v3481
        %3483 = vmatprep.subr.mxu0 0.0
        %v3484 = vand.u32 %v2601, 4294901760
        %3485 = vmatpush1.msra.mxu0 %v3484
        %3486 = vmatprep.subr.mxu0 0.0
        %v3487 = vand.u32 %v2602, 4294901760
        %3488 = vmatpush1.msra.mxu0 %v3487
        %3489 = vmatprep.subr.mxu0 0.0
        %v3490 = vand.u32 %v2603, 4294901760
        %3491 = vmatpush1.msra.mxu0 %v3490
        %3492 = vmatprep.subr.mxu0 0.0
        %v3493 = vand.u32 %v2604, 4294901760
        %3494 = vmatpush1.msra.mxu0 %v3493
        %3495 = vmatprep.subr.mxu0 0.0
        %v3496 = vand.u32 %v2605, 4294901760
        %3497 = vmatpush1.msra.mxu0 %v3496
        %3498 = vmatprep.subr.mxu0 0.0
        %v3499 = vand.u32 %v2606, 4294901760
        %3500 = vmatpush1.msra.mxu0 %v3499
        %3501 = vmatprep.subr.mxu0 0.0
        %v3502 = vand.u32 %v2607, 4294901760
        %3503 = vmatpush1.msra.mxu0 %v3502
        %3504 = vmatprep.subr.mxu0 0.0
        %v3505 = vand.u32 %v2608, 4294901760
        %3506 = vmatpush1.msra.mxu0 %v3505
        %3507 = vmatprep.subr.mxu0 0.0
        %v3508 = vand.u32 %v2609, 4294901760
        %3509 = vmatpush1.msra.mxu0 %v3508
        %3510 = vmatprep.subr.mxu0 0.0
        %v3511 = vand.u32 %v2610, 4294901760
        %3512 = vmatpush1.msra.mxu0 %v3511
        %3513 = vmatprep.subr.mxu0 0.0
        %v3514 = vand.u32 %v2611, 4294901760
        %3515 = vmatpush1.msra.mxu0 %v3514
        %3516 = vmatprep.subr.mxu0 0.0
        %v3517 = vand.u32 %v2612, 4294901760
        %3518 = vmatpush1.msra.mxu0 %v3517
        %3519 = vmatprep.subr.mxu0 0.0
        %v3520 = vand.u32 %v2613, 4294901760
        %3521 = vmatpush1.msra.mxu0 %v3520
        %3522 = vmatprep.subr.mxu0 0.0
        %v3523 = vand.u32 %v2614, 4294901760
        %3524 = vmatpush1.msra.mxu0 %v3523
        %v3525 = vand.u32 %v666, 4294901760
        %3526 = vmatprep.mubr.f32.mxu0 %v3525
        %v3527 = vand.u32 %v665, 4294901760
        %3528 = vmatmul.mubr.f32.gmra.mrb[0].mxu0 %v3527
        %v3529 = vpop.f32.mrb[0].mxu0
        %v3530 = vadd.f32 %v3419, %v3529
        %v3531 = vpop.f32.mrb[0].mxu0
        %v3532 = vand.u32 %v668, 4294901760
        %3533 = vmatprep.mubr.f32.mxu0 %v3532
        %v3534 = vand.u32 %v667, 4294901760
        %3535 = vmatmul.mubr.f32.gmra.mrb[0].mxu0 %v3534
        %v3536 = vpop.f32.mrb[0].mxu0
        %v3537 = vadd.f32 %v3426, %v3536
        %v3538 = vpop.f32.mrb[0].mxu0
        %3539 = vdwg.mxu0
        %3540 = vst [vmem:[%s658] sm:$0xff] %v3530
        %3541 = vst [vmem:[%s658 + $0x8] sm:$0xff] %v3537
        %v3542 = vld [vmem:[%s591] sm:$0xff]
        %v3543 = vld [vmem:[%s591 + $0x8] sm:$0xff]
        %v3544 = vld [vmem:[%s600] sm:$0xff]
        %v3545 = vld [vmem:[%s600 + $0x8] sm:$0xff]
        %v3546 = vmul.f32 %v1616, %v3542
        %v3547 = vmul.f32 %v1623, %v3543
        %3550 = vrot.lane.b32.xlu0 %v3544, 16
        %v3551 = vpop.permute.xlu0 %3550
        %3552 = vrot.lane.b32.xlu0 %v3545, 16
        %v3553 = vpop.permute.xlu0 %3552
        %v3556 = vmul.f32 %v1616, %v3551
        %v3557 = vmul.f32 %v1623, %v3553
        %3560 = vrot.lane.b32.xlu0 %v3556, 112
        %v3561 = vpop.permute.xlu0 %3560
        %3562 = vrot.lane.b32.xlu0 %v3557, 112
        %v3563 = vpop.permute.xlu0 %3562
        %v3566 = vsub.f32 %v3546, %v3561
        %v3567 = vsub.f32 %v3547, %v3563
        %v3568 = vmul.f32 %v1616, %v3544
        %v3569 = vmul.f32 %v1623, %v3545
        %3572 = vrot.lane.b32.xlu0 %v3542, 16
        %v3573 = vpop.permute.xlu0 %3572
        %3574 = vrot.lane.b32.xlu0 %v3543, 16
        %v3575 = vpop.permute.xlu0 %3574
        %v3578 = vmul.f32 %v1616, %v3573
        %v3579 = vmul.f32 %v1623, %v3575
        %3582 = vrot.lane.b32.xlu0 %v3578, 112
        %v3583 = vpop.permute.xlu0 %3582
        %3584 = vrot.lane.b32.xlu0 %v3579, 112
        %v3585 = vpop.permute.xlu0 %3584
        %v3588 = vadd.f32 %v3568, %v3583
        %v3589 = vadd.f32 %v3569, %v3585
        %3590 = vrot.lane.b32.xlu0 %v3542, 64
        %v3591 = vpop.permute.xlu0 %3590
        %3592 = vrot.lane.b32.xlu0 %v3543, 64
        %v3593 = vpop.permute.xlu0 %3592
        %v3596 = vmul.f32 %v1616, %v3591
        %v3597 = vmul.f32 %v1623, %v3593
        %3598 = vrot.lane.b32.xlu0 %v3544, 80
        %v3599 = vpop.permute.xlu0 %3598
        %3600 = vrot.lane.b32.xlu0 %v3545, 80
        %v3601 = vpop.permute.xlu0 %3600
        %v3604 = vmul.f32 %v1616, %v3599
        %v3605 = vmul.f32 %v1623, %v3601
        %3608 = vrot.lane.b32.xlu0 %v3604, 112
        %v3609 = vpop.permute.xlu0 %3608
        %3610 = vrot.lane.b32.xlu0 %v3605, 112
        %v3611 = vpop.permute.xlu0 %3610
        %v3614 = vsub.f32 %v3596, %v3609
        %v3615 = vsub.f32 %v3597, %v3611
        %3616 = vrot.lane.b32.xlu0 %v3544, 64
        %v3617 = vpop.permute.xlu0 %3616
        %3618 = vrot.lane.b32.xlu0 %v3545, 64
        %v3619 = vpop.permute.xlu0 %3618
        %v3622 = vmul.f32 %v1616, %v3617
        %v3623 = vmul.f32 %v1623, %v3619
        %3624 = vrot.lane.b32.xlu0 %v3542, 80
        %v3625 = vpop.permute.xlu0 %3624
        %3626 = vrot.lane.b32.xlu0 %v3543, 80
        %v3627 = vpop.permute.xlu0 %3626
        %v3630 = vmul.f32 %v1616, %v3625
        %v3631 = vmul.f32 %v1623, %v3627
        %3634 = vrot.lane.b32.xlu0 %v3630, 112
        %v3635 = vpop.permute.xlu0 %3634
        %3636 = vrot.lane.b32.xlu0 %v3631, 112
        %v3637 = vpop.permute.xlu0 %3636
        %v3640 = vadd.f32 %v3622, %v3635
        %v3641 = vadd.f32 %v3623, %v3637
        %3644 = vrot.lane.b32.xlu0 %v3588, 16
        %v3645 = vpop.permute.xlu0 %3644
        %3646 = vrot.lane.b32.xlu0 %v3589, 16
        %v3647 = vpop.permute.xlu0 %3646
        %3652 = vrot.lane.b32.xlu0 %v3640, 16
        %v3653 = vpop.permute.xlu0 %3652
        %3654 = vrot.lane.b32.xlu0 %v3641, 16
        %v3655 = vpop.permute.xlu0 %3654
        %vm3658 = vcmask 130048
        %v3659 = vsel %vm3658, %v3566, %v3645
        %v3660 = vsel %vm3658, %v3567, %v3647
        %vm3661 = vcmask 261120
        %v3662 = vsel %vm3661, %v3659, %v1616
        %v3663 = vsel %vm3661, %v3660, %v1623
        %vm3664 = vcmask 523264
        %v3665 = vsel %vm3664, %v3662, %v3614
        %v3666 = vsel %vm3664, %v3663, %v3615
        %vm3667 = vcmask 654336
        %v3668 = vsel %vm3667, %v3665, %v3653
        %v3669 = vsel %vm3667, %v3666, %v3655
        %vm3670 = vcmask 785408
        %v3671 = vsel %vm3670, %v3668, %v1616
        %v3672 = vsel %vm3670, %v3669, %v1623
        %3673 = vst [vmem:[%s644] sm:$0xff] %v3671
        %3674 = vst [vmem:[%s644 + $0x8] sm:$0xff] %v3672
        %v3675 = vmul.f32 %v2573, %v3542
        %v3676 = vmul.f32 %v2580, %v3543
        %v3677 = vmul.f32 %v2573, %v3551
        %v3678 = vmul.f32 %v2580, %v3553
        %3681 = vrot.lane.b32.xlu0 %v3677, 112
        %v3682 = vpop.permute.xlu0 %3681
        %3683 = vrot.lane.b32.xlu0 %v3678, 112
        %v3684 = vpop.permute.xlu0 %3683
        %v3687 = vsub.f32 %v3675, %v3682
        %v3688 = vsub.f32 %v3676, %v3684
        %v3689 = vmul.f32 %v2573, %v3544
        %v3690 = vmul.f32 %v2580, %v3545
        %v3691 = vmul.f32 %v2573, %v3573
        %v3692 = vmul.f32 %v2580, %v3575
        %3695 = vrot.lane.b32.xlu0 %v3691, 112
        %v3696 = vpop.permute.xlu0 %3695
        %3697 = vrot.lane.b32.xlu0 %v3692, 112
        %v3698 = vpop.permute.xlu0 %3697
        %v3701 = vadd.f32 %v3689, %v3696
        %v3702 = vadd.f32 %v3690, %v3698
        %v3703 = vmul.f32 %v2573, %v3591
        %v3704 = vmul.f32 %v2580, %v3593
        %v3705 = vmul.f32 %v2573, %v3599
        %v3706 = vmul.f32 %v2580, %v3601
        %3709 = vrot.lane.b32.xlu0 %v3705, 112
        %v3710 = vpop.permute.xlu0 %3709
        %3711 = vrot.lane.b32.xlu0 %v3706, 112
        %v3712 = vpop.permute.xlu0 %3711
        %v3715 = vsub.f32 %v3703, %v3710
        %v3716 = vsub.f32 %v3704, %v3712
        %v3717 = vmul.f32 %v2573, %v3617
        %v3718 = vmul.f32 %v2580, %v3619
        %v3719 = vmul.f32 %v2573, %v3625
        %v3720 = vmul.f32 %v2580, %v3627
        %3723 = vrot.lane.b32.xlu0 %v3719, 112
        %v3724 = vpop.permute.xlu0 %3723
        %3725 = vrot.lane.b32.xlu0 %v3720, 112
        %v3726 = vpop.permute.xlu0 %3725
        %v3729 = vadd.f32 %v3717, %v3724
        %v3730 = vadd.f32 %v3718, %v3726
        %3733 = vrot.lane.b32.xlu0 %v3701, 16
        %v3734 = vpop.permute.xlu0 %3733
        %3735 = vrot.lane.b32.xlu0 %v3702, 16
        %v3736 = vpop.permute.xlu0 %3735
        %3741 = vrot.lane.b32.xlu0 %v3729, 16
        %v3742 = vpop.permute.xlu0 %3741
        %3743 = vrot.lane.b32.xlu0 %v3730, 16
        %v3744 = vpop.permute.xlu0 %3743
        %v3747 = vsel %vm3658, %v3687, %v3734
        %v3748 = vsel %vm3658, %v3688, %v3736
        %v3749 = vsel %vm3661, %v3747, %v2573
        %v3750 = vsel %vm3661, %v3748, %v2580
        %v3751 = vsel %vm3664, %v3749, %v3715
        %v3752 = vsel %vm3664, %v3750, %v3716
        %v3753 = vsel %vm3667, %v3751, %v3742
        %v3754 = vsel %vm3667, %v3752, %v3744
        %v3755 = vsel %vm3670, %v3753, %v2573
        %v3756 = vsel %vm3670, %v3754, %v2580
        %3757 = vst [vmem:[%s651] sm:$0xff] %v3755
        %3758 = vst [vmem:[%s651 + $0x8] sm:$0xff] %v3756
        %s3759 = sand.u32 %s305, 1
        %s3760 = scalar_lea.sflag [#allocation4], %s3759
        %s3761 = sand.u32 %s305, 1
        %s3762 = smul.addr %s3761, 16
        %s3763 = scalar_lea.vmem [#allocation17], %s3762
        %s3764 = sand.u32 %s38, 1
        %s3765 = scalar_lea.sflag [#allocation19], %s3764
        %s3766 = sand.u32 %s335, 1
        %s3767 = smul.addr %s3766, 16
        %s3768 = scalar_lea.vmem [#allocation18], %s3767
        %s3769 = sand.u32 %s38, 1
        %s3770 = scalar_lea.sflag [#allocation19], %s3769
        %s3771 = sand.u32 %s365, 1
        %s3772 = smul.addr %s3771, 16
        %s3773 = scalar_lea.vmem [#allocation20], %s3772
        // Predicated region
        $region93: #{tpu_custom_call.1} parent=55 // pred_check
          %p3774 = pneg %p315
        $region94: #{tpu_custom_call.1} parent=55 // pred_check_branch
          %3776 = sbr.rel (%p3774) target = $region96
        $region95: #{tpu_custom_call.1} parent=55 // pred_region
          %s3777 = smul.u32 2, %s45
          %s3779 = ssub.s32 256, 256
          %3780 = vsyncadd %s3760, %s3779
          %s3781 = smul.addr %s3777, 2
          %s3782 = sadd.s32 %s44, %s3781
          %s3783 = smul.addr %s43, 8
          %s3784 = sadd.s32 %s3782, %s3783
          %s3785 = smul.addr %s3784, 128
          %s3786 = scalar_lea.hbm %s9, %s3785
          %s3787 = sshll.u32 %s3763, 4
          %s3788 = int_to_ptr.vmem [resolvable:$true] %s3787
          %3793 = dma.vmem_to_hbm [thread:$0]  %s3788, 256, %s3786, %s3760, 128, 256, 8
        $region96: #{tpu_custom_call.1} parent=55 // pred_fallthru
          _
        // Predicated region
        $region97: #{tpu_custom_call.1} parent=55 // pred_check
          %p3794 = pneg %p345
        $region98: #{tpu_custom_call.1} parent=55 // pred_check_branch
          %3796 = sbr.rel (%p3794) target = $region100
        $region99: #{tpu_custom_call.1} parent=55 // pred_region
          %s3797 = smul.u32 2, %s45
          %s3799 = ssub.s32 256, 256
          %3800 = vsyncadd %s3765, %s3799
          %s3801 = smul.addr %s3797, 2
          %s3802 = sadd.s32 %s44, %s3801
          %s3803 = smul.addr %s43, 8
          %s3804 = sadd.s32 %s3802, %s3803
          %s3805 = smul.addr %s3804, 128
          %s3806 = scalar_lea.hbm %s10, %s3805
          %s3807 = sshll.u32 %s3768, 4
          %s3808 = int_to_ptr.vmem [resolvable:$true] %s3807
          %3813 = dma.vmem_to_hbm [thread:$0]  %s3808, 256, %s3806, %s3765, 128, 256, 8
        $region100: #{tpu_custom_call.1} parent=55 // pred_fallthru
          _
        // Predicated region
        $region101: #{tpu_custom_call.1} parent=55 // pred_check
          %p3814 = pneg %p375
        $region102: #{tpu_custom_call.1} parent=55 // pred_check_branch
          %3816 = sbr.rel (%p3814) target = $region104
        $region103: #{tpu_custom_call.1} parent=55 // pred_region
          %s3817 = smul.u32 2, %s45
          %s3819 = ssub.s32 256, 256
          %3820 = vsyncadd %s3770, %s3819
          %s3821 = smul.addr %s3817, 2
          %s3822 = sadd.s32 %s44, %s3821
          %s3823 = smul.addr %s43, 8
          %s3824 = sadd.s32 %s3822, %s3823
          %s3825 = smul.addr %s3824, 128
          %s3826 = scalar_lea.hbm %s11, %s3825
          %s3827 = sshll.u32 %s3773, 4
          %s3828 = int_to_ptr.vmem [resolvable:$true] %s3827
          %3833 = dma.vmem_to_hbm [thread:$0]  %s3828, 256, %s3826, %s3770, 128, 256, 8
        $region104: #{tpu_custom_call.1} parent=55 // pred_fallthru
          _
      $region56: #{tpu_custom_call.1} parent=5 // pred_fallthru
        _
      %p3834 = scmp.le.s32.totalorder 2, %s33
      // Predicated region
      $region105: #{tpu_custom_call.1} parent=5 // pred_check
        %p3835 = pneg %p3834
      $region106: #{tpu_custom_call.1} parent=5 // pred_check_branch
        %3837 = sbr.rel (%p3835) target = $region108
      $region107: #{tpu_custom_call.1} parent=5 // pred_region
        %s3838 = ssub.s32 %s33, 2
        // Predicated region
        $region109: #{tpu_custom_call.1} parent=107 // pred_check
          %p3839 = pneg %p321
        $region110: #{tpu_custom_call.1} parent=107 // pred_check_branch
          %3841 = sbr.rel (%p3839) target = $region112
        $region111: #{tpu_custom_call.1} parent=107 // pred_region
          %s3842 = sand.u32 %s306, 1
          %s3843 = scalar_lea.sflag [#allocation4], %s3842
          %s3844 = sand.u32 %s306, 1
          %s3845 = smul.addr %s3844, 16
          %s3846 = scalar_lea.vmem [#allocation17], %s3845
          %3847 = dma.done %s3843, 256
        $region112: #{tpu_custom_call.1} parent=107 // pred_fallthru
          _
        // Predicated region
        $region113: #{tpu_custom_call.1} parent=107 // pred_check
          %p3848 = pneg %p351
        $region114: #{tpu_custom_call.1} parent=107 // pred_check_branch
          %3850 = sbr.rel (%p3848) target = $region116
        $region115: #{tpu_custom_call.1} parent=107 // pred_region
          %s3851 = sand.u32 %s39, 1
          %s3852 = scalar_lea.sflag [#allocation19], %s3851
          %s3853 = sand.u32 %s336, 1
          %s3854 = smul.addr %s3853, 16
          %s3855 = scalar_lea.vmem [#allocation18], %s3854
          %3856 = dma.done %s3852, 256
        $region116: #{tpu_custom_call.1} parent=107 // pred_fallthru
          _
        // Predicated region
        $region117: #{tpu_custom_call.1} parent=107 // pred_check
          %p3857 = pneg %p381
        $region118: #{tpu_custom_call.1} parent=107 // pred_check_branch
          %3859 = sbr.rel (%p3857) target = $region120
        $region119: #{tpu_custom_call.1} parent=107 // pred_region
          %s3860 = sand.u32 %s39, 1
          %s3861 = scalar_lea.sflag [#allocation19], %s3860
          %s3862 = sand.u32 %s366, 1
          %s3863 = smul.addr %s3862, 16
          %s3864 = scalar_lea.vmem [#allocation20], %s3863
          %3865 = dma.done %s3861, 256
        $region120: #{tpu_custom_call.1} parent=107 // pred_fallthru
          _
      $region108: #{tpu_custom_call.1} parent=5 // pred_fallthru
        _
    $region6: #{tpu_custom_call.1} parent=1 // loop_footer
      %s37 = sadd.s32 1, %s33
    $region7: #{tpu_custom_call.1} parent=1 // loop_footer_branch
      %32 = sbr.rel target = $region3
    $region8: #{tpu_custom_call.1} parent=1 // loop_exit
      _
    %3866 = vsyncpa [#allocation3], 1
    %s3867 = scalar_lea.sflag [#allocation3], 1
    %3868 = vsyncpa %s3867, 1
    %3869 = vsyncpa [#allocation6], 1
    %3870 = vsyncpa [#allocation9], 1
    %3871 = vsyncpa [#allocation12], 1
    %3872 = vsyncpa [#allocation15], 1
    %s3873 = scalar_lea.sflag [#allocation15], 1
    %3874 = vsyncpa %s3873, 1
    %3875 = vsyncpa [#allocation4], 1
    %s3876 = scalar_lea.sflag [#allocation4], 1
    %3877 = vsyncpa %s3876, 1
    %3878 = vsyncpa [#allocation19], 1
    %s3879 = scalar_lea.sflag [#allocation19], 1
    %3880 = vsyncpa %s3879, 1

</llo_original>
